<compile_context>
chip_gen: v7x
topology: tpu7x:2x2x1
jax: 0.10.0
libtpu: 0.0.40
codegen_flags: <defaults>
</compile_context>

<pallas_src>
import jax
import jax.numpy as jnp
import numpy as np
from jax.experimental import pallas as pl
from jax.experimental.pallas import tpu as pltpu

BN_EPS = 1e-5


# ----------------------------------------------------------------------------
# Constant matrices (numpy, trace-time)
# ----------------------------------------------------------------------------
def _row_shift_mats(B, H):
    """S[0]: row r <- row r-1 (0 at image top); S[1]: row r <- row r+1 (0 at bottom)."""
    rows = B * H
    s_up = np.zeros((rows, rows), np.float32)
    s_dn = np.zeros((rows, rows), np.float32)
    for r in range(rows):
        if r % H != 0:
            s_up[r, r - 1] = 1.0
        if r % H != H - 1:
            s_dn[r, r + 1] = 1.0
    return jnp.asarray(np.stack([s_up, s_dn]))


def _channel_pool_mat(B, H, W, Cout):
    """P so that (colsum @ P)[w*Cout+c] = per-channel mean of channel c."""
    p = np.kron(np.ones((W, W), np.float32), np.eye(Cout, dtype=np.float32))
    return jnp.asarray(p / float(B * H * W))


def _dx_select(W):
    """sel[dx, w_in, w_out] = 1 iff w_in == w_out + dx - 1 (zero-padded 3-tap in W)."""
    sel = np.zeros((3, W, W), np.float32)
    for dx in range(3):
        for wo in range(W):
            wi = wo + dx - 1
            if 0 <= wi < W:
                sel[dx, wi, wo] = 1.0
    return jnp.asarray(sel)


# ----------------------------------------------------------------------------
# Weight -> banded matmul matrices (tiny one-time XLA work in the wrapper)
# ----------------------------------------------------------------------------
def _conv3_band_mats(w, W):
    """w: (3,3,Cin,Cout) -> [M_dy0, M_dy1, M_dy2], each (W*Cin, W*Cout)."""
    _, _, cin, cout = w.shape
    sel = _dx_select(W)
    return [jnp.einsum('dab,dio->aibo', sel, w[dy]).reshape(W * cin, W * cout)
            for dy in range(3)]


def _shortcut_band_mat(ws, W):
    """ws: (1,1,Cin,Cout) -> block-diagonal (W*Cin, W*Cout) for the 1x1 conv."""
    cin, cout = ws.shape[2], ws.shape[3]
    return jnp.kron(jnp.eye(W, dtype=jnp.float32), ws.reshape(cin, cout))


# ----------------------------------------------------------------------------
# Fused Pallas kernel: both ResNet blocks + time embedding, one launch
# ----------------------------------------------------------------------------
def _make_fused_kernel(B, H, W, Cout):
    def kernel(x_ref, emb_ref, s_ref, m64_ref, m128_ref, p_ref, g_ref, bt_ref,
               out_ref):
        X = x_ref[...]                      # (B*H, W*Cin)   lane-dense activations
        P = p_ref[...]                      # (W*Cout, W*Cout) channel-pool matrix
        S_up = s_ref[0]                     # (B*H, B*H) dy=-1 row shift (+ boundary zeros)
        S_dn = s_ref[1]                     # (B*H, B*H) dy=+1 row shift

        def mm(a, b):
            return jnp.dot(a, b, preferred_element_type=jnp.float32)

        def conv3(x, m0, m1, m2):
            # 3x3 conv == 3 banded matmuls over the lane-dense (W*C) axis.
            return mm(mm(S_up, x), m0) + mm(x, m1) + mm(mm(S_dn, x), m2)

        def bn(acc, idx):
            # Training-mode BatchNorm (conv bias omitted: it cancels exactly).
            s1 = jnp.sum(acc, axis=0, keepdims=True)            # (1, W*Cout)
            s2 = jnp.sum(acc * acc, axis=0, keepdims=True)
            mean = mm(s1, P)                                    # per-channel, lane-broadcast
            var = jnp.maximum(mm(s2, P) - mean * mean, 0.0)     # clamp cancellation
            scale = g_ref[idx] * jax.lax.rsqrt(var + BN_EPS)    # (1, W*Cout)
            shift = bt_ref[idx] - mean * scale
            return acc * scale + shift                          # single FMA pass

        # ---------------- block 1 (Cin -> Cout) ----------------
        sc = bn(mm(X, m64_ref[3]), 2)                                        # shortcut 1x1 + BN
        h = jnp.maximum(bn(conv3(X, m64_ref[0], m64_ref[1], m64_ref[2]), 0), 0.0)
        h = bn(conv3(h, m128_ref[0], m128_ref[1], m128_ref[2]), 1)
        y = jnp.maximum(h + sc, 0.0)

        # ---------------- block 2 (Cout -> Cout) ----------------
        sc = bn(mm(y, m128_ref[9]), 5)
        h = jnp.maximum(bn(conv3(y, m128_ref[3], m128_ref[4], m128_ref[5]), 3), 0.0)
        h = bn(conv3(h, m128_ref[6], m128_ref[7], m128_ref[8]), 4)
        y = jnp.maximum(h + sc, 0.0)

        # ---------------- + time embedding (pre-broadcast to rows) ----------------
        out_ref[...] = y + emb_ref[...]
    return kernel


# ----------------------------------------------------------------------------
# Wrapper: layout glue + weight transform + single pallas_call
# ----------------------------------------------------------------------------
def resnet_with_time_embed(x_nchw, t, params, pe):
    B, Cin, H, W = x_nchw.shape
    p1, p2 = params['block1'], params['block2']
    Cout = p1['w1'].shape[-1]

    # NCHW -> lane-dense (B*H, W*Cin); the only activation-layout glue outside the kernel.
    x = jnp.transpose(x_nchw, (0, 2, 3, 1)).reshape(B * H, W * Cin)

    # time embedding pe[t] : (B, Cout) -> pre-broadcast to (B*H, W*Cout)
    emb = jnp.repeat(jnp.tile(pe[t], (1, W)), H, axis=0)

    s_mats = _row_shift_mats(B, H)                  # (2, B*H, B*H)
    p_mat = _channel_pool_mat(B, H, W, Cout)        # (W*Cout, W*Cout)

    # conv weights -> banded matrices (conv biases intentionally unused: BN cancels them)
    m64 = jnp.stack(_conv3_band_mats(p1['w1'], W) + [_shortcut_band_mat(p1['ws'], W)])
    m128 = jnp.stack(_conv3_band_mats(p1['w2'], W)
                     + _conv3_band_mats(p2['w1'], W)
                     + _conv3_band_mats(p2['w2'], W)
                     + [_shortcut_band_mat(p2['ws'], W)])

    def tile_c(v):  # per-channel BN param -> lane-broadcast (1, W*Cout)
        return jnp.tile(v.astype(jnp.float32), W).reshape(1, W * Cout)

    gam = jnp.stack([tile_c(v) for v in (p1['g1'], p1['g2'], p1['gs'],
                                         p2['g1'], p2['g2'], p2['gs'])])
    bet = jnp.stack([tile_c(v) for v in (p1['be1'], p1['be2'], p1['bes'],
                                         p2['be1'], p2['be2'], p2['bes'])])

    vmem = pl.BlockSpec(memory_space=pltpu.MemorySpace.VMEM)   # whole (tiny) arrays in VMEM
    out = pl.pallas_call(
        _make_fused_kernel(B, H, W, Cout),
        out_shape=jax.ShapeDtypeStruct((B * H, W * Cout), jnp.float32),
        in_specs=[vmem] * 8,
        out_specs=vmem,
    )(x, emb, s_mats, m64, m128, p_mat, gam, bet)

    # lane-dense (B*H, W*Cout) -> NCHW
    return jnp.transpose(out.reshape(B, H, W, Cout), (0, 3, 1, 2))


# ----------------------------------------------------------------------------
# Positional encoding table + deterministic parameter init
# ----------------------------------------------------------------------------
def positional_encoding_table(emb_dim, max_seq_len):
    pos = np.arange(max_seq_len, dtype=np.float32)[:, None]
    div = np.exp(-np.log(10000.0) * np.arange(0, emb_dim, 2, dtype=np.float32)
                 / emb_dim)
    pe = np.zeros((max_seq_len, emb_dim), np.float32)
    pe[:, 0::2] = np.sin(pos * div)
    pe[:, 1::2] = np.cos(pos * div)
    return jnp.asarray(pe)


def _conv_params(key, kh, kw, cin, cout):
    kw_, kb_ = jax.random.split(key)
    bound = 1.0 / np.sqrt(cin * kh * kw)
    w = jax.random.uniform(kw_, (kh, kw, cin, cout), jnp.float32, -bound, bound)
    b = jax.random.uniform(kb_, (cout,), jnp.float32, -bound, bound)
    return w, b


def init_block(key, cin, cout):
    k1, k2, k3 = jax.random.split(key, 3)
    w1, b1 = _conv_params(k1, 3, 3, cin, cout)
    w2, b2 = _conv_params(k2, 3, 3, cout, cout)
    ws, bs = _conv_params(k3, 1, 1, cin, cout)
    ones, zeros = jnp.ones((cout,), jnp.float32), jnp.zeros((cout,), jnp.float32)
    return dict(w1=w1, b1=b1, g1=ones, be1=zeros,
                w2=w2, b2=b2, g2=ones, be2=zeros,
                ws=ws, bs=bs, gs=ones, bes=zeros)


# ----------------------------------------------------------------------------
# Pure-JAX reference (conv biases included here -- they cancel under batch-stat BN)
# ----------------------------------------------------------------------------
def _ref_block(x, p, emb=None):
    def cbn(xx, w, b, g, be):
        out = jax.lax.conv_general_dilated(
            xx, w, (1, 1), 'SAME',
            dimension_numbers=('NHWC', 'HWIO', 'NHWC')) + b
        m = out.mean(axis=(0, 1, 2), keepdims=True)
        v = ((out - m) ** 2).mean(axis=(0, 1, 2), keepdims=True)
        return (out - m) / jnp.sqrt(v + BN_EPS) * g + be

    s = cbn(x, p['ws'], p['bs'], p['gs'], p['bes'])
    h = jax.nn.relu(cbn(x, p['w1'], p['b1'], p['g1'], p['be1']))
    y = jax.nn.relu(cbn(h, p['w2'], p['b2'], p['g2'], p['be2']) + s)
    if emb is not None:
        y = y + emb[:, None, None, :]
    return y


def _ref_forward(x_nchw, t, params, pe):
    x = jnp.transpose(x_nchw, (0, 2, 3, 1))
    h = _ref_block(x, params['block1'])
    h = _ref_block(h, params['block2'], emb=pe[t])
    return jnp.transpose(h, (0, 3, 1, 2))


# ----------------------------------------------------------------------------
if __name__ == "__main__":
    B, C_IN, C_OUT, H, W = 2, 4, 8, 16, 16
    MAX_SEQ_LEN = 100

    root = jax.random.PRNGKey(0)
    kx, kt, kb1, kb2 = jax.random.split(root, 4)

    x = jax.random.normal(kx, (B, C_IN, H, W), jnp.float32)     # NCHW, like PyTorch
    t = jax.random.randint(kt, (B,), 0, MAX_SEQ_LEN)            # LongTensor indices

    params = dict(block1=init_block(kb1, C_IN, C_OUT),
                  block2=init_block(kb2, C_OUT, C_OUT))
    pe = positional_encoding_table(C_OUT, MAX_SEQ_LEN)

    fwd = jax.jit(resnet_with_time_embed)
    out = jax.block_until_ready(fwd(x, t, params, pe))
    assert out.shape == (B, C_OUT, H, W) and out.dtype == jnp.float32

    ref = jax.block_until_ready(_ref_forward(x, t, params, pe))
    np.testing.assert_allclose(np.asarray(out), np.asarray(ref),
                               rtol=2e-2, atol=2e-2)

    print("KERNEL_OK")
</pallas_src>

<mosaic_0001>
module attributes {stable_mosaic.version = 11 : i64} {
  func.func @kernel(%arg0: memref<32x64xf32, #tpu.memory_space<vmem>>, %arg1: memref<32x128xf32, #tpu.memory_space<vmem>>, %arg2: memref<2x32x32xf32, #tpu.memory_space<vmem>>, %arg3: memref<4x64x128xf32, #tpu.memory_space<vmem>>, %arg4: memref<10x128x128xf32, #tpu.memory_space<vmem>>, %arg5: memref<128x128xf32, #tpu.memory_space<vmem>>, %arg6: memref<6x1x128xf32, #tpu.memory_space<vmem>>, %arg7: memref<6x1x128xf32, #tpu.memory_space<vmem>>, %arg8: memref<32x128xf32, #tpu.memory_space<vmem>>) attributes {dimension_semantics = [], scalar_prefetch = 0 : i64, scratch_operands = 0 : i64, tpu.core_type = #tpu.core_type<tc>} {
    %c0 = arith.constant 0 : index
    %c0_0 = arith.constant 0 : index
    %0 = vector.load %arg0[%c0, %c0_0] : memref<32x64xf32, #tpu.memory_space<vmem>>, vector<32x64xf32>
    %c0_1 = arith.constant 0 : index
    %c0_2 = arith.constant 0 : index
    %1 = vector.load %arg5[%c0_1, %c0_2] : memref<128x128xf32, #tpu.memory_space<vmem>>, vector<128x128xf32>
    %c0_3 = arith.constant 0 : index
    %c0_4 = arith.constant 0 : index
    %c0_5 = arith.constant 0 : index
    %2 = vector.load %arg2[%c0_3, %c0_4, %c0_5] : memref<2x32x32xf32, #tpu.memory_space<vmem>>, vector<1x32x32xf32>
    %3 = vector.shape_cast %2 : vector<1x32x32xf32> to vector<32x32xf32>
    %c1 = arith.constant 1 : index
    %c0_6 = arith.constant 0 : index
    %c0_7 = arith.constant 0 : index
    %4 = vector.load %arg2[%c1, %c0_6, %c0_7] : memref<2x32x32xf32, #tpu.memory_space<vmem>>, vector<1x32x32xf32>
    %5 = vector.shape_cast %4 : vector<1x32x32xf32> to vector<32x32xf32>
    %c3 = arith.constant 3 : index
    %c0_8 = arith.constant 0 : index
    %c0_9 = arith.constant 0 : index
    %6 = vector.load %arg3[%c3, %c0_8, %c0_9] : memref<4x64x128xf32, #tpu.memory_space<vmem>>, vector<1x64x128xf32>
    %7 = vector.shape_cast %6 : vector<1x64x128xf32> to vector<64x128xf32>
    %cst = arith.constant dense<0.000000e+00> : vector<32x128xf32>
    %8 = tpu.matmul %0, %7, %cst {dimension_numbers = #tpu.dot_dimension_numbers<[1], [0], [0], [1], [0, 0, 1, 1], [], []>} : vector<32x64xf32>, vector<64x128xf32>, vector<32x128xf32> -> vector<32x128xf32>
    %cst_10 = arith.constant dense<0.000000e+00> : vector<128xf32>
    %9 = vector.multi_reduction <add>, %8, %cst_10 [0] : vector<32x128xf32> to vector<128xf32>
    %10 = vector.shape_cast %9 : vector<128xf32> to vector<1x128xf32>
    %11 = arith.mulf %8, %8 : vector<32x128xf32>
    %cst_11 = arith.constant dense<0.000000e+00> : vector<128xf32>
    %12 = vector.multi_reduction <add>, %11, %cst_11 [0] : vector<32x128xf32> to vector<128xf32>
    %13 = vector.shape_cast %12 : vector<128xf32> to vector<1x128xf32>
    %cst_12 = arith.constant dense<0.000000e+00> : vector<1x128xf32>
    %14 = tpu.matmul %10, %1, %cst_12 {dimension_numbers = #tpu.dot_dimension_numbers<[1], [0], [0], [1], [0, 0, 1, 1], [], []>} : vector<1x128xf32>, vector<128x128xf32>, vector<1x128xf32> -> vector<1x128xf32>
    %cst_13 = arith.constant dense<0.000000e+00> : vector<1x128xf32>
    %15 = tpu.matmul %13, %1, %cst_13 {dimension_numbers = #tpu.dot_dimension_numbers<[1], [0], [0], [1], [0, 0, 1, 1], [], []>} : vector<1x128xf32>, vector<128x128xf32>, vector<1x128xf32> -> vector<1x128xf32>
    %16 = arith.mulf %14, %14 : vector<1x128xf32>
    %17 = arith.subf %15, %16 : vector<1x128xf32>
    %cst_14 = arith.constant 0.000000e+00 : f32
    %18 = vector.broadcast %cst_14 : f32 to vector<1x128xf32>
    %19 = arith.maximumf %17, %18 : vector<1x128xf32>
    %c2 = arith.constant 2 : index
    %c0_15 = arith.constant 0 : index
    %c0_16 = arith.constant 0 : index
    %20 = vector.load %arg6[%c2, %c0_15, %c0_16] : memref<6x1x128xf32, #tpu.memory_space<vmem>>, vector<1x1x128xf32>
    %21 = vector.shape_cast %20 : vector<1x1x128xf32> to vector<1x128xf32>
    %cst_17 = arith.constant 9.99999974E-6 : f32
    %22 = vector.broadcast %cst_17 : f32 to vector<1x128xf32>
    %23 = arith.addf %19, %22 : vector<1x128xf32>
    %24 = math.rsqrt %23 : vector<1x128xf32>
    %25 = arith.mulf %21, %24 : vector<1x128xf32>
    %c2_18 = arith.constant 2 : index
    %c0_19 = arith.constant 0 : index
    %c0_20 = arith.constant 0 : index
    %26 = vector.load %arg7[%c2_18, %c0_19, %c0_20] : memref<6x1x128xf32, #tpu.memory_space<vmem>>, vector<1x1x128xf32>
    %27 = vector.shape_cast %26 : vector<1x1x128xf32> to vector<1x128xf32>
    %28 = arith.mulf %14, %25 : vector<1x128xf32>
    %29 = arith.subf %27, %28 : vector<1x128xf32>
    %30 = vector.broadcast %25 : vector<1x128xf32> to vector<32x128xf32>
    %31 = arith.mulf %8, %30 : vector<32x128xf32>
    %32 = vector.broadcast %29 : vector<1x128xf32> to vector<32x128xf32>
    %33 = arith.addf %31, %32 : vector<32x128xf32>
    %c0_21 = arith.constant 0 : index
    %c0_22 = arith.constant 0 : index
    %c0_23 = arith.constant 0 : index
    %34 = vector.load %arg3[%c0_21, %c0_22, %c0_23] : memref<4x64x128xf32, #tpu.memory_space<vmem>>, vector<1x64x128xf32>
    %35 = vector.shape_cast %34 : vector<1x64x128xf32> to vector<64x128xf32>
    %c1_24 = arith.constant 1 : index
    %c0_25 = arith.constant 0 : index
    %c0_26 = arith.constant 0 : index
    %36 = vector.load %arg3[%c1_24, %c0_25, %c0_26] : memref<4x64x128xf32, #tpu.memory_space<vmem>>, vector<1x64x128xf32>
    %37 = vector.shape_cast %36 : vector<1x64x128xf32> to vector<64x128xf32>
    %c2_27 = arith.constant 2 : index
    %c0_28 = arith.constant 0 : index
    %c0_29 = arith.constant 0 : index
    %38 = vector.load %arg3[%c2_27, %c0_28, %c0_29] : memref<4x64x128xf32, #tpu.memory_space<vmem>>, vector<1x64x128xf32>
    %39 = vector.shape_cast %38 : vector<1x64x128xf32> to vector<64x128xf32>
    %cst_30 = arith.constant dense<0.000000e+00> : vector<32x64xf32>
    %40 = tpu.matmul %3, %0, %cst_30 {dimension_numbers = #tpu.dot_dimension_numbers<[1], [0], [0], [1], [0, 0, 1, 1], [], []>} : vector<32x32xf32>, vector<32x64xf32>, vector<32x64xf32> -> vector<32x64xf32>
    %cst_31 = arith.constant dense<0.000000e+00> : vector<32x128xf32>
    %41 = tpu.matmul %40, %35, %cst_31 {dimension_numbers = #tpu.dot_dimension_numbers<[1], [0], [0], [1], [0, 0, 1, 1], [], []>} : vector<32x64xf32>, vector<64x128xf32>, vector<32x128xf32> -> vector<32x128xf32>
    %cst_32 = arith.constant dense<0.000000e+00> : vector<32x128xf32>
    %42 = tpu.matmul %0, %37, %cst_32 {dimension_numbers = #tpu.dot_dimension_numbers<[1], [0], [0], [1], [0, 0, 1, 1], [], []>} : vector<32x64xf32>, vector<64x128xf32>, vector<32x128xf32> -> vector<32x128xf32>
    %43 = arith.addf %41, %42 : vector<32x128xf32>
    %cst_33 = arith.constant dense<0.000000e+00> : vector<32x64xf32>
    %44 = tpu.matmul %5, %0, %cst_33 {dimension_numbers = #tpu.dot_dimension_numbers<[1], [0], [0], [1], [0, 0, 1, 1], [], []>} : vector<32x32xf32>, vector<32x64xf32>, vector<32x64xf32> -> vector<32x64xf32>
    %cst_34 = arith.constant dense<0.000000e+00> : vector<32x128xf32>
    %45 = tpu.matmul %44, %39, %cst_34 {dimension_numbers = #tpu.dot_dimension_numbers<[1], [0], [0], [1], [0, 0, 1, 1], [], []>} : vector<32x64xf32>, vector<64x128xf32>, vector<32x128xf32> -> vector<32x128xf32>
    %46 = arith.addf %43, %45 : vector<32x128xf32>
    %cst_35 = arith.constant dense<0.000000e+00> : vector<128xf32>
    %47 = vector.multi_reduction <add>, %46, %cst_35 [0] : vector<32x128xf32> to vector<128xf32>
    %48 = vector.shape_cast %47 : vector<128xf32> to vector<1x128xf32>
    %49 = arith.mulf %46, %46 : vector<32x128xf32>
    %cst_36 = arith.constant dense<0.000000e+00> : vector<128xf32>
    %50 = vector.multi_reduction <add>, %49, %cst_36 [0] : vector<32x128xf32> to vector<128xf32>
    %51 = vector.shape_cast %50 : vector<128xf32> to vector<1x128xf32>
    %cst_37 = arith.constant dense<0.000000e+00> : vector<1x128xf32>
    %52 = tpu.matmul %48, %1, %cst_37 {dimension_numbers = #tpu.dot_dimension_numbers<[1], [0], [0], [1], [0, 0, 1, 1], [], []>} : vector<1x128xf32>, vector<128x128xf32>, vector<1x128xf32> -> vector<1x128xf32>
    %cst_38 = arith.constant dense<0.000000e+00> : vector<1x128xf32>
    %53 = tpu.matmul %51, %1, %cst_38 {dimension_numbers = #tpu.dot_dimension_numbers<[1], [0], [0], [1], [0, 0, 1, 1], [], []>} : vector<1x128xf32>, vector<128x128xf32>, vector<1x128xf32> -> vector<1x128xf32>
    %54 = arith.mulf %52, %52 : vector<1x128xf32>
    %55 = arith.subf %53, %54 : vector<1x128xf32>
    %cst_39 = arith.constant 0.000000e+00 : f32
    %56 = vector.broadcast %cst_39 : f32 to vector<1x128xf32>
    %57 = arith.maximumf %55, %56 : vector<1x128xf32>
    %c0_40 = arith.constant 0 : index
    %c0_41 = arith.constant 0 : index
    %c0_42 = arith.constant 0 : index
    %58 = vector.load %arg6[%c0_40, %c0_41, %c0_42] : memref<6x1x128xf32, #tpu.memory_space<vmem>>, vector<1x1x128xf32>
    %59 = vector.shape_cast %58 : vector<1x1x128xf32> to vector<1x128xf32>
    %cst_43 = arith.constant 9.99999974E-6 : f32
    %60 = vector.broadcast %cst_43 : f32 to vector<1x128xf32>
    %61 = arith.addf %57, %60 : vector<1x128xf32>
    %62 = math.rsqrt %61 : vector<1x128xf32>
    %63 = arith.mulf %59, %62 : vector<1x128xf32>
    %c0_44 = arith.constant 0 : index
    %c0_45 = arith.constant 0 : index
    %c0_46 = arith.constant 0 : index
    %64 = vector.load %arg7[%c0_44, %c0_45, %c0_46] : memref<6x1x128xf32, #tpu.memory_space<vmem>>, vector<1x1x128xf32>
    %65 = vector.shape_cast %64 : vector<1x1x128xf32> to vector<1x128xf32>
    %66 = arith.mulf %52, %63 : vector<1x128xf32>
    %67 = arith.subf %65, %66 : vector<1x128xf32>
    %68 = vector.broadcast %63 : vector<1x128xf32> to vector<32x128xf32>
    %69 = arith.mulf %46, %68 : vector<32x128xf32>
    %70 = vector.broadcast %67 : vector<1x128xf32> to vector<32x128xf32>
    %71 = arith.addf %69, %70 : vector<32x128xf32>
    %cst_47 = arith.constant 0.000000e+00 : f32
    %72 = vector.broadcast %cst_47 : f32 to vector<32x128xf32>
    %73 = arith.maximumf %71, %72 : vector<32x128xf32>
    %c0_48 = arith.constant 0 : index
    %c0_49 = arith.constant 0 : index
    %c0_50 = arith.constant 0 : index
    %74 = vector.load %arg4[%c0_48, %c0_49, %c0_50] : memref<10x128x128xf32, #tpu.memory_space<vmem>>, vector<1x128x128xf32>
    %75 = vector.shape_cast %74 : vector<1x128x128xf32> to vector<128x128xf32>
    %c1_51 = arith.constant 1 : index
    %c0_52 = arith.constant 0 : index
    %c0_53 = arith.constant 0 : index
    %76 = vector.load %arg4[%c1_51, %c0_52, %c0_53] : memref<10x128x128xf32, #tpu.memory_space<vmem>>, vector<1x128x128xf32>
    %77 = vector.shape_cast %76 : vector<1x128x128xf32> to vector<128x128xf32>
    %c2_54 = arith.constant 2 : index
    %c0_55 = arith.constant 0 : index
    %c0_56 = arith.constant 0 : index
    %78 = vector.load %arg4[%c2_54, %c0_55, %c0_56] : memref<10x128x128xf32, #tpu.memory_space<vmem>>, vector<1x128x128xf32>
    %79 = vector.shape_cast %78 : vector<1x128x128xf32> to vector<128x128xf32>
    %cst_57 = arith.constant dense<0.000000e+00> : vector<32x128xf32>
    %80 = tpu.matmul %3, %73, %cst_57 {dimension_numbers = #tpu.dot_dimension_numbers<[1], [0], [0], [1], [0, 0, 1, 1], [], []>} : vector<32x32xf32>, vector<32x128xf32>, vector<32x128xf32> -> vector<32x128xf32>
    %cst_58 = arith.constant dense<0.000000e+00> : vector<32x128xf32>
    %81 = tpu.matmul %80, %75, %cst_58 {dimension_numbers = #tpu.dot_dimension_numbers<[1], [0], [0], [1], [0, 0, 1, 1], [], []>} : vector<32x128xf32>, vector<128x128xf32>, vector<32x128xf32> -> vector<32x128xf32>
    %cst_59 = arith.constant dense<0.000000e+00> : vector<32x128xf32>
    %82 = tpu.matmul %73, %77, %cst_59 {dimension_numbers = #tpu.dot_dimension_numbers<[1], [0], [0], [1], [0, 0, 1, 1], [], []>} : vector<32x128xf32>, vector<128x128xf32>, vector<32x128xf32> -> vector<32x128xf32>
    %83 = arith.addf %81, %82 : vector<32x128xf32>
    %cst_60 = arith.constant dense<0.000000e+00> : vector<32x128xf32>
    %84 = tpu.matmul %5, %73, %cst_60 {dimension_numbers = #tpu.dot_dimension_numbers<[1], [0], [0], [1], [0, 0, 1, 1], [], []>} : vector<32x32xf32>, vector<32x128xf32>, vector<32x128xf32> -> vector<32x128xf32>
    %cst_61 = arith.constant dense<0.000000e+00> : vector<32x128xf32>
    %85 = tpu.matmul %84, %79, %cst_61 {dimension_numbers = #tpu.dot_dimension_numbers<[1], [0], [0], [1], [0, 0, 1, 1], [], []>} : vector<32x128xf32>, vector<128x128xf32>, vector<32x128xf32> -> vector<32x128xf32>
    %86 = arith.addf %83, %85 : vector<32x128xf32>
    %cst_62 = arith.constant dense<0.000000e+00> : vector<128xf32>
    %87 = vector.multi_reduction <add>, %86, %cst_62 [0] : vector<32x128xf32> to vector<128xf32>
    %88 = vector.shape_cast %87 : vector<128xf32> to vector<1x128xf32>
    %89 = arith.mulf %86, %86 : vector<32x128xf32>
    %cst_63 = arith.constant dense<0.000000e+00> : vector<128xf32>
    %90 = vector.multi_reduction <add>, %89, %cst_63 [0] : vector<32x128xf32> to vector<128xf32>
    %91 = vector.shape_cast %90 : vector<128xf32> to vector<1x128xf32>
    %cst_64 = arith.constant dense<0.000000e+00> : vector<1x128xf32>
    %92 = tpu.matmul %88, %1, %cst_64 {dimension_numbers = #tpu.dot_dimension_numbers<[1], [0], [0], [1], [0, 0, 1, 1], [], []>} : vector<1x128xf32>, vector<128x128xf32>, vector<1x128xf32> -> vector<1x128xf32>
    %cst_65 = arith.constant dense<0.000000e+00> : vector<1x128xf32>
    %93 = tpu.matmul %91, %1, %cst_65 {dimension_numbers = #tpu.dot_dimension_numbers<[1], [0], [0], [1], [0, 0, 1, 1], [], []>} : vector<1x128xf32>, vector<128x128xf32>, vector<1x128xf32> -> vector<1x128xf32>
    %94 = arith.mulf %92, %92 : vector<1x128xf32>
    %95 = arith.subf %93, %94 : vector<1x128xf32>
    %cst_66 = arith.constant 0.000000e+00 : f32
    %96 = vector.broadcast %cst_66 : f32 to vector<1x128xf32>
    %97 = arith.maximumf %95, %96 : vector<1x128xf32>
    %c1_67 = arith.constant 1 : index
    %c0_68 = arith.constant 0 : index
    %c0_69 = arith.constant 0 : index
    %98 = vector.load %arg6[%c1_67, %c0_68, %c0_69] : memref<6x1x128xf32, #tpu.memory_space<vmem>>, vector<1x1x128xf32>
    %99 = vector.shape_cast %98 : vector<1x1x128xf32> to vector<1x128xf32>
    %cst_70 = arith.constant 9.99999974E-6 : f32
    %100 = vector.broadcast %cst_70 : f32 to vector<1x128xf32>
    %101 = arith.addf %97, %100 : vector<1x128xf32>
    %102 = math.rsqrt %101 : vector<1x128xf32>
    %103 = arith.mulf %99, %102 : vector<1x128xf32>
    %c1_71 = arith.constant 1 : index
    %c0_72 = arith.constant 0 : index
    %c0_73 = arith.constant 0 : index
    %104 = vector.load %arg7[%c1_71, %c0_72, %c0_73] : memref<6x1x128xf32, #tpu.memory_space<vmem>>, vector<1x1x128xf32>
    %105 = vector.shape_cast %104 : vector<1x1x128xf32> to vector<1x128xf32>
    %106 = arith.mulf %92, %103 : vector<1x128xf32>
    %107 = arith.subf %105, %106 : vector<1x128xf32>
    %108 = vector.broadcast %103 : vector<1x128xf32> to vector<32x128xf32>
    %109 = arith.mulf %86, %108 : vector<32x128xf32>
    %110 = vector.broadcast %107 : vector<1x128xf32> to vector<32x128xf32>
    %111 = arith.addf %109, %110 : vector<32x128xf32>
    %112 = arith.addf %111, %33 : vector<32x128xf32>
    %cst_74 = arith.constant 0.000000e+00 : f32
    %113 = vector.broadcast %cst_74 : f32 to vector<32x128xf32>
    %114 = arith.maximumf %112, %113 : vector<32x128xf32>
    %c9 = arith.constant 9 : index
    %c0_75 = arith.constant 0 : index
    %c0_76 = arith.constant 0 : index
    %115 = vector.load %arg4[%c9, %c0_75, %c0_76] : memref<10x128x128xf32, #tpu.memory_space<vmem>>, vector<1x128x128xf32>
    %116 = vector.shape_cast %115 : vector<1x128x128xf32> to vector<128x128xf32>
    %cst_77 = arith.constant dense<0.000000e+00> : vector<32x128xf32>
    %117 = tpu.matmul %114, %116, %cst_77 {dimension_numbers = #tpu.dot_dimension_numbers<[1], [0], [0], [1], [0, 0, 1, 1], [], []>} : vector<32x128xf32>, vector<128x128xf32>, vector<32x128xf32> -> vector<32x128xf32>
    %cst_78 = arith.constant dense<0.000000e+00> : vector<128xf32>
    %118 = vector.multi_reduction <add>, %117, %cst_78 [0] : vector<32x128xf32> to vector<128xf32>
    %119 = vector.shape_cast %118 : vector<128xf32> to vector<1x128xf32>
    %120 = arith.mulf %117, %117 : vector<32x128xf32>
    %cst_79 = arith.constant dense<0.000000e+00> : vector<128xf32>
    %121 = vector.multi_reduction <add>, %120, %cst_79 [0] : vector<32x128xf32> to vector<128xf32>
    %122 = vector.shape_cast %121 : vector<128xf32> to vector<1x128xf32>
    %cst_80 = arith.constant dense<0.000000e+00> : vector<1x128xf32>
    %123 = tpu.matmul %119, %1, %cst_80 {dimension_numbers = #tpu.dot_dimension_numbers<[1], [0], [0], [1], [0, 0, 1, 1], [], []>} : vector<1x128xf32>, vector<128x128xf32>, vector<1x128xf32> -> vector<1x128xf32>
    %cst_81 = arith.constant dense<0.000000e+00> : vector<1x128xf32>
    %124 = tpu.matmul %122, %1, %cst_81 {dimension_numbers = #tpu.dot_dimension_numbers<[1], [0], [0], [1], [0, 0, 1, 1], [], []>} : vector<1x128xf32>, vector<128x128xf32>, vector<1x128xf32> -> vector<1x128xf32>
    %125 = arith.mulf %123, %123 : vector<1x128xf32>
    %126 = arith.subf %124, %125 : vector<1x128xf32>
    %cst_82 = arith.constant 0.000000e+00 : f32
    %127 = vector.broadcast %cst_82 : f32 to vector<1x128xf32>
    %128 = arith.maximumf %126, %127 : vector<1x128xf32>
    %c5 = arith.constant 5 : index
    %c0_83 = arith.constant 0 : index
    %c0_84 = arith.constant 0 : index
    %129 = vector.load %arg6[%c5, %c0_83, %c0_84] : memref<6x1x128xf32, #tpu.memory_space<vmem>>, vector<1x1x128xf32>
    %130 = vector.shape_cast %129 : vector<1x1x128xf32> to vector<1x128xf32>
    %cst_85 = arith.constant 9.99999974E-6 : f32
    %131 = vector.broadcast %cst_85 : f32 to vector<1x128xf32>
    %132 = arith.addf %128, %131 : vector<1x128xf32>
    %133 = math.rsqrt %132 : vector<1x128xf32>
    %134 = arith.mulf %130, %133 : vector<1x128xf32>
    %c5_86 = arith.constant 5 : index
    %c0_87 = arith.constant 0 : index
    %c0_88 = arith.constant 0 : index
    %135 = vector.load %arg7[%c5_86, %c0_87, %c0_88] : memref<6x1x128xf32, #tpu.memory_space<vmem>>, vector<1x1x128xf32>
    %136 = vector.shape_cast %135 : vector<1x1x128xf32> to vector<1x128xf32>
    %137 = arith.mulf %123, %134 : vector<1x128xf32>
    %138 = arith.subf %136, %137 : vector<1x128xf32>
    %139 = vector.broadcast %134 : vector<1x128xf32> to vector<32x128xf32>
    %140 = arith.mulf %117, %139 : vector<32x128xf32>
    %141 = vector.broadcast %138 : vector<1x128xf32> to vector<32x128xf32>
    %142 = arith.addf %140, %141 : vector<32x128xf32>
    %c3_89 = arith.constant 3 : index
    %c0_90 = arith.constant 0 : index
    %c0_91 = arith.constant 0 : index
    %143 = vector.load %arg4[%c3_89, %c0_90, %c0_91] : memref<10x128x128xf32, #tpu.memory_space<vmem>>, vector<1x128x128xf32>
    %144 = vector.shape_cast %143 : vector<1x128x128xf32> to vector<128x128xf32>
    %c4 = arith.constant 4 : index
    %c0_92 = arith.constant 0 : index
    %c0_93 = arith.constant 0 : index
    %145 = vector.load %arg4[%c4, %c0_92, %c0_93] : memref<10x128x128xf32, #tpu.memory_space<vmem>>, vector<1x128x128xf32>
    %146 = vector.shape_cast %145 : vector<1x128x128xf32> to vector<128x128xf32>
    %c5_94 = arith.constant 5 : index
    %c0_95 = arith.constant 0 : index
    %c0_96 = arith.constant 0 : index
    %147 = vector.load %arg4[%c5_94, %c0_95, %c0_96] : memref<10x128x128xf32, #tpu.memory_space<vmem>>, vector<1x128x128xf32>
    %148 = vector.shape_cast %147 : vector<1x128x128xf32> to vector<128x128xf32>
    %cst_97 = arith.constant dense<0.000000e+00> : vector<32x128xf32>
    %149 = tpu.matmul %3, %114, %cst_97 {dimension_numbers = #tpu.dot_dimension_numbers<[1], [0], [0], [1], [0, 0, 1, 1], [], []>} : vector<32x32xf32>, vector<32x128xf32>, vector<32x128xf32> -> vector<32x128xf32>
    %cst_98 = arith.constant dense<0.000000e+00> : vector<32x128xf32>
    %150 = tpu.matmul %149, %144, %cst_98 {dimension_numbers = #tpu.dot_dimension_numbers<[1], [0], [0], [1], [0, 0, 1, 1], [], []>} : vector<32x128xf32>, vector<128x128xf32>, vector<32x128xf32> -> vector<32x128xf32>
    %cst_99 = arith.constant dense<0.000000e+00> : vector<32x128xf32>
    %151 = tpu.matmul %114, %146, %cst_99 {dimension_numbers = #tpu.dot_dimension_numbers<[1], [0], [0], [1], [0, 0, 1, 1], [], []>} : vector<32x128xf32>, vector<128x128xf32>, vector<32x128xf32> -> vector<32x128xf32>
    %152 = arith.addf %150, %151 : vector<32x128xf32>
    %cst_100 = arith.constant dense<0.000000e+00> : vector<32x128xf32>
    %153 = tpu.matmul %5, %114, %cst_100 {dimension_numbers = #tpu.dot_dimension_numbers<[1], [0], [0], [1], [0, 0, 1, 1], [], []>} : vector<32x32xf32>, vector<32x128xf32>, vector<32x128xf32> -> vector<32x128xf32>
    %cst_101 = arith.constant dense<0.000000e+00> : vector<32x128xf32>
    %154 = tpu.matmul %153, %148, %cst_101 {dimension_numbers = #tpu.dot_dimension_numbers<[1], [0], [0], [1], [0, 0, 1, 1], [], []>} : vector<32x128xf32>, vector<128x128xf32>, vector<32x128xf32> -> vector<32x128xf32>
    %155 = arith.addf %152, %154 : vector<32x128xf32>
    %cst_102 = arith.constant dense<0.000000e+00> : vector<128xf32>
    %156 = vector.multi_reduction <add>, %155, %cst_102 [0] : vector<32x128xf32> to vector<128xf32>
    %157 = vector.shape_cast %156 : vector<128xf32> to vector<1x128xf32>
    %158 = arith.mulf %155, %155 : vector<32x128xf32>
    %cst_103 = arith.constant dense<0.000000e+00> : vector<128xf32>
    %159 = vector.multi_reduction <add>, %158, %cst_103 [0] : vector<32x128xf32> to vector<128xf32>
    %160 = vector.shape_cast %159 : vector<128xf32> to vector<1x128xf32>
    %cst_104 = arith.constant dense<0.000000e+00> : vector<1x128xf32>
    %161 = tpu.matmul %157, %1, %cst_104 {dimension_numbers = #tpu.dot_dimension_numbers<[1], [0], [0], [1], [0, 0, 1, 1], [], []>} : vector<1x128xf32>, vector<128x128xf32>, vector<1x128xf32> -> vector<1x128xf32>
    %cst_105 = arith.constant dense<0.000000e+00> : vector<1x128xf32>
    %162 = tpu.matmul %160, %1, %cst_105 {dimension_numbers = #tpu.dot_dimension_numbers<[1], [0], [0], [1], [0, 0, 1, 1], [], []>} : vector<1x128xf32>, vector<128x128xf32>, vector<1x128xf32> -> vector<1x128xf32>
    %163 = arith.mulf %161, %161 : vector<1x128xf32>
    %164 = arith.subf %162, %163 : vector<1x128xf32>
    %cst_106 = arith.constant 0.000000e+00 : f32
    %165 = vector.broadcast %cst_106 : f32 to vector<1x128xf32>
    %166 = arith.maximumf %164, %165 : vector<1x128xf32>
    %c3_107 = arith.constant 3 : index
    %c0_108 = arith.constant 0 : index
    %c0_109 = arith.constant 0 : index
    %167 = vector.load %arg6[%c3_107, %c0_108, %c0_109] : memref<6x1x128xf32, #tpu.memory_space<vmem>>, vector<1x1x128xf32>
    %168 = vector.shape_cast %167 : vector<1x1x128xf32> to vector<1x128xf32>
    %cst_110 = arith.constant 9.99999974E-6 : f32
    %169 = vector.broadcast %cst_110 : f32 to vector<1x128xf32>
    %170 = arith.addf %166, %169 : vector<1x128xf32>
    %171 = math.rsqrt %170 : vector<1x128xf32>
    %172 = arith.mulf %168, %171 : vector<1x128xf32>
    %c3_111 = arith.constant 3 : index
    %c0_112 = arith.constant 0 : index
    %c0_113 = arith.constant 0 : index
    %173 = vector.load %arg7[%c3_111, %c0_112, %c0_113] : memref<6x1x128xf32, #tpu.memory_space<vmem>>, vector<1x1x128xf32>
    %174 = vector.shape_cast %173 : vector<1x1x128xf32> to vector<1x128xf32>
    %175 = arith.mulf %161, %172 : vector<1x128xf32>
    %176 = arith.subf %174, %175 : vector<1x128xf32>
    %177 = vector.broadcast %172 : vector<1x128xf32> to vector<32x128xf32>
    %178 = arith.mulf %155, %177 : vector<32x128xf32>
    %179 = vector.broadcast %176 : vector<1x128xf32> to vector<32x128xf32>
    %180 = arith.addf %178, %179 : vector<32x128xf32>
    %cst_114 = arith.constant 0.000000e+00 : f32
    %181 = vector.broadcast %cst_114 : f32 to vector<32x128xf32>
    %182 = arith.maximumf %180, %181 : vector<32x128xf32>
    %c6 = arith.constant 6 : index
    %c0_115 = arith.constant 0 : index
    %c0_116 = arith.constant 0 : index
    %183 = vector.load %arg4[%c6, %c0_115, %c0_116] : memref<10x128x128xf32, #tpu.memory_space<vmem>>, vector<1x128x128xf32>
    %184 = vector.shape_cast %183 : vector<1x128x128xf32> to vector<128x128xf32>
    %c7 = arith.constant 7 : index
    %c0_117 = arith.constant 0 : index
    %c0_118 = arith.constant 0 : index
    %185 = vector.load %arg4[%c7, %c0_117, %c0_118] : memref<10x128x128xf32, #tpu.memory_space<vmem>>, vector<1x128x128xf32>
    %186 = vector.shape_cast %185 : vector<1x128x128xf32> to vector<128x128xf32>
    %c8 = arith.constant 8 : index
    %c0_119 = arith.constant 0 : index
    %c0_120 = arith.constant 0 : index
    %187 = vector.load %arg4[%c8, %c0_119, %c0_120] : memref<10x128x128xf32, #tpu.memory_space<vmem>>, vector<1x128x128xf32>
    %188 = vector.shape_cast %187 : vector<1x128x128xf32> to vector<128x128xf32>
    %cst_121 = arith.constant dense<0.000000e+00> : vector<32x128xf32>
    %189 = tpu.matmul %3, %182, %cst_121 {dimension_numbers = #tpu.dot_dimension_numbers<[1], [0], [0], [1], [0, 0, 1, 1], [], []>} : vector<32x32xf32>, vector<32x128xf32>, vector<32x128xf32> -> vector<32x128xf32>
    %cst_122 = arith.constant dense<0.000000e+00> : vector<32x128xf32>
    %190 = tpu.matmul %189, %184, %cst_122 {dimension_numbers = #tpu.dot_dimension_numbers<[1], [0], [0], [1], [0, 0, 1, 1], [], []>} : vector<32x128xf32>, vector<128x128xf32>, vector<32x128xf32> -> vector<32x128xf32>
    %cst_123 = arith.constant dense<0.000000e+00> : vector<32x128xf32>
    %191 = tpu.matmul %182, %186, %cst_123 {dimension_numbers = #tpu.dot_dimension_numbers<[1], [0], [0], [1], [0, 0, 1, 1], [], []>} : vector<32x128xf32>, vector<128x128xf32>, vector<32x128xf32> -> vector<32x128xf32>
    %192 = arith.addf %190, %191 : vector<32x128xf32>
    %cst_124 = arith.constant dense<0.000000e+00> : vector<32x128xf32>
    %193 = tpu.matmul %5, %182, %cst_124 {dimension_numbers = #tpu.dot_dimension_numbers<[1], [0], [0], [1], [0, 0, 1, 1], [], []>} : vector<32x32xf32>, vector<32x128xf32>, vector<32x128xf32> -> vector<32x128xf32>
    %cst_125 = arith.constant dense<0.000000e+00> : vector<32x128xf32>
    %194 = tpu.matmul %193, %188, %cst_125 {dimension_numbers = #tpu.dot_dimension_numbers<[1], [0], [0], [1], [0, 0, 1, 1], [], []>} : vector<32x128xf32>, vector<128x128xf32>, vector<32x128xf32> -> vector<32x128xf32>
    %195 = arith.addf %192, %194 : vector<32x128xf32>
    %cst_126 = arith.constant dense<0.000000e+00> : vector<128xf32>
    %196 = vector.multi_reduction <add>, %195, %cst_126 [0] : vector<32x128xf32> to vector<128xf32>
    %197 = vector.shape_cast %196 : vector<128xf32> to vector<1x128xf32>
    %198 = arith.mulf %195, %195 : vector<32x128xf32>
    %cst_127 = arith.constant dense<0.000000e+00> : vector<128xf32>
    %199 = vector.multi_reduction <add>, %198, %cst_127 [0] : vector<32x128xf32> to vector<128xf32>
    %200 = vector.shape_cast %199 : vector<128xf32> to vector<1x128xf32>
    %cst_128 = arith.constant dense<0.000000e+00> : vector<1x128xf32>
    %201 = tpu.matmul %197, %1, %cst_128 {dimension_numbers = #tpu.dot_dimension_numbers<[1], [0], [0], [1], [0, 0, 1, 1], [], []>} : vector<1x128xf32>, vector<128x128xf32>, vector<1x128xf32> -> vector<1x128xf32>
    %cst_129 = arith.constant dense<0.000000e+00> : vector<1x128xf32>
    %202 = tpu.matmul %200, %1, %cst_129 {dimension_numbers = #tpu.dot_dimension_numbers<[1], [0], [0], [1], [0, 0, 1, 1], [], []>} : vector<1x128xf32>, vector<128x128xf32>, vector<1x128xf32> -> vector<1x128xf32>
    %203 = arith.mulf %201, %201 : vector<1x128xf32>
    %204 = arith.subf %202, %203 : vector<1x128xf32>
    %cst_130 = arith.constant 0.000000e+00 : f32
    %205 = vector.broadcast %cst_130 : f32 to vector<1x128xf32>
    %206 = arith.maximumf %204, %205 : vector<1x128xf32>
    %c4_131 = arith.constant 4 : index
    %c0_132 = arith.constant 0 : index
    %c0_133 = arith.constant 0 : index
    %207 = vector.load %arg6[%c4_131, %c0_132, %c0_133] : memref<6x1x128xf32, #tpu.memory_space<vmem>>, vector<1x1x128xf32>
    %208 = vector.shape_cast %207 : vector<1x1x128xf32> to vector<1x128xf32>
    %cst_134 = arith.constant 9.99999974E-6 : f32
    %209 = vector.broadcast %cst_134 : f32 to vector<1x128xf32>
    %210 = arith.addf %206, %209 : vector<1x128xf32>
    %211 = math.rsqrt %210 : vector<1x128xf32>
    %212 = arith.mulf %208, %211 : vector<1x128xf32>
    %c4_135 = arith.constant 4 : index
    %c0_136 = arith.constant 0 : index
    %c0_137 = arith.constant 0 : index
    %213 = vector.load %arg7[%c4_135, %c0_136, %c0_137] : memref<6x1x128xf32, #tpu.memory_space<vmem>>, vector<1x1x128xf32>
    %214 = vector.shape_cast %213 : vector<1x1x128xf32> to vector<1x128xf32>
    %215 = arith.mulf %201, %212 : vector<1x128xf32>
    %216 = arith.subf %214, %215 : vector<1x128xf32>
    %217 = vector.broadcast %212 : vector<1x128xf32> to vector<32x128xf32>
    %218 = arith.mulf %195, %217 : vector<32x128xf32>
    %219 = vector.broadcast %216 : vector<1x128xf32> to vector<32x128xf32>
    %220 = arith.addf %218, %219 : vector<32x128xf32>
    %221 = arith.addf %220, %142 : vector<32x128xf32>
    %cst_138 = arith.constant 0.000000e+00 : f32
    %222 = vector.broadcast %cst_138 : f32 to vector<32x128xf32>
    %223 = arith.maximumf %221, %222 : vector<32x128xf32>
    %c0_139 = arith.constant 0 : index
    %c0_140 = arith.constant 0 : index
    %224 = vector.load %arg1[%c0_139, %c0_140] : memref<32x128xf32, #tpu.memory_space<vmem>>, vector<32x128xf32>
    %225 = arith.addf %223, %224 : vector<32x128xf32>
    %c0_141 = arith.constant 0 : index
    %c0_142 = arith.constant 0 : index
    %226 = vector.load %arg8[%c0_141, %c0_142] : memref<32x128xf32, #tpu.memory_space<vmem>>, vector<32x128xf32>
    tpu.vector_store %arg8[%c0_141, %c0_142], %225 {strides = array<i32>} : memref<32x128xf32, #tpu.memory_space<vmem>>, vector<32x128xf32>,
    return
  }
}

</mosaic_0001>

<llo_original>
// kernel: tile.73
$region0: #{tile.73}
  #allocation0 [shape = 's32[1]{0}', space=sflag, size = 0x4, scoped, tag = 'scoped memory for tile.73']
  %s0 = inlined_call_operand.vmem [shape: f32[8], index: 0, kind: input, shape index: {}]
  %s1 = inlined_call_operand.vmem [shape: f32[16,8], index: 1, kind: output, shape index: {}]
  // Predicated region
  $region2: #{tile.73} parent=0 // pred_check
    _
  $region3: #{tile.73} parent=0 // pred_check_branch
    %3 = sbr.rel (0) target = $region5
  $region4: #{tile.73} parent=0 // pred_region
    _
  $region5: #{tile.73} parent=0 // pred_fallthru
    _
  %v4 = vld [vmem:[%s0] ss:$0 sm:$0xff]
  %5 = vst [vmem:[%s1] sm:$0xff] %v4
  %s6 = scalar_lea.vmem %s1, 8
  %7 = vst [vmem:[%s6] sm:$0xff] %v4

// kernel: tile.94
$region0: #{tile.94}
  %s0 = inlined_call_operand.vmem [shape: f32[16,8], index: 0, kind: input, shape index: {}]
  %s1 = inlined_call_operand.vmem [shape: f32[1,1,128], index: 1, kind: output, shape index: {}]
  $region1: #{tile.94} parent=0
    #allocation0 [shape = 'u8[4096]{0}', space=vmem, size = 0x1000, scoped, tag = 'scoped mem for output reshape']
    %v2 = vld [vmem:[%s0] sm:$0x1]
    %vm3 = vcmask 64512
    %4 = vst.msk [vmem:[#allocation0] sm:$0x1] %vm3, %v2
    %s5 = scalar_lea.vmem %s0, 15
    %v6 = vld [vmem:[%s5] sm:$0x1]
    %7 = vrot.lane.b32.xlu0 %v6, 120
    %v8 = vpop.permute.xlu0 %7
    %vm9 = vcmask 1048512
    %10 = vst.msk [vmem:[#allocation0] sm:$0x1] %vm9, %v8
    %s11 = scalar_lea.vmem %s0, 14
    %v12 = vld [vmem:[%s11] sm:$0x1]
    %13 = vrot.lane.b32.xlu0 %v12, 112
    %v14 = vpop.permute.xlu0 %13
    %vm15 = vcmask 982912
    %16 = vst.msk [vmem:[#allocation0] sm:$0x1] %vm15, %v14
    %s17 = scalar_lea.vmem %s0, 13
    %v18 = vld [vmem:[%s17] sm:$0x1]
    %19 = vrot.lane.b32.xlu0 %v18, 104
    %v20 = vpop.permute.xlu0 %19
    %vm21 = vcmask 917312
    %22 = vst.msk [vmem:[#allocation0] sm:$0x1] %vm21, %v20
    %s23 = scalar_lea.vmem %s0, 12
    %v24 = vld [vmem:[%s23] sm:$0x1]
    %25 = vrot.lane.b32.xlu0 %v24, 96
    %v26 = vpop.permute.xlu0 %25
    %vm27 = vcmask 851712
    %28 = vst.msk [vmem:[#allocation0] sm:$0x1] %vm27, %v26
    %s29 = scalar_lea.vmem %s0, 11
    %v30 = vld [vmem:[%s29] sm:$0x1]
    %31 = vrot.lane.b32.xlu0 %v30, 88
    %v32 = vpop.permute.xlu0 %31
    %vm33 = vcmask 786112
    %34 = vst.msk [vmem:[#allocation0] sm:$0x1] %vm33, %v32
    %s35 = scalar_lea.vmem %s0, 10
    %v36 = vld [vmem:[%s35] sm:$0x1]
    %37 = vrot.lane.b32.xlu0 %v36, 80
    %v38 = vpop.permute.xlu0 %37
    %vm39 = vcmask 720512
    %40 = vst.msk [vmem:[#allocation0] sm:$0x1] %vm39, %v38
    %s41 = scalar_lea.vmem %s0, 9
    %v42 = vld [vmem:[%s41] sm:$0x1]
    %43 = vrot.lane.b32.xlu0 %v42, 72
    %v44 = vpop.permute.xlu0 %43
    %vm45 = vcmask 654912
    %46 = vst.msk [vmem:[#allocation0] sm:$0x1] %vm45, %v44
    %s47 = scalar_lea.vmem %s0, 8
    %v48 = vld [vmem:[%s47] sm:$0x1]
    %49 = vrot.lane.b32.xlu0 %v48, 64
    %v50 = vpop.permute.xlu0 %49
    %vm51 = vcmask 589312
    %52 = vst.msk [vmem:[#allocation0] sm:$0x1] %vm51, %v50
    %s53 = scalar_lea.vmem %s0, 7
    %v54 = vld [vmem:[%s53] sm:$0x1]
    %55 = vrot.lane.b32.xlu0 %v54, 56
    %v56 = vpop.permute.xlu0 %55
    %vm57 = vcmask 523712
    %58 = vst.msk [vmem:[#allocation0] sm:$0x1] %vm57, %v56
    %s59 = scalar_lea.vmem %s0, 6
    %v60 = vld [vmem:[%s59] sm:$0x1]
    %61 = vrot.lane.b32.xlu0 %v60, 48
    %v62 = vpop.permute.xlu0 %61
    %vm63 = vcmask 458112
    %64 = vst.msk [vmem:[#allocation0] sm:$0x1] %vm63, %v62
    %s65 = scalar_lea.vmem %s0, 5
    %v66 = vld [vmem:[%s65] sm:$0x1]
    %67 = vrot.lane.b32.xlu0 %v66, 40
    %v68 = vpop.permute.xlu0 %67
    %vm69 = vcmask 392512
    %70 = vst.msk [vmem:[#allocation0] sm:$0x1] %vm69, %v68
    %s71 = scalar_lea.vmem %s0, 4
    %v72 = vld [vmem:[%s71] sm:$0x1]
    %73 = vrot.lane.b32.xlu0 %v72, 32
    %v74 = vpop.permute.xlu0 %73
    %vm75 = vcmask 326912
    %76 = vst.msk [vmem:[#allocation0] sm:$0x1] %vm75, %v74
    %s77 = scalar_lea.vmem %s0, 3
    %v78 = vld [vmem:[%s77] sm:$0x1]
    %79 = vrot.lane.b32.xlu0 %v78, 24
    %v80 = vpop.permute.xlu0 %79
    %vm81 = vcmask 261312
    %82 = vst.msk [vmem:[#allocation0] sm:$0x1] %vm81, %v80
    %s83 = scalar_lea.vmem %s0, 2
    %v84 = vld [vmem:[%s83] sm:$0x1]
    %85 = vrot.lane.b32.xlu0 %v84, 16
    %v86 = vpop.permute.xlu0 %85
    %vm87 = vcmask 195712
    %88 = vst.msk [vmem:[#allocation0] sm:$0x1] %vm87, %v86
    %s89 = scalar_lea.vmem %s0, 1
    %v90 = vld [vmem:[%s89] sm:$0x1]
    %91 = vrot.lane.b32.xlu0 %v90, 8
    %v92 = vpop.permute.xlu0 %91
    %vm93 = vcmask 130112
    %94 = vst.msk [vmem:[#allocation0] sm:$0x1] %vm93, %v92
    %s96 = sshllo.u32 0, 1
    %v98 = vld [vmem:[#allocation0] sm:%s96]
    %s99 = sshllo.u32 0, 1
    %100 = vst [vmem:[%s1] sm:%s99] %v98

// kernel: tile.69
$region0: #{tile.69}
  %s0 = inlined_call_operand.vmem [shape: f32[2,16,8], index: 0, kind: input, shape index: {}]
  %s1 = inlined_call_operand.vmem [shape: f32[2,128], index: 1, kind: output, shape index: {}]
  $region1: #{tile.69} parent=0
    #allocation0 [shape = 'u8[4096]{0}', space=vmem, size = 0x1000, scoped, tag = 'scoped mem for output reshape']
    %s2 = smov 3
    %v3 = vld [vmem:[%s0] ss:$16 sm:%s2]
    %vm4 = vcmask 64512
    %5 = vst.msk [vmem:[#allocation0] sm:$0x3] %vm4, %v3
    %s6 = scalar_lea.vmem %s0, 15
    %s7 = smov 3
    %v8 = vld [vmem:[%s6] ss:$16 sm:%s7]
    %9 = vrot.lane.b32.xlu0 %v8, 120
    %v10 = vpop.permute.xlu0 %9
    %vm11 = vcmask 1048512
    %12 = vst.msk [vmem:[#allocation0] sm:$0x3] %vm11, %v10
    %s13 = scalar_lea.vmem %s0, 14
    %s14 = smov 3
    %v15 = vld [vmem:[%s13] ss:$16 sm:%s14]
    %16 = vrot.lane.b32.xlu0 %v15, 112
    %v17 = vpop.permute.xlu0 %16
    %vm18 = vcmask 982912
    %19 = vst.msk [vmem:[#allocation0] sm:$0x3] %vm18, %v17
    %s20 = scalar_lea.vmem %s0, 13
    %s21 = smov 3
    %v22 = vld [vmem:[%s20] ss:$16 sm:%s21]
    %23 = vrot.lane.b32.xlu0 %v22, 104
    %v24 = vpop.permute.xlu0 %23
    %vm25 = vcmask 917312
    %26 = vst.msk [vmem:[#allocation0] sm:$0x3] %vm25, %v24
    %s27 = scalar_lea.vmem %s0, 12
    %s28 = smov 3
    %v29 = vld [vmem:[%s27] ss:$16 sm:%s28]
    %30 = vrot.lane.b32.xlu0 %v29, 96
    %v31 = vpop.permute.xlu0 %30
    %vm32 = vcmask 851712
    %33 = vst.msk [vmem:[#allocation0] sm:$0x3] %vm32, %v31
    %s34 = scalar_lea.vmem %s0, 11
    %s35 = smov 3
    %v36 = vld [vmem:[%s34] ss:$16 sm:%s35]
    %37 = vrot.lane.b32.xlu0 %v36, 88
    %v38 = vpop.permute.xlu0 %37
    %vm39 = vcmask 786112
    %40 = vst.msk [vmem:[#allocation0] sm:$0x3] %vm39, %v38
    %s41 = scalar_lea.vmem %s0, 10
    %s42 = smov 3
    %v43 = vld [vmem:[%s41] ss:$16 sm:%s42]
    %44 = vrot.lane.b32.xlu0 %v43, 80
    %v45 = vpop.permute.xlu0 %44
    %vm46 = vcmask 720512
    %47 = vst.msk [vmem:[#allocation0] sm:$0x3] %vm46, %v45
    %s48 = scalar_lea.vmem %s0, 9
    %s49 = smov 3
    %v50 = vld [vmem:[%s48] ss:$16 sm:%s49]
    %51 = vrot.lane.b32.xlu0 %v50, 72
    %v52 = vpop.permute.xlu0 %51
    %vm53 = vcmask 654912
    %54 = vst.msk [vmem:[#allocation0] sm:$0x3] %vm53, %v52
    %s55 = scalar_lea.vmem %s0, 8
    %s56 = smov 3
    %v57 = vld [vmem:[%s55] ss:$16 sm:%s56]
    %58 = vrot.lane.b32.xlu0 %v57, 64
    %v59 = vpop.permute.xlu0 %58
    %vm60 = vcmask 589312
    %61 = vst.msk [vmem:[#allocation0] sm:$0x3] %vm60, %v59
    %s62 = scalar_lea.vmem %s0, 7
    %s63 = smov 3
    %v64 = vld [vmem:[%s62] ss:$16 sm:%s63]
    %65 = vrot.lane.b32.xlu0 %v64, 56
    %v66 = vpop.permute.xlu0 %65
    %vm67 = vcmask 523712
    %68 = vst.msk [vmem:[#allocation0] sm:$0x3] %vm67, %v66
    %s69 = scalar_lea.vmem %s0, 6
    %s70 = smov 3
    %v71 = vld [vmem:[%s69] ss:$16 sm:%s70]
    %72 = vrot.lane.b32.xlu0 %v71, 48
    %v73 = vpop.permute.xlu0 %72
    %vm74 = vcmask 458112
    %75 = vst.msk [vmem:[#allocation0] sm:$0x3] %vm74, %v73
    %s76 = scalar_lea.vmem %s0, 5
    %s77 = smov 3
    %v78 = vld [vmem:[%s76] ss:$16 sm:%s77]
    %79 = vrot.lane.b32.xlu0 %v78, 40
    %v80 = vpop.permute.xlu0 %79
    %vm81 = vcmask 392512
    %82 = vst.msk [vmem:[#allocation0] sm:$0x3] %vm81, %v80
    %s83 = scalar_lea.vmem %s0, 4
    %s84 = smov 3
    %v85 = vld [vmem:[%s83] ss:$16 sm:%s84]
    %86 = vrot.lane.b32.xlu0 %v85, 32
    %v87 = vpop.permute.xlu0 %86
    %vm88 = vcmask 326912
    %89 = vst.msk [vmem:[#allocation0] sm:$0x3] %vm88, %v87
    %s90 = scalar_lea.vmem %s0, 3
    %s91 = smov 3
    %v92 = vld [vmem:[%s90] ss:$16 sm:%s91]
    %93 = vrot.lane.b32.xlu0 %v92, 24
    %v94 = vpop.permute.xlu0 %93
    %vm95 = vcmask 261312
    %96 = vst.msk [vmem:[#allocation0] sm:$0x3] %vm95, %v94
    %s97 = scalar_lea.vmem %s0, 2
    %s98 = smov 3
    %v99 = vld [vmem:[%s97] ss:$16 sm:%s98]
    %100 = vrot.lane.b32.xlu0 %v99, 16
    %v101 = vpop.permute.xlu0 %100
    %vm102 = vcmask 195712
    %103 = vst.msk [vmem:[#allocation0] sm:$0x3] %vm102, %v101
    %s104 = scalar_lea.vmem %s0, 1
    %s105 = smov 3
    %v106 = vld [vmem:[%s104] ss:$16 sm:%s105]
    %107 = vrot.lane.b32.xlu0 %v106, 8
    %v108 = vpop.permute.xlu0 %107
    %vm109 = vcmask 130112
    %110 = vst.msk [vmem:[#allocation0] sm:$0x3] %vm109, %v108
    %s112 = sshllo.u32 0, 2
    %v114 = vld [vmem:[#allocation0] sm:%s112]
    %s115 = sshllo.u32 0, 2
    %116 = vst [vmem:[%s1] sm:%s115] %v114

// kernel: resnet_with_time_embed.1
$region0: #{resnet_with_time_embed.1}
  #allocation0 [shape = 'u32[]', space=smem, size = 0x4, offset = 0x4, fixed_abs, tag = 'smem constant byte address 0x4 - core index']
  #allocation1 [shape = 'u32[144,128]{1,0:T(1,128)}', space=vmem, size = 0x12000, scoped, tag = 'internal scratch']
  %s0 = inlined_call_operand.vmem [shape: f32[32,64], index: 0, kind: input, shape index: {}]
  %s1 = inlined_call_operand.vmem [shape: f32[32,128], index: 1, kind: input, shape index: {}]
  %s2 = inlined_call_operand.vmem [shape: f32[2,32,32], index: 2, kind: input, shape index: {}]
  %s3 = inlined_call_operand.vmem [shape: f32[4,64,128], index: 3, kind: input, shape index: {}]
  %s4 = inlined_call_operand.vmem [shape: f32[10,128,128], index: 4, kind: input, shape index: {}]
  %s5 = inlined_call_operand.vmem [shape: f32[128,128], index: 5, kind: input, shape index: {}]
  %s6 = inlined_call_operand.vmem [shape: f32[6,1,128], index: 6, kind: input, shape index: {}]
  %s7 = inlined_call_operand.vmem [shape: f32[6,1,128], index: 7, kind: input, shape index: {}]
  %s8 = inlined_call_operand.vmem [shape: f32[32,128], index: 8, kind: output, shape index: {}]
  %s9 = sld [smem:[#allocation0]]
  $region42: #{resnet_with_time_embed.1} parent=0
    _
  %s11 = ssub.s32 1, %s9
  %s12 = scalar_select 0, %s11, %s9
  // Predicated region
  $region2: #{resnet_with_time_embed.1} parent=0 // pred_check
    _
  $region3: #{resnet_with_time_embed.1} parent=0 // pred_check_branch
    %14 = sbr.rel (0) target = $region5
  $region4: #{resnet_with_time_embed.1} parent=0 // pred_region
    _
  $region5: #{resnet_with_time_embed.1} parent=0 // pred_fallthru
    _
  // Predicated region
  $region6: #{resnet_with_time_embed.1} parent=0 // pred_check
    _
  $region7: #{resnet_with_time_embed.1} parent=0 // pred_check_branch
    %16 = sbr.rel (0) target = $region9
  $region8: #{resnet_with_time_embed.1} parent=0 // pred_region
    _
  $region9: #{resnet_with_time_embed.1} parent=0 // pred_fallthru
    _
  // Predicated region
  $region10: #{resnet_with_time_embed.1} parent=0 // pred_check
    _
  $region11: #{resnet_with_time_embed.1} parent=0 // pred_check_branch
    %18 = sbr.rel (0) target = $region13
  $region12: #{resnet_with_time_embed.1} parent=0 // pred_region
    _
  $region13: #{resnet_with_time_embed.1} parent=0 // pred_fallthru
    _
  // Predicated region
  $region14: #{resnet_with_time_embed.1} parent=0 // pred_check
    _
  $region15: #{resnet_with_time_embed.1} parent=0 // pred_check_branch
    %20 = sbr.rel (0) target = $region17
  $region16: #{resnet_with_time_embed.1} parent=0 // pred_region
    _
  $region17: #{resnet_with_time_embed.1} parent=0 // pred_fallthru
    _
  // Predicated region
  $region18: #{resnet_with_time_embed.1} parent=0 // pred_check
    _
  $region19: #{resnet_with_time_embed.1} parent=0 // pred_check_branch
    %22 = sbr.rel (0) target = $region21
  $region20: #{resnet_with_time_embed.1} parent=0 // pred_region
    _
  $region21: #{resnet_with_time_embed.1} parent=0 // pred_fallthru
    _
  // Predicated region
  $region22: #{resnet_with_time_embed.1} parent=0 // pred_check
    _
  $region23: #{resnet_with_time_embed.1} parent=0 // pred_check_branch
    %24 = sbr.rel (0) target = $region25
  $region24: #{resnet_with_time_embed.1} parent=0 // pred_region
    _
  $region25: #{resnet_with_time_embed.1} parent=0 // pred_fallthru
    _
  // Predicated region
  $region26: #{resnet_with_time_embed.1} parent=0 // pred_check
    _
  $region27: #{resnet_with_time_embed.1} parent=0 // pred_check_branch
    %26 = sbr.rel (0) target = $region29
  $region28: #{resnet_with_time_embed.1} parent=0 // pred_region
    _
  $region29: #{resnet_with_time_embed.1} parent=0 // pred_fallthru
    _
  // Predicated region
  $region30: #{resnet_with_time_embed.1} parent=0 // pred_check
    _
  $region31: #{resnet_with_time_embed.1} parent=0 // pred_check_branch
    %28 = sbr.rel (0) target = $region33
  $region32: #{resnet_with_time_embed.1} parent=0 // pred_region
    _
  $region33: #{resnet_with_time_embed.1} parent=0 // pred_fallthru
    _
  %v29 = vld [vmem:[%s0] sm:$0xff]
  %v30 = vld [vmem:[%s0 + $0x8] sm:$0xff]
  %v31 = vld [vmem:[%s0 + $0x10] sm:$0xff]
  %v32 = vld [vmem:[%s0 + $0x18] sm:$0xff]
  %v33 = vld [vmem:[%s5] sm:$0xff]
  %v34 = vld [vmem:[%s5 + $0x8] sm:$0xff]
  %v35 = vld [vmem:[%s5 + $0x10] sm:$0xff]
  %v36 = vld [vmem:[%s5 + $0x18] sm:$0xff]
  %v37 = vld [vmem:[%s5 + $0x20] sm:$0xff]
  %v38 = vld [vmem:[%s5 + $0x28] sm:$0xff]
  %v39 = vld [vmem:[%s5 + $0x30] sm:$0xff]
  %v40 = vld [vmem:[%s5 + $0x38] sm:$0xff]
  %v41 = vld [vmem:[%s5 + $0x40] sm:$0xff]
  %v42 = vld [vmem:[%s5 + $0x48] sm:$0xff]
  %v43 = vld [vmem:[%s5 + $0x50] sm:$0xff]
  %v44 = vld [vmem:[%s5 + $0x58] sm:$0xff]
  %v45 = vld [vmem:[%s5 + $0x60] sm:$0xff]
  %v46 = vld [vmem:[%s5 + $0x68] sm:$0xff]
  %v47 = vld [vmem:[%s5 + $0x70] sm:$0xff]
  %v48 = vld [vmem:[%s5 + $0x78] sm:$0xff]
  %v49 = vld [vmem:[%s2] sm:$0xff]
  %v50 = vld [vmem:[%s2 + $0x8] sm:$0xff]
  %v51 = vld [vmem:[%s2 + $0x10] sm:$0xff]
  %v52 = vld [vmem:[%s2 + $0x18] sm:$0xff]
  %s53 = scalar_lea.vmem %s2, 32
  %v54 = vld [vmem:[%s53] sm:$0xff]
  %v55 = vld [vmem:[%s53 + $0x8] sm:$0xff]
  %v56 = vld [vmem:[%s53 + $0x10] sm:$0xff]
  %v57 = vld [vmem:[%s53 + $0x18] sm:$0xff]
  %s58 = scalar_lea.vmem %s3, 192
  %v59 = vld [vmem:[%s58] sm:$0xff]
  %v60 = vld [vmem:[%s58 + $0x8] sm:$0xff]
  %v61 = vld [vmem:[%s58 + $0x10] sm:$0xff]
  %v62 = vld [vmem:[%s58 + $0x18] sm:$0xff]
  %v63 = vld [vmem:[%s58 + $0x20] sm:$0xff]
  %v64 = vld [vmem:[%s58 + $0x28] sm:$0xff]
  %v65 = vld [vmem:[%s58 + $0x30] sm:$0xff]
  %v66 = vld [vmem:[%s58 + $0x38] sm:$0xff]
  %vm67 = vcmask 523264
  %v69 = vsel %vm67, %v29, 0
  %v72 = vsel %vm67, %v30, 0
  %v75 = vsel %vm67, %v31, 0
  %v78 = vsel %vm67, %v32, 0
  %80 = vmatprep.subr.mxu0 0.0
  %81 = vmatpush1.msra.mxu0 %v59
  %82 = vmatprep.subr.mxu0 0.0
  %83 = vmatpush1.msra.mxu0 %v60
  %84 = vmatprep.subr.mxu0 0.0
  %85 = vmatpush1.msra.mxu0 %v61
  %86 = vmatprep.subr.mxu0 0.0
  %87 = vmatpush1.msra.mxu0 %v62
  %88 = vmatprep.subr.mxu0 0.0
  %89 = vmatpush1.msra.mxu0 %v63
  %90 = vmatprep.subr.mxu0 0.0
  %91 = vmatpush1.msra.mxu0 %v64
  %92 = vmatprep.subr.mxu0 0.0
  %93 = vmatpush1.msra.mxu0 %v65
  %94 = vmatprep.subr.mxu0 0.0
  %95 = vmatpush1.msra.mxu0 %v66
  %96 = vmatprep.subr.mxu0 0.0
  %97 = vmatpush1.msra.mxu0 0.0
  %98 = vmatprep.subr.mxu0 0.0
  %99 = vmatpush1.msra.mxu0 0.0
  %100 = vmatprep.subr.mxu0 0.0
  %101 = vmatpush1.msra.mxu0 0.0
  %102 = vmatprep.subr.mxu0 0.0
  %103 = vmatpush1.msra.mxu0 0.0
  %104 = vmatprep.subr.mxu0 0.0
  %105 = vmatpush1.msra.mxu0 0.0
  %106 = vmatprep.subr.mxu0 0.0
  %107 = vmatpush1.msra.mxu0 0.0
  %108 = vmatprep.subr.mxu0 0.0
  %109 = vmatpush1.msra.mxu0 0.0
  %110 = vmatprep.subr.mxu0 0.0
  %111 = vmatpush1.msra.mxu0 0.0
  %112 = vmatprep.subr.mxu0 0.0
  %113 = vmatpush1.msra.mxu0 0.0
  %114 = vmatprep.subr.mxu0 0.0
  %115 = vmatpush1.msra.mxu0 0.0
  %116 = vmatprep.subr.mxu0 0.0
  %117 = vmatpush1.msra.mxu0 0.0
  %118 = vmatprep.subr.mxu0 0.0
  %119 = vmatpush1.msra.mxu0 0.0
  %120 = vmatprep.subr.mxu0 0.0
  %121 = vmatpush1.msra.mxu0 0.0
  %122 = vmatprep.subr.mxu0 0.0
  %123 = vmatpush1.msra.mxu0 0.0
  %124 = vmatprep.subr.mxu0 0.0
  %125 = vmatpush1.msra.mxu0 0.0
  %126 = vmatprep.subr.mxu0 0.0
  %127 = vmatpush1.msra.mxu0 0.0
  %128 = vmatprep.subr.mxu0 0.0
  %129 = vmatpush1.msra.mxu0 0.0
  %130 = vmatprep.subr.mxu0 0.0
  %131 = vmatpush1.msra.mxu0 0.0
  %132 = vmatprep.subr.mxu0 0.0
  %133 = vmatpush1.msra.mxu0 0.0
  %134 = vmatprep.subr.mxu0 0.0
  %135 = vmatpush1.msra.mxu0 0.0
  %136 = vmatprep.subr.mxu0 0.0
  %137 = vmatpush1.msra.mxu0 0.0
  %138 = vmatprep.subr.mxu0 0.0
  %139 = vmatpush1.msra.mxu0 0.0
  %140 = vmatprep.subr.mxu0 0.0
  %141 = vmatpush1.msra.mxu0 0.0
  %142 = vmatprep.subr.mxu0 0.0
  %143 = vmatpush1.msra.mxu0 0.0
  %144 = vmatprep.mubr.f32.mxu0 0.0
  %145 = vmatmul.mubr.f32.gmra.mrb[0].mxu0 %v69
  %v146 = vpop.f32.mrb[0].mxu0
  %v147 = vadd.f32 0.0, %v146
  %v148 = vpop.f32.mrb[0].mxu0
  %149 = vmatprep.mubr.f32.mxu0 0.0
  %150 = vmatmul.mubr.f32.gmra.mrb[0].mxu0 %v72
  %v151 = vpop.f32.mrb[0].mxu0
  %v152 = vadd.f32 0.0, %v151
  %v153 = vpop.f32.mrb[0].mxu0
  %154 = vmatprep.mubr.f32.mxu0 0.0
  %155 = vmatmul.mubr.f32.gmra.mrb[0].mxu0 %v75
  %v156 = vpop.f32.mrb[0].mxu0
  %v157 = vadd.f32 0.0, %v156
  %v158 = vpop.f32.mrb[0].mxu0
  %159 = vmatprep.mubr.f32.mxu0 0.0
  %160 = vmatmul.mubr.f32.gmra.mrb[0].mxu0 %v78
  %v161 = vpop.f32.mrb[0].mxu0
  %v162 = vadd.f32 0.0, %v161
  %v163 = vpop.f32.mrb[0].mxu0
  %164 = vdwg.mxu0
  %v165 = vadd.f32 %v147, %v152
  %v166 = vadd.f32 %v165, %v157
  %v167 = vadd.f32 %v166, %v162
  %v168 = vrot.slane %v167, 4
  %v169 = vadd.f32 %v167, %v168
  %v170 = vrot.slane %v169, 2
  %v171 = vadd.f32 %v169, %v170
  %v172 = vrot.slane %v171, 1
  %v173 = vadd.f32 %v171, %v172
  %v174 = vmul.f32 %v147, %v147
  %v175 = vmul.f32 %v152, %v152
  %v176 = vmul.f32 %v157, %v157
  %v177 = vmul.f32 %v162, %v162
  %v178 = vadd.f32 %v174, %v175
  %v179 = vadd.f32 %v178, %v176
  %v180 = vadd.f32 %v179, %v177
  %v181 = vrot.slane %v180, 4
  %v182 = vadd.f32 %v180, %v181
  %v183 = vrot.slane %v182, 2
  %v184 = vadd.f32 %v182, %v183
  %v185 = vrot.slane %v184, 1
  %v186 = vadd.f32 %v184, %v185
  %187 = vmatprep.subr.mxu0 0.0
  %188 = vmatpush1.msra.mxu0 %v33
  %189 = vmatprep.subr.mxu0 0.0
  %190 = vmatpush1.msra.mxu0 %v34
  %191 = vmatprep.subr.mxu0 0.0
  %192 = vmatpush1.msra.mxu0 %v35
  %193 = vmatprep.subr.mxu0 0.0
  %194 = vmatpush1.msra.mxu0 %v36
  %195 = vmatprep.subr.mxu0 0.0
  %196 = vmatpush1.msra.mxu0 %v37
  %197 = vmatprep.subr.mxu0 0.0
  %198 = vmatpush1.msra.mxu0 %v38
  %199 = vmatprep.subr.mxu0 0.0
  %200 = vmatpush1.msra.mxu0 %v39
  %201 = vmatprep.subr.mxu0 0.0
  %202 = vmatpush1.msra.mxu0 %v40
  %203 = vmatprep.subr.mxu0 0.0
  %204 = vmatpush1.msra.mxu0 %v41
  %205 = vmatprep.subr.mxu0 0.0
  %206 = vmatpush1.msra.mxu0 %v42
  %207 = vmatprep.subr.mxu0 0.0
  %208 = vmatpush1.msra.mxu0 %v43
  %209 = vmatprep.subr.mxu0 0.0
  %210 = vmatpush1.msra.mxu0 %v44
  %211 = vmatprep.subr.mxu0 0.0
  %212 = vmatpush1.msra.mxu0 %v45
  %213 = vmatprep.subr.mxu0 0.0
  %214 = vmatpush1.msra.mxu0 %v46
  %215 = vmatprep.subr.mxu0 0.0
  %216 = vmatpush1.msra.mxu0 %v47
  %217 = vmatprep.subr.mxu0 0.0
  %218 = vmatpush1.msra.mxu0 %v48
  %219 = vmatprep.subr.mxu0 0.0
  %220 = vmatpush1.msra.mxu0 0.0
  %221 = vmatprep.subr.mxu0 0.0
  %222 = vmatpush1.msra.mxu0 0.0
  %223 = vmatprep.subr.mxu0 0.0
  %224 = vmatpush1.msra.mxu0 0.0
  %225 = vmatprep.subr.mxu0 0.0
  %226 = vmatpush1.msra.mxu0 0.0
  %227 = vmatprep.subr.mxu0 0.0
  %228 = vmatpush1.msra.mxu0 0.0
  %229 = vmatprep.subr.mxu0 0.0
  %230 = vmatpush1.msra.mxu0 0.0
  %231 = vmatprep.subr.mxu0 0.0
  %232 = vmatpush1.msra.mxu0 0.0
  %233 = vmatprep.subr.mxu0 0.0
  %234 = vmatpush1.msra.mxu0 0.0
  %235 = vmatprep.subr.mxu0 0.0
  %236 = vmatpush1.msra.mxu0 0.0
  %237 = vmatprep.subr.mxu0 0.0
  %238 = vmatpush1.msra.mxu0 0.0
  %239 = vmatprep.subr.mxu0 0.0
  %240 = vmatpush1.msra.mxu0 0.0
  %241 = vmatprep.subr.mxu0 0.0
  %242 = vmatpush1.msra.mxu0 0.0
  %243 = vmatprep.subr.mxu0 0.0
  %244 = vmatpush1.msra.mxu0 0.0
  %245 = vmatprep.subr.mxu0 0.0
  %246 = vmatpush1.msra.mxu0 0.0
  %247 = vmatprep.subr.mxu0 0.0
  %248 = vmatpush1.msra.mxu0 0.0
  %249 = vmatprep.subr.mxu0 0.0
  %250 = vmatpush1.msra.mxu0 0.0
  %251 = vmatprep.mubr.f32.mxu0 0.0
  %252 = vmatmul.mubr.f32.gmra.mrb[0].mxu0 %v173
  %v253 = vpop.f32.mrb[0].mxu0
  %v254 = vadd.f32 0.0, %v253
  %v255 = vpop.f32.mrb[0].mxu0
  %256 = vdwg.mxu0
  %257 = vmatprep.subr.mxu0 0.0
  %258 = vmatpush1.msra.mxu0 %v33
  %259 = vmatprep.subr.mxu0 0.0
  %260 = vmatpush1.msra.mxu0 %v34
  %261 = vmatprep.subr.mxu0 0.0
  %262 = vmatpush1.msra.mxu0 %v35
  %263 = vmatprep.subr.mxu0 0.0
  %264 = vmatpush1.msra.mxu0 %v36
  %265 = vmatprep.subr.mxu0 0.0
  %266 = vmatpush1.msra.mxu0 %v37
  %267 = vmatprep.subr.mxu0 0.0
  %268 = vmatpush1.msra.mxu0 %v38
  %269 = vmatprep.subr.mxu0 0.0
  %270 = vmatpush1.msra.mxu0 %v39
  %271 = vmatprep.subr.mxu0 0.0
  %272 = vmatpush1.msra.mxu0 %v40
  %273 = vmatprep.subr.mxu0 0.0
  %274 = vmatpush1.msra.mxu0 %v41
  %275 = vmatprep.subr.mxu0 0.0
  %276 = vmatpush1.msra.mxu0 %v42
  %277 = vmatprep.subr.mxu0 0.0
  %278 = vmatpush1.msra.mxu0 %v43
  %279 = vmatprep.subr.mxu0 0.0
  %280 = vmatpush1.msra.mxu0 %v44
  %281 = vmatprep.subr.mxu0 0.0
  %282 = vmatpush1.msra.mxu0 %v45
  %283 = vmatprep.subr.mxu0 0.0
  %284 = vmatpush1.msra.mxu0 %v46
  %285 = vmatprep.subr.mxu0 0.0
  %286 = vmatpush1.msra.mxu0 %v47
  %287 = vmatprep.subr.mxu0 0.0
  %288 = vmatpush1.msra.mxu0 %v48
  %289 = vmatprep.subr.mxu0 0.0
  %290 = vmatpush1.msra.mxu0 0.0
  %291 = vmatprep.subr.mxu0 0.0
  %292 = vmatpush1.msra.mxu0 0.0
  %293 = vmatprep.subr.mxu0 0.0
  %294 = vmatpush1.msra.mxu0 0.0
  %295 = vmatprep.subr.mxu0 0.0
  %296 = vmatpush1.msra.mxu0 0.0
  %297 = vmatprep.subr.mxu0 0.0
  %298 = vmatpush1.msra.mxu0 0.0
  %299 = vmatprep.subr.mxu0 0.0
  %300 = vmatpush1.msra.mxu0 0.0
  %301 = vmatprep.subr.mxu0 0.0
  %302 = vmatpush1.msra.mxu0 0.0
  %303 = vmatprep.subr.mxu0 0.0
  %304 = vmatpush1.msra.mxu0 0.0
  %305 = vmatprep.subr.mxu0 0.0
  %306 = vmatpush1.msra.mxu0 0.0
  %307 = vmatprep.subr.mxu0 0.0
  %308 = vmatpush1.msra.mxu0 0.0
  %309 = vmatprep.subr.mxu0 0.0
  %310 = vmatpush1.msra.mxu0 0.0
  %311 = vmatprep.subr.mxu0 0.0
  %312 = vmatpush1.msra.mxu0 0.0
  %313 = vmatprep.subr.mxu0 0.0
  %314 = vmatpush1.msra.mxu0 0.0
  %315 = vmatprep.subr.mxu0 0.0
  %316 = vmatpush1.msra.mxu0 0.0
  %317 = vmatprep.subr.mxu0 0.0
  %318 = vmatpush1.msra.mxu0 0.0
  %319 = vmatprep.subr.mxu0 0.0
  %320 = vmatpush1.msra.mxu0 0.0
  %321 = vmatprep.mubr.f32.mxu0 0.0
  %322 = vmatmul.mubr.f32.gmra.mrb[0].mxu0 %v186
  %v323 = vpop.f32.mrb[0].mxu0
  %v324 = vadd.f32 0.0, %v323
  %v325 = vpop.f32.mrb[0].mxu0
  %326 = vdwg.mxu0
  %v327 = vmul.f32 %v254, %v254
  %v328 = vsub.f32 %v324, %v327
  %v329 = vmax.f32 %v328, 0.0
  %s330 = scalar_lea.vmem %s6, 2
  %v331 = vld [vmem:[%s330] sm:$0x1]
  %v332 = vadd.f32 %v329, 1e-05
  %v333 = vrsqrt.pop %v332
  %v334 = vmul.f32 %v331, %v333
  %s335 = scalar_lea.vmem %s7, 2
  %v336 = vld [vmem:[%s335] sm:$0x1]
  %v337 = vmul.f32 %v254, %v334
  %v338 = vsub.f32 %v336, %v337
  %v340 = vlaneseq
  %v341 = vshrl.u32 %v340, 7
  %v342 = vsub.s32 0, %v341
  %v343 = vrot.slane %v334, %v342
  %v345 = vmul.f32 %v147, %v343
  %v346 = vmul.f32 %v152, %v343
  %v347 = vmul.f32 %v157, %v343
  %v348 = vmul.f32 %v162, %v343
  %v350 = vlaneseq
  %v351 = vshrl.u32 %v350, 7
  %v352 = vsub.s32 0, %v351
  %v353 = vrot.slane %v338, %v352
  %v355 = vadd.f32 %v345, %v353
  %v356 = vadd.f32 %v346, %v353
  %v357 = vadd.f32 %v347, %v353
  %v358 = vadd.f32 %v348, %v353
  %v359 = vld [vmem:[%s3] sm:$0xff]
  %v360 = vld [vmem:[%s3 + $0x8] sm:$0xff]
  %v361 = vld [vmem:[%s3 + $0x10] sm:$0xff]
  %v362 = vld [vmem:[%s3 + $0x18] sm:$0xff]
  %v363 = vld [vmem:[%s3 + $0x20] sm:$0xff]
  %v364 = vld [vmem:[%s3 + $0x28] sm:$0xff]
  %v365 = vld [vmem:[%s3 + $0x30] sm:$0xff]
  %v366 = vld [vmem:[%s3 + $0x38] sm:$0xff]
  %s367 = scalar_lea.vmem %s3, 64
  %v368 = vld [vmem:[%s367] sm:$0xff]
  %v369 = vld [vmem:[%s367 + $0x8] sm:$0xff]
  %v370 = vld [vmem:[%s367 + $0x10] sm:$0xff]
  %v371 = vld [vmem:[%s367 + $0x18] sm:$0xff]
  %v372 = vld [vmem:[%s367 + $0x20] sm:$0xff]
  %v373 = vld [vmem:[%s367 + $0x28] sm:$0xff]
  %v374 = vld [vmem:[%s367 + $0x30] sm:$0xff]
  %v375 = vld [vmem:[%s367 + $0x38] sm:$0xff]
  %s376 = scalar_lea.vmem %s3, 128
  %v377 = vld [vmem:[%s376] sm:$0xff]
  %v378 = vld [vmem:[%s376 + $0x8] sm:$0xff]
  %v379 = vld [vmem:[%s376 + $0x10] sm:$0xff]
  %v380 = vld [vmem:[%s376 + $0x18] sm:$0xff]
  %v381 = vld [vmem:[%s376 + $0x20] sm:$0xff]
  %v382 = vld [vmem:[%s376 + $0x28] sm:$0xff]
  %v383 = vld [vmem:[%s376 + $0x30] sm:$0xff]
  %v384 = vld [vmem:[%s376 + $0x38] sm:$0xff]
  %vm385 = vcmask 261120
  %v387 = vsel %vm385, %v49, 0
  %v390 = vsel %vm385, %v50, 0
  %v393 = vsel %vm385, %v51, 0
  %v396 = vsel %vm385, %v52, 0
  %398 = vmatprep.subr.mxu0 0.0
  %399 = vmatpush1.msra.mxu0 %v29
  %400 = vmatprep.subr.mxu0 0.0
  %401 = vmatpush1.msra.mxu0 %v30
  %402 = vmatprep.subr.mxu0 0.0
  %403 = vmatpush1.msra.mxu0 %v31
  %404 = vmatprep.subr.mxu0 0.0
  %405 = vmatpush1.msra.mxu0 %v32
  %406 = vmatprep.subr.mxu0 0.0
  %407 = vmatpush1.msra.mxu0 0.0
  %408 = vmatprep.subr.mxu0 0.0
  %409 = vmatpush1.msra.mxu0 0.0
  %410 = vmatprep.subr.mxu0 0.0
  %411 = vmatpush1.msra.mxu0 0.0
  %412 = vmatprep.subr.mxu0 0.0
  %413 = vmatpush1.msra.mxu0 0.0
  %414 = vmatprep.subr.mxu0 0.0
  %415 = vmatpush1.msra.mxu0 0.0
  %416 = vmatprep.subr.mxu0 0.0
  %417 = vmatpush1.msra.mxu0 0.0
  %418 = vmatprep.subr.mxu0 0.0
  %419 = vmatpush1.msra.mxu0 0.0
  %420 = vmatprep.subr.mxu0 0.0
  %421 = vmatpush1.msra.mxu0 0.0
  %422 = vmatprep.subr.mxu0 0.0
  %423 = vmatpush1.msra.mxu0 0.0
  %424 = vmatprep.subr.mxu0 0.0
  %425 = vmatpush1.msra.mxu0 0.0
  %426 = vmatprep.subr.mxu0 0.0
  %427 = vmatpush1.msra.mxu0 0.0
  %428 = vmatprep.subr.mxu0 0.0
  %429 = vmatpush1.msra.mxu0 0.0
  %430 = vmatprep.subr.mxu0 0.0
  %431 = vmatpush1.msra.mxu0 0.0
  %432 = vmatprep.subr.mxu0 0.0
  %433 = vmatpush1.msra.mxu0 0.0
  %434 = vmatprep.subr.mxu0 0.0
  %435 = vmatpush1.msra.mxu0 0.0
  %436 = vmatprep.subr.mxu0 0.0
  %437 = vmatpush1.msra.mxu0 0.0
  %438 = vmatprep.subr.mxu0 0.0
  %439 = vmatpush1.msra.mxu0 0.0
  %440 = vmatprep.subr.mxu0 0.0
  %441 = vmatpush1.msra.mxu0 0.0
  %442 = vmatprep.subr.mxu0 0.0
  %443 = vmatpush1.msra.mxu0 0.0
  %444 = vmatprep.subr.mxu0 0.0
  %445 = vmatpush1.msra.mxu0 0.0
  %446 = vmatprep.subr.mxu0 0.0
  %447 = vmatpush1.msra.mxu0 0.0
  %448 = vmatprep.subr.mxu0 0.0
  %449 = vmatpush1.msra.mxu0 0.0
  %450 = vmatprep.subr.mxu0 0.0
  %451 = vmatpush1.msra.mxu0 0.0
  %452 = vmatprep.subr.mxu0 0.0
  %453 = vmatpush1.msra.mxu0 0.0
  %454 = vmatprep.subr.mxu0 0.0
  %455 = vmatpush1.msra.mxu0 0.0
  %456 = vmatprep.subr.mxu0 0.0
  %457 = vmatpush1.msra.mxu0 0.0
  %458 = vmatprep.subr.mxu0 0.0
  %459 = vmatpush1.msra.mxu0 0.0
  %460 = vmatprep.subr.mxu0 0.0
  %461 = vmatpush1.msra.mxu0 0.0
  %462 = vmatprep.mubr.f32.mxu0 0.0
  %463 = vmatmul.mubr.f32.gmra.mrb[0].mxu0 %v387
  %v464 = vpop.f32.mrb[0].mxu0
  %v465 = vadd.f32 0.0, %v464
  %v466 = vpop.f32.mrb[0].mxu0
  %467 = vmatprep.mubr.f32.mxu0 0.0
  %468 = vmatmul.mubr.f32.gmra.mrb[0].mxu0 %v390
  %v469 = vpop.f32.mrb[0].mxu0
  %v470 = vadd.f32 0.0, %v469
  %v471 = vpop.f32.mrb[0].mxu0
  %472 = vmatprep.mubr.f32.mxu0 0.0
  %473 = vmatmul.mubr.f32.gmra.mrb[0].mxu0 %v393
  %v474 = vpop.f32.mrb[0].mxu0
  %v475 = vadd.f32 0.0, %v474
  %v476 = vpop.f32.mrb[0].mxu0
  %477 = vmatprep.mubr.f32.mxu0 0.0
  %478 = vmatmul.mubr.f32.gmra.mrb[0].mxu0 %v396
  %v479 = vpop.f32.mrb[0].mxu0
  %v480 = vadd.f32 0.0, %v479
  %v481 = vpop.f32.mrb[0].mxu0
  %482 = vdwg.mxu0
  %483 = vmatprep.subr.mxu0 0.0
  %484 = vmatpush1.msra.mxu0 %v368
  %485 = vmatprep.subr.mxu0 0.0
  %486 = vmatpush1.msra.mxu0 %v369
  %487 = vmatprep.subr.mxu0 0.0
  %488 = vmatpush1.msra.mxu0 %v370
  %489 = vmatprep.subr.mxu0 0.0
  %490 = vmatpush1.msra.mxu0 %v371
  %491 = vmatprep.subr.mxu0 0.0
  %492 = vmatpush1.msra.mxu0 %v372
  %493 = vmatprep.subr.mxu0 0.0
  %494 = vmatpush1.msra.mxu0 %v373
  %495 = vmatprep.subr.mxu0 0.0
  %496 = vmatpush1.msra.mxu0 %v374
  %497 = vmatprep.subr.mxu0 0.0
  %498 = vmatpush1.msra.mxu0 %v375
  %499 = vmatprep.subr.mxu0 0.0
  %500 = vmatpush1.msra.mxu0 0.0
  %501 = vmatprep.subr.mxu0 0.0
  %502 = vmatpush1.msra.mxu0 0.0
  %503 = vmatprep.subr.mxu0 0.0
  %504 = vmatpush1.msra.mxu0 0.0
  %505 = vmatprep.subr.mxu0 0.0
  %506 = vmatpush1.msra.mxu0 0.0
  %507 = vmatprep.subr.mxu0 0.0
  %508 = vmatpush1.msra.mxu0 0.0
  %509 = vmatprep.subr.mxu0 0.0
  %510 = vmatpush1.msra.mxu0 0.0
  %511 = vmatprep.subr.mxu0 0.0
  %512 = vmatpush1.msra.mxu0 0.0
  %513 = vmatprep.subr.mxu0 0.0
  %514 = vmatpush1.msra.mxu0 0.0
  %515 = vmatprep.subr.mxu0 0.0
  %516 = vmatpush1.msra.mxu0 0.0
  %517 = vmatprep.subr.mxu0 0.0
  %518 = vmatpush1.msra.mxu0 0.0
  %519 = vmatprep.subr.mxu0 0.0
  %520 = vmatpush1.msra.mxu0 0.0
  %521 = vmatprep.subr.mxu0 0.0
  %522 = vmatpush1.msra.mxu0 0.0
  %523 = vmatprep.subr.mxu0 0.0
  %524 = vmatpush1.msra.mxu0 0.0
  %525 = vmatprep.subr.mxu0 0.0
  %526 = vmatpush1.msra.mxu0 0.0
  %527 = vmatprep.subr.mxu0 0.0
  %528 = vmatpush1.msra.mxu0 0.0
  %529 = vmatprep.subr.mxu0 0.0
  %530 = vmatpush1.msra.mxu0 0.0
  %531 = vmatprep.subr.mxu0 0.0
  %532 = vmatpush1.msra.mxu0 0.0
  %533 = vmatprep.subr.mxu0 0.0
  %534 = vmatpush1.msra.mxu0 0.0
  %535 = vmatprep.subr.mxu0 0.0
  %536 = vmatpush1.msra.mxu0 0.0
  %537 = vmatprep.subr.mxu0 0.0
  %538 = vmatpush1.msra.mxu0 0.0
  %539 = vmatprep.subr.mxu0 0.0
  %540 = vmatpush1.msra.mxu0 0.0
  %541 = vmatprep.subr.mxu0 0.0
  %542 = vmatpush1.msra.mxu0 0.0
  %543 = vmatprep.subr.mxu0 0.0
  %544 = vmatpush1.msra.mxu0 0.0
  %545 = vmatprep.subr.mxu0 0.0
  %546 = vmatpush1.msra.mxu0 0.0
  %547 = vmatprep.mubr.f32.mxu0 0.0
  %548 = vmatmul.mubr.f32.gmra.mrb[0].mxu0 %v69
  %v549 = vpop.f32.mrb[0].mxu0
  %v550 = vadd.f32 0.0, %v549
  %v551 = vpop.f32.mrb[0].mxu0
  %552 = vmatprep.mubr.f32.mxu0 0.0
  %553 = vmatmul.mubr.f32.gmra.mrb[0].mxu0 %v72
  %v554 = vpop.f32.mrb[0].mxu0
  %v555 = vadd.f32 0.0, %v554
  %v556 = vpop.f32.mrb[0].mxu0
  %557 = vmatprep.mubr.f32.mxu0 0.0
  %558 = vmatmul.mubr.f32.gmra.mrb[0].mxu0 %v75
  %v559 = vpop.f32.mrb[0].mxu0
  %v560 = vadd.f32 0.0, %v559
  %v561 = vpop.f32.mrb[0].mxu0
  %562 = vmatprep.mubr.f32.mxu0 0.0
  %563 = vmatmul.mubr.f32.gmra.mrb[0].mxu0 %v78
  %v564 = vpop.f32.mrb[0].mxu0
  %v565 = vadd.f32 0.0, %v564
  %v566 = vpop.f32.mrb[0].mxu0
  %567 = vdwg.mxu0
  %v569 = vsel %vm67, %v465, 0
  %v572 = vsel %vm67, %v470, 0
  %v575 = vsel %vm67, %v475, 0
  %v578 = vsel %vm67, %v480, 0
  %580 = vmatprep.subr.mxu0 0.0
  %581 = vmatpush1.msra.mxu0 %v359
  %582 = vmatprep.subr.mxu0 0.0
  %583 = vmatpush1.msra.mxu0 %v360
  %584 = vmatprep.subr.mxu0 0.0
  %585 = vmatpush1.msra.mxu0 %v361
  %586 = vmatprep.subr.mxu0 0.0
  %587 = vmatpush1.msra.mxu0 %v362
  %588 = vmatprep.subr.mxu0 0.0
  %589 = vmatpush1.msra.mxu0 %v363
  %590 = vmatprep.subr.mxu0 0.0
  %591 = vmatpush1.msra.mxu0 %v364
  %592 = vmatprep.subr.mxu0 0.0
  %593 = vmatpush1.msra.mxu0 %v365
  %594 = vmatprep.subr.mxu0 0.0
  %595 = vmatpush1.msra.mxu0 %v366
  %596 = vmatprep.subr.mxu0 0.0
  %597 = vmatpush1.msra.mxu0 0.0
  %598 = vmatprep.subr.mxu0 0.0
  %599 = vmatpush1.msra.mxu0 0.0
  %600 = vmatprep.subr.mxu0 0.0
  %601 = vmatpush1.msra.mxu0 0.0
  %602 = vmatprep.subr.mxu0 0.0
  %603 = vmatpush1.msra.mxu0 0.0
  %604 = vmatprep.subr.mxu0 0.0
  %605 = vmatpush1.msra.mxu0 0.0
  %606 = vmatprep.subr.mxu0 0.0
  %607 = vmatpush1.msra.mxu0 0.0
  %608 = vmatprep.subr.mxu0 0.0
  %609 = vmatpush1.msra.mxu0 0.0
  %610 = vmatprep.subr.mxu0 0.0
  %611 = vmatpush1.msra.mxu0 0.0
  %612 = vmatprep.subr.mxu0 0.0
  %613 = vmatpush1.msra.mxu0 0.0
  %614 = vmatprep.subr.mxu0 0.0
  %615 = vmatpush1.msra.mxu0 0.0
  %616 = vmatprep.subr.mxu0 0.0
  %617 = vmatpush1.msra.mxu0 0.0
  %618 = vmatprep.subr.mxu0 0.0
  %619 = vmatpush1.msra.mxu0 0.0
  %620 = vmatprep.subr.mxu0 0.0
  %621 = vmatpush1.msra.mxu0 0.0
  %622 = vmatprep.subr.mxu0 0.0
  %623 = vmatpush1.msra.mxu0 0.0
  %624 = vmatprep.subr.mxu0 0.0
  %625 = vmatpush1.msra.mxu0 0.0
  %626 = vmatprep.subr.mxu0 0.0
  %627 = vmatpush1.msra.mxu0 0.0
  %628 = vmatprep.subr.mxu0 0.0
  %629 = vmatpush1.msra.mxu0 0.0
  %630 = vmatprep.subr.mxu0 0.0
  %631 = vmatpush1.msra.mxu0 0.0
  %632 = vmatprep.subr.mxu0 0.0
  %633 = vmatpush1.msra.mxu0 0.0
  %634 = vmatprep.subr.mxu0 0.0
  %635 = vmatpush1.msra.mxu0 0.0
  %636 = vmatprep.subr.mxu0 0.0
  %637 = vmatpush1.msra.mxu0 0.0
  %638 = vmatprep.subr.mxu0 0.0
  %639 = vmatpush1.msra.mxu0 0.0
  %640 = vmatprep.subr.mxu0 0.0
  %641 = vmatpush1.msra.mxu0 0.0
  %642 = vmatprep.subr.mxu0 0.0
  %643 = vmatpush1.msra.mxu0 0.0
  %644 = vmatprep.mubr.f32.mxu0 0.0
  %645 = vmatmul.mubr.f32.gmra.mrb[0].mxu0 %v569
  %v646 = vpop.f32.mrb[0].mxu0
  %v647 = vadd.f32 %v550, %v646
  %v648 = vpop.f32.mrb[0].mxu0
  %649 = vmatprep.mubr.f32.mxu0 0.0
  %650 = vmatmul.mubr.f32.gmra.mrb[0].mxu0 %v572
  %v651 = vpop.f32.mrb[0].mxu0
  %v652 = vadd.f32 %v555, %v651
  %v653 = vpop.f32.mrb[0].mxu0
  %654 = vmatprep.mubr.f32.mxu0 0.0
  %655 = vmatmul.mubr.f32.gmra.mrb[0].mxu0 %v575
  %v656 = vpop.f32.mrb[0].mxu0
  %v657 = vadd.f32 %v560, %v656
  %v658 = vpop.f32.mrb[0].mxu0
  %659 = vmatprep.mubr.f32.mxu0 0.0
  %660 = vmatmul.mubr.f32.gmra.mrb[0].mxu0 %v578
  %v661 = vpop.f32.mrb[0].mxu0
  %v662 = vadd.f32 %v565, %v661
  %v663 = vpop.f32.mrb[0].mxu0
  %664 = vdwg.mxu0
  %v666 = vsel %vm385, %v54, 0
  %v669 = vsel %vm385, %v55, 0
  %v672 = vsel %vm385, %v56, 0
  %v675 = vsel %vm385, %v57, 0
  %677 = vmatprep.subr.mxu0 0.0
  %678 = vmatpush1.msra.mxu0 %v29
  %679 = vmatprep.subr.mxu0 0.0
  %680 = vmatpush1.msra.mxu0 %v30
  %681 = vmatprep.subr.mxu0 0.0
  %682 = vmatpush1.msra.mxu0 %v31
  %683 = vmatprep.subr.mxu0 0.0
  %684 = vmatpush1.msra.mxu0 %v32
  %685 = vmatprep.subr.mxu0 0.0
  %686 = vmatpush1.msra.mxu0 0.0
  %687 = vmatprep.subr.mxu0 0.0
  %688 = vmatpush1.msra.mxu0 0.0
  %689 = vmatprep.subr.mxu0 0.0
  %690 = vmatpush1.msra.mxu0 0.0
  %691 = vmatprep.subr.mxu0 0.0
  %692 = vmatpush1.msra.mxu0 0.0
  %693 = vmatprep.subr.mxu0 0.0
  %694 = vmatpush1.msra.mxu0 0.0
  %695 = vmatprep.subr.mxu0 0.0
  %696 = vmatpush1.msra.mxu0 0.0
  %697 = vmatprep.subr.mxu0 0.0
  %698 = vmatpush1.msra.mxu0 0.0
  %699 = vmatprep.subr.mxu0 0.0
  %700 = vmatpush1.msra.mxu0 0.0
  %701 = vmatprep.subr.mxu0 0.0
  %702 = vmatpush1.msra.mxu0 0.0
  %703 = vmatprep.subr.mxu0 0.0
  %704 = vmatpush1.msra.mxu0 0.0
  %705 = vmatprep.subr.mxu0 0.0
  %706 = vmatpush1.msra.mxu0 0.0
  %707 = vmatprep.subr.mxu0 0.0
  %708 = vmatpush1.msra.mxu0 0.0
  %709 = vmatprep.subr.mxu0 0.0
  %710 = vmatpush1.msra.mxu0 0.0
  %711 = vmatprep.subr.mxu0 0.0
  %712 = vmatpush1.msra.mxu0 0.0
  %713 = vmatprep.subr.mxu0 0.0
  %714 = vmatpush1.msra.mxu0 0.0
  %715 = vmatprep.subr.mxu0 0.0
  %716 = vmatpush1.msra.mxu0 0.0
  %717 = vmatprep.subr.mxu0 0.0
  %718 = vmatpush1.msra.mxu0 0.0
  %719 = vmatprep.subr.mxu0 0.0
  %720 = vmatpush1.msra.mxu0 0.0
  %721 = vmatprep.subr.mxu0 0.0
  %722 = vmatpush1.msra.mxu0 0.0
  %723 = vmatprep.subr.mxu0 0.0
  %724 = vmatpush1.msra.mxu0 0.0
  %725 = vmatprep.subr.mxu0 0.0
  %726 = vmatpush1.msra.mxu0 0.0
  %727 = vmatprep.subr.mxu0 0.0
  %728 = vmatpush1.msra.mxu0 0.0
  %729 = vmatprep.subr.mxu0 0.0
  %730 = vmatpush1.msra.mxu0 0.0
  %731 = vmatprep.subr.mxu0 0.0
  %732 = vmatpush1.msra.mxu0 0.0
  %733 = vmatprep.subr.mxu0 0.0
  %734 = vmatpush1.msra.mxu0 0.0
  %735 = vmatprep.subr.mxu0 0.0
  %736 = vmatpush1.msra.mxu0 0.0
  %737 = vmatprep.subr.mxu0 0.0
  %738 = vmatpush1.msra.mxu0 0.0
  %739 = vmatprep.subr.mxu0 0.0
  %740 = vmatpush1.msra.mxu0 0.0
  %741 = vmatprep.mubr.f32.mxu0 0.0
  %742 = vmatmul.mubr.f32.gmra.mrb[0].mxu0 %v666
  %v743 = vpop.f32.mrb[0].mxu0
  %v744 = vadd.f32 0.0, %v743
  %v745 = vpop.f32.mrb[0].mxu0
  %746 = vmatprep.mubr.f32.mxu0 0.0
  %747 = vmatmul.mubr.f32.gmra.mrb[0].mxu0 %v669
  %v748 = vpop.f32.mrb[0].mxu0
  %v749 = vadd.f32 0.0, %v748
  %v750 = vpop.f32.mrb[0].mxu0
  %751 = vmatprep.mubr.f32.mxu0 0.0
  %752 = vmatmul.mubr.f32.gmra.mrb[0].mxu0 %v672
  %v753 = vpop.f32.mrb[0].mxu0
  %v754 = vadd.f32 0.0, %v753
  %v755 = vpop.f32.mrb[0].mxu0
  %756 = vmatprep.mubr.f32.mxu0 0.0
  %757 = vmatmul.mubr.f32.gmra.mrb[0].mxu0 %v675
  %v758 = vpop.f32.mrb[0].mxu0
  %v759 = vadd.f32 0.0, %v758
  %v760 = vpop.f32.mrb[0].mxu0
  %761 = vdwg.mxu0
  %v763 = vsel %vm67, %v744, 0
  %v766 = vsel %vm67, %v749, 0
  %v769 = vsel %vm67, %v754, 0
  %v772 = vsel %vm67, %v759, 0
  %774 = vmatprep.subr.mxu0 0.0
  %775 = vmatpush1.msra.mxu0 %v377
  %776 = vmatprep.subr.mxu0 0.0
  %777 = vmatpush1.msra.mxu0 %v378
  %778 = vmatprep.subr.mxu0 0.0
  %779 = vmatpush1.msra.mxu0 %v379
  %780 = vmatprep.subr.mxu0 0.0
  %781 = vmatpush1.msra.mxu0 %v380
  %782 = vmatprep.subr.mxu0 0.0
  %783 = vmatpush1.msra.mxu0 %v381
  %784 = vmatprep.subr.mxu0 0.0
  %785 = vmatpush1.msra.mxu0 %v382
  %786 = vmatprep.subr.mxu0 0.0
  %787 = vmatpush1.msra.mxu0 %v383
  %788 = vmatprep.subr.mxu0 0.0
  %789 = vmatpush1.msra.mxu0 %v384
  %790 = vmatprep.subr.mxu0 0.0
  %791 = vmatpush1.msra.mxu0 0.0
  %792 = vmatprep.subr.mxu0 0.0
  %793 = vmatpush1.msra.mxu0 0.0
  %794 = vmatprep.subr.mxu0 0.0
  %795 = vmatpush1.msra.mxu0 0.0
  %796 = vmatprep.subr.mxu0 0.0
  %797 = vmatpush1.msra.mxu0 0.0
  %798 = vmatprep.subr.mxu0 0.0
  %799 = vmatpush1.msra.mxu0 0.0
  %800 = vmatprep.subr.mxu0 0.0
  %801 = vmatpush1.msra.mxu0 0.0
  %802 = vmatprep.subr.mxu0 0.0
  %803 = vmatpush1.msra.mxu0 0.0
  %804 = vmatprep.subr.mxu0 0.0
  %805 = vmatpush1.msra.mxu0 0.0
  %806 = vmatprep.subr.mxu0 0.0
  %807 = vmatpush1.msra.mxu0 0.0
  %808 = vmatprep.subr.mxu0 0.0
  %809 = vmatpush1.msra.mxu0 0.0
  %810 = vmatprep.subr.mxu0 0.0
  %811 = vmatpush1.msra.mxu0 0.0
  %812 = vmatprep.subr.mxu0 0.0
  %813 = vmatpush1.msra.mxu0 0.0
  %814 = vmatprep.subr.mxu0 0.0
  %815 = vmatpush1.msra.mxu0 0.0
  %816 = vmatprep.subr.mxu0 0.0
  %817 = vmatpush1.msra.mxu0 0.0
  %818 = vmatprep.subr.mxu0 0.0
  %819 = vmatpush1.msra.mxu0 0.0
  %820 = vmatprep.subr.mxu0 0.0
  %821 = vmatpush1.msra.mxu0 0.0
  %822 = vmatprep.subr.mxu0 0.0
  %823 = vmatpush1.msra.mxu0 0.0
  %824 = vmatprep.subr.mxu0 0.0
  %825 = vmatpush1.msra.mxu0 0.0
  %826 = vmatprep.subr.mxu0 0.0
  %827 = vmatpush1.msra.mxu0 0.0
  %828 = vmatprep.subr.mxu0 0.0
  %829 = vmatpush1.msra.mxu0 0.0
  %830 = vmatprep.subr.mxu0 0.0
  %831 = vmatpush1.msra.mxu0 0.0
  %832 = vmatprep.subr.mxu0 0.0
  %833 = vmatpush1.msra.mxu0 0.0
  %834 = vmatprep.subr.mxu0 0.0
  %835 = vmatpush1.msra.mxu0 0.0
  %836 = vmatprep.subr.mxu0 0.0
  %837 = vmatpush1.msra.mxu0 0.0
  %838 = vmatprep.mubr.f32.mxu0 0.0
  %839 = vmatmul.mubr.f32.gmra.mrb[0].mxu0 %v763
  %v840 = vpop.f32.mrb[0].mxu0
  %v841 = vadd.f32 0.0, %v840
  %v842 = vpop.f32.mrb[0].mxu0
  %843 = vmatprep.mubr.f32.mxu0 0.0
  %844 = vmatmul.mubr.f32.gmra.mrb[0].mxu0 %v766
  %v845 = vpop.f32.mrb[0].mxu0
  %v846 = vadd.f32 0.0, %v845
  %v847 = vpop.f32.mrb[0].mxu0
  %848 = vmatprep.mubr.f32.mxu0 0.0
  %849 = vmatmul.mubr.f32.gmra.mrb[0].mxu0 %v769
  %v850 = vpop.f32.mrb[0].mxu0
  %v851 = vadd.f32 0.0, %v850
  %v852 = vpop.f32.mrb[0].mxu0
  %853 = vmatprep.mubr.f32.mxu0 0.0
  %854 = vmatmul.mubr.f32.gmra.mrb[0].mxu0 %v772
  %v855 = vpop.f32.mrb[0].mxu0
  %v856 = vadd.f32 0.0, %v855
  %v857 = vpop.f32.mrb[0].mxu0
  %858 = vdwg.mxu0
  %v859 = vadd.f32 %v647, %v841
  %v860 = vadd.f32 %v652, %v846
  %v861 = vadd.f32 %v657, %v851
  %v862 = vadd.f32 %v662, %v856
  %v863 = vadd.f32 %v859, %v860
  %v864 = vadd.f32 %v863, %v861
  %v865 = vadd.f32 %v864, %v862
  %v866 = vrot.slane %v865, 4
  %v867 = vadd.f32 %v865, %v866
  %v868 = vrot.slane %v867, 2
  %v869 = vadd.f32 %v867, %v868
  %v870 = vrot.slane %v869, 1
  %v871 = vadd.f32 %v869, %v870
  %v872 = vmul.f32 %v859, %v859
  %v873 = vmul.f32 %v860, %v860
  %v874 = vmul.f32 %v861, %v861
  %v875 = vmul.f32 %v862, %v862
  %v876 = vadd.f32 %v872, %v873
  %v877 = vadd.f32 %v876, %v874
  %v878 = vadd.f32 %v877, %v875
  %v879 = vrot.slane %v878, 4
  %v880 = vadd.f32 %v878, %v879
  %v881 = vrot.slane %v880, 2
  %v882 = vadd.f32 %v880, %v881
  %v883 = vrot.slane %v882, 1
  %v884 = vadd.f32 %v882, %v883
  %885 = vmatprep.subr.mxu0 0.0
  %886 = vmatpush1.msra.mxu0 %v33
  %887 = vmatprep.subr.mxu0 0.0
  %888 = vmatpush1.msra.mxu0 %v34
  %889 = vmatprep.subr.mxu0 0.0
  %890 = vmatpush1.msra.mxu0 %v35
  %891 = vmatprep.subr.mxu0 0.0
  %892 = vmatpush1.msra.mxu0 %v36
  %893 = vmatprep.subr.mxu0 0.0
  %894 = vmatpush1.msra.mxu0 %v37
  %895 = vmatprep.subr.mxu0 0.0
  %896 = vmatpush1.msra.mxu0 %v38
  %897 = vmatprep.subr.mxu0 0.0
  %898 = vmatpush1.msra.mxu0 %v39
  %899 = vmatprep.subr.mxu0 0.0
  %900 = vmatpush1.msra.mxu0 %v40
  %901 = vmatprep.subr.mxu0 0.0
  %902 = vmatpush1.msra.mxu0 %v41
  %903 = vmatprep.subr.mxu0 0.0
  %904 = vmatpush1.msra.mxu0 %v42
  %905 = vmatprep.subr.mxu0 0.0
  %906 = vmatpush1.msra.mxu0 %v43
  %907 = vmatprep.subr.mxu0 0.0
  %908 = vmatpush1.msra.mxu0 %v44
  %909 = vmatprep.subr.mxu0 0.0
  %910 = vmatpush1.msra.mxu0 %v45
  %911 = vmatprep.subr.mxu0 0.0
  %912 = vmatpush1.msra.mxu0 %v46
  %913 = vmatprep.subr.mxu0 0.0
  %914 = vmatpush1.msra.mxu0 %v47
  %915 = vmatprep.subr.mxu0 0.0
  %916 = vmatpush1.msra.mxu0 %v48
  %917 = vmatprep.subr.mxu0 0.0
  %918 = vmatpush1.msra.mxu0 0.0
  %919 = vmatprep.subr.mxu0 0.0
  %920 = vmatpush1.msra.mxu0 0.0
  %921 = vmatprep.subr.mxu0 0.0
  %922 = vmatpush1.msra.mxu0 0.0
  %923 = vmatprep.subr.mxu0 0.0
  %924 = vmatpush1.msra.mxu0 0.0
  %925 = vmatprep.subr.mxu0 0.0
  %926 = vmatpush1.msra.mxu0 0.0
  %927 = vmatprep.subr.mxu0 0.0
  %928 = vmatpush1.msra.mxu0 0.0
  %929 = vmatprep.subr.mxu0 0.0
  %930 = vmatpush1.msra.mxu0 0.0
  %931 = vmatprep.subr.mxu0 0.0
  %932 = vmatpush1.msra.mxu0 0.0
  %933 = vmatprep.subr.mxu0 0.0
  %934 = vmatpush1.msra.mxu0 0.0
  %935 = vmatprep.subr.mxu0 0.0
  %936 = vmatpush1.msra.mxu0 0.0
  %937 = vmatprep.subr.mxu0 0.0
  %938 = vmatpush1.msra.mxu0 0.0
  %939 = vmatprep.subr.mxu0 0.0
  %940 = vmatpush1.msra.mxu0 0.0
  %941 = vmatprep.subr.mxu0 0.0
  %942 = vmatpush1.msra.mxu0 0.0
  %943 = vmatprep.subr.mxu0 0.0
  %944 = vmatpush1.msra.mxu0 0.0
  %945 = vmatprep.subr.mxu0 0.0
  %946 = vmatpush1.msra.mxu0 0.0
  %947 = vmatprep.subr.mxu0 0.0
  %948 = vmatpush1.msra.mxu0 0.0
  %949 = vmatprep.mubr.f32.mxu0 0.0
  %950 = vmatmul.mubr.f32.gmra.mrb[0].mxu0 %v871
  %v951 = vpop.f32.mrb[0].mxu0
  %v952 = vadd.f32 0.0, %v951
  %v953 = vpop.f32.mrb[0].mxu0
  %954 = vdwg.mxu0
  %955 = vmatprep.subr.mxu0 0.0
  %956 = vmatpush1.msra.mxu0 %v33
  %957 = vmatprep.subr.mxu0 0.0
  %958 = vmatpush1.msra.mxu0 %v34
  %959 = vmatprep.subr.mxu0 0.0
  %960 = vmatpush1.msra.mxu0 %v35
  %961 = vmatprep.subr.mxu0 0.0
  %962 = vmatpush1.msra.mxu0 %v36
  %963 = vmatprep.subr.mxu0 0.0
  %964 = vmatpush1.msra.mxu0 %v37
  %965 = vmatprep.subr.mxu0 0.0
  %966 = vmatpush1.msra.mxu0 %v38
  %967 = vmatprep.subr.mxu0 0.0
  %968 = vmatpush1.msra.mxu0 %v39
  %969 = vmatprep.subr.mxu0 0.0
  %970 = vmatpush1.msra.mxu0 %v40
  %971 = vmatprep.subr.mxu0 0.0
  %972 = vmatpush1.msra.mxu0 %v41
  %973 = vmatprep.subr.mxu0 0.0
  %974 = vmatpush1.msra.mxu0 %v42
  %975 = vmatprep.subr.mxu0 0.0
  %976 = vmatpush1.msra.mxu0 %v43
  %977 = vmatprep.subr.mxu0 0.0
  %978 = vmatpush1.msra.mxu0 %v44
  %979 = vmatprep.subr.mxu0 0.0
  %980 = vmatpush1.msra.mxu0 %v45
  %981 = vmatprep.subr.mxu0 0.0
  %982 = vmatpush1.msra.mxu0 %v46
  %983 = vmatprep.subr.mxu0 0.0
  %984 = vmatpush1.msra.mxu0 %v47
  %985 = vmatprep.subr.mxu0 0.0
  %986 = vmatpush1.msra.mxu0 %v48
  %987 = vmatprep.subr.mxu0 0.0
  %988 = vmatpush1.msra.mxu0 0.0
  %989 = vmatprep.subr.mxu0 0.0
  %990 = vmatpush1.msra.mxu0 0.0
  %991 = vmatprep.subr.mxu0 0.0
  %992 = vmatpush1.msra.mxu0 0.0
  %993 = vmatprep.subr.mxu0 0.0
  %994 = vmatpush1.msra.mxu0 0.0
  %995 = vmatprep.subr.mxu0 0.0
  %996 = vmatpush1.msra.mxu0 0.0
  %997 = vmatprep.subr.mxu0 0.0
  %998 = vmatpush1.msra.mxu0 0.0
  %999 = vmatprep.subr.mxu0 0.0
  %1000 = vmatpush1.msra.mxu0 0.0
  %1001 = vmatprep.subr.mxu0 0.0
  %1002 = vmatpush1.msra.mxu0 0.0
  %1003 = vmatprep.subr.mxu0 0.0
  %1004 = vmatpush1.msra.mxu0 0.0
  %1005 = vmatprep.subr.mxu0 0.0
  %1006 = vmatpush1.msra.mxu0 0.0
  %1007 = vmatprep.subr.mxu0 0.0
  %1008 = vmatpush1.msra.mxu0 0.0
  %1009 = vmatprep.subr.mxu0 0.0
  %1010 = vmatpush1.msra.mxu0 0.0
  %1011 = vmatprep.subr.mxu0 0.0
  %1012 = vmatpush1.msra.mxu0 0.0
  %1013 = vmatprep.subr.mxu0 0.0
  %1014 = vmatpush1.msra.mxu0 0.0
  %1015 = vmatprep.subr.mxu0 0.0
  %1016 = vmatpush1.msra.mxu0 0.0
  %1017 = vmatprep.subr.mxu0 0.0
  %1018 = vmatpush1.msra.mxu0 0.0
  %1019 = vmatprep.mubr.f32.mxu0 0.0
  %1020 = vmatmul.mubr.f32.gmra.mrb[0].mxu0 %v884
  %v1021 = vpop.f32.mrb[0].mxu0
  %v1022 = vadd.f32 0.0, %v1021
  %v1023 = vpop.f32.mrb[0].mxu0
  %1024 = vdwg.mxu0
  %v1025 = vmul.f32 %v952, %v952
  %v1026 = vsub.f32 %v1022, %v1025
  %v1027 = vmax.f32 %v1026, 0.0
  %v1028 = vld [vmem:[%s6] sm:$0x1]
  %v1029 = vadd.f32 %v1027, 1e-05
  %v1030 = vrsqrt.pop %v1029
  %v1031 = vmul.f32 %v1028, %v1030
  %v1032 = vld [vmem:[%s7] sm:$0x1]
  %v1033 = vmul.f32 %v952, %v1031
  %v1034 = vsub.f32 %v1032, %v1033
  %v1036 = vlaneseq
  %v1037 = vshrl.u32 %v1036, 7
  %v1038 = vsub.s32 0, %v1037
  %v1039 = vrot.slane %v1031, %v1038
  %v1041 = vmul.f32 %v859, %v1039
  %v1042 = vmul.f32 %v860, %v1039
  %v1043 = vmul.f32 %v861, %v1039
  %v1044 = vmul.f32 %v862, %v1039
  %v1046 = vlaneseq
  %v1047 = vshrl.u32 %v1046, 7
  %v1048 = vsub.s32 0, %v1047
  %v1049 = vrot.slane %v1034, %v1048
  %v1051 = vadd.f32 %v1041, %v1049
  %v1052 = vadd.f32 %v1042, %v1049
  %v1053 = vadd.f32 %v1043, %v1049
  %v1054 = vadd.f32 %v1044, %v1049
  %v1055 = vmax.f32 %v1051, 0.0
  %v1056 = vmax.f32 %v1052, 0.0
  %v1057 = vmax.f32 %v1053, 0.0
  %v1058 = vmax.f32 %v1054, 0.0
  %v1059 = vld [vmem:[%s4] sm:$0xff]
  %v1060 = vld [vmem:[%s4 + $0x8] sm:$0xff]
  %v1061 = vld [vmem:[%s4 + $0x10] sm:$0xff]
  %v1062 = vld [vmem:[%s4 + $0x18] sm:$0xff]
  %v1063 = vld [vmem:[%s4 + $0x20] sm:$0xff]
  %v1064 = vld [vmem:[%s4 + $0x28] sm:$0xff]
  %v1065 = vld [vmem:[%s4 + $0x30] sm:$0xff]
  %v1066 = vld [vmem:[%s4 + $0x38] sm:$0xff]
  %v1067 = vld [vmem:[%s4 + $0x40] sm:$0xff]
  %v1068 = vld [vmem:[%s4 + $0x48] sm:$0xff]
  %v1069 = vld [vmem:[%s4 + $0x50] sm:$0xff]
  %v1070 = vld [vmem:[%s4 + $0x58] sm:$0xff]
  %v1071 = vld [vmem:[%s4 + $0x60] sm:$0xff]
  %v1072 = vld [vmem:[%s4 + $0x68] sm:$0xff]
  %v1073 = vld [vmem:[%s4 + $0x70] sm:$0xff]
  %v1074 = vld [vmem:[%s4 + $0x78] sm:$0xff]
  %s1075 = scalar_lea.vmem %s4, 128
  %v1076 = vld [vmem:[%s1075] sm:$0xff]
  %v1077 = vld [vmem:[%s1075 + $0x8] sm:$0xff]
  %v1078 = vld [vmem:[%s1075 + $0x10] sm:$0xff]
  %v1079 = vld [vmem:[%s1075 + $0x18] sm:$0xff]
  %v1080 = vld [vmem:[%s1075 + $0x20] sm:$0xff]
  %v1081 = vld [vmem:[%s1075 + $0x28] sm:$0xff]
  %v1082 = vld [vmem:[%s1075 + $0x30] sm:$0xff]
  %v1083 = vld [vmem:[%s1075 + $0x38] sm:$0xff]
  %v1084 = vld [vmem:[%s1075 + $0x40] sm:$0xff]
  %v1085 = vld [vmem:[%s1075 + $0x48] sm:$0xff]
  %v1086 = vld [vmem:[%s1075 + $0x50] sm:$0xff]
  %v1087 = vld [vmem:[%s1075 + $0x58] sm:$0xff]
  %v1088 = vld [vmem:[%s1075 + $0x60] sm:$0xff]
  %v1089 = vld [vmem:[%s1075 + $0x68] sm:$0xff]
  %v1090 = vld [vmem:[%s1075 + $0x70] sm:$0xff]
  %v1091 = vld [vmem:[%s1075 + $0x78] sm:$0xff]
  %s1092 = scalar_lea.vmem %s4, 256
  %v1093 = vld [vmem:[%s1092] sm:$0xff]
  %v1094 = vld [vmem:[%s1092 + $0x8] sm:$0xff]
  %v1095 = vld [vmem:[%s1092 + $0x10] sm:$0xff]
  %v1096 = vld [vmem:[%s1092 + $0x18] sm:$0xff]
  %v1097 = vld [vmem:[%s1092 + $0x20] sm:$0xff]
  %v1098 = vld [vmem:[%s1092 + $0x28] sm:$0xff]
  %v1099 = vld [vmem:[%s1092 + $0x30] sm:$0xff]
  %v1100 = vld [vmem:[%s1092 + $0x38] sm:$0xff]
  %v1101 = vld [vmem:[%s1092 + $0x40] sm:$0xff]
  %v1102 = vld [vmem:[%s1092 + $0x48] sm:$0xff]
  %v1103 = vld [vmem:[%s1092 + $0x50] sm:$0xff]
  %v1104 = vld [vmem:[%s1092 + $0x58] sm:$0xff]
  %v1105 = vld [vmem:[%s1092 + $0x60] sm:$0xff]
  %v1106 = vld [vmem:[%s1092 + $0x68] sm:$0xff]
  %v1107 = vld [vmem:[%s1092 + $0x70] sm:$0xff]
  %v1108 = vld [vmem:[%s1092 + $0x78] sm:$0xff]
  %1109 = vmatprep.subr.mxu0 0.0
  %1110 = vmatpush1.msra.mxu0 %v1055
  %1111 = vmatprep.subr.mxu0 0.0
  %1112 = vmatpush1.msra.mxu0 %v1056
  %1113 = vmatprep.subr.mxu0 0.0
  %1114 = vmatpush1.msra.mxu0 %v1057
  %1115 = vmatprep.subr.mxu0 0.0
  %1116 = vmatpush1.msra.mxu0 %v1058
  %1117 = vmatprep.subr.mxu0 0.0
  %1118 = vmatpush1.msra.mxu0 0.0
  %1119 = vmatprep.subr.mxu0 0.0
  %1120 = vmatpush1.msra.mxu0 0.0
  %1121 = vmatprep.subr.mxu0 0.0
  %1122 = vmatpush1.msra.mxu0 0.0
  %1123 = vmatprep.subr.mxu0 0.0
  %1124 = vmatpush1.msra.mxu0 0.0
  %1125 = vmatprep.subr.mxu0 0.0
  %1126 = vmatpush1.msra.mxu0 0.0
  %1127 = vmatprep.subr.mxu0 0.0
  %1128 = vmatpush1.msra.mxu0 0.0
  %1129 = vmatprep.subr.mxu0 0.0
  %1130 = vmatpush1.msra.mxu0 0.0
  %1131 = vmatprep.subr.mxu0 0.0
  %1132 = vmatpush1.msra.mxu0 0.0
  %1133 = vmatprep.subr.mxu0 0.0
  %1134 = vmatpush1.msra.mxu0 0.0
  %1135 = vmatprep.subr.mxu0 0.0
  %1136 = vmatpush1.msra.mxu0 0.0
  %1137 = vmatprep.subr.mxu0 0.0
  %1138 = vmatpush1.msra.mxu0 0.0
  %1139 = vmatprep.subr.mxu0 0.0
  %1140 = vmatpush1.msra.mxu0 0.0
  %1141 = vmatprep.subr.mxu0 0.0
  %1142 = vmatpush1.msra.mxu0 0.0
  %1143 = vmatprep.subr.mxu0 0.0
  %1144 = vmatpush1.msra.mxu0 0.0
  %1145 = vmatprep.subr.mxu0 0.0
  %1146 = vmatpush1.msra.mxu0 0.0
  %1147 = vmatprep.subr.mxu0 0.0
  %1148 = vmatpush1.msra.mxu0 0.0
  %1149 = vmatprep.subr.mxu0 0.0
  %1150 = vmatpush1.msra.mxu0 0.0
  %1151 = vmatprep.subr.mxu0 0.0
  %1152 = vmatpush1.msra.mxu0 0.0
  %1153 = vmatprep.subr.mxu0 0.0
  %1154 = vmatpush1.msra.mxu0 0.0
  %1155 = vmatprep.subr.mxu0 0.0
  %1156 = vmatpush1.msra.mxu0 0.0
  %1157 = vmatprep.subr.mxu0 0.0
  %1158 = vmatpush1.msra.mxu0 0.0
  %1159 = vmatprep.subr.mxu0 0.0
  %1160 = vmatpush1.msra.mxu0 0.0
  %1161 = vmatprep.subr.mxu0 0.0
  %1162 = vmatpush1.msra.mxu0 0.0
  %1163 = vmatprep.subr.mxu0 0.0
  %1164 = vmatpush1.msra.mxu0 0.0
  %1165 = vmatprep.subr.mxu0 0.0
  %1166 = vmatpush1.msra.mxu0 0.0
  %1167 = vmatprep.subr.mxu0 0.0
  %1168 = vmatpush1.msra.mxu0 0.0
  %1169 = vmatprep.subr.mxu0 0.0
  %1170 = vmatpush1.msra.mxu0 0.0
  %1171 = vmatprep.subr.mxu0 0.0
  %1172 = vmatpush1.msra.mxu0 0.0
  %1173 = vmatprep.mubr.f32.mxu0 0.0
  %1174 = vmatmul.mubr.f32.gmra.mrb[0].mxu0 %v387
  %v1175 = vpop.f32.mrb[0].mxu0
  %v1176 = vadd.f32 0.0, %v1175
  %v1177 = vpop.f32.mrb[0].mxu0
  %1178 = vmatprep.mubr.f32.mxu0 0.0
  %1179 = vmatmul.mubr.f32.gmra.mrb[0].mxu0 %v390
  %v1180 = vpop.f32.mrb[0].mxu0
  %v1181 = vadd.f32 0.0, %v1180
  %v1182 = vpop.f32.mrb[0].mxu0
  %1183 = vmatprep.mubr.f32.mxu0 0.0
  %1184 = vmatmul.mubr.f32.gmra.mrb[0].mxu0 %v393
  %v1185 = vpop.f32.mrb[0].mxu0
  %v1186 = vadd.f32 0.0, %v1185
  %v1187 = vpop.f32.mrb[0].mxu0
  %1188 = vmatprep.mubr.f32.mxu0 0.0
  %1189 = vmatmul.mubr.f32.gmra.mrb[0].mxu0 %v396
  %v1190 = vpop.f32.mrb[0].mxu0
  %v1191 = vadd.f32 0.0, %v1190
  %v1192 = vpop.f32.mrb[0].mxu0
  %1193 = vdwg.mxu0
  %1194 = vmatprep.subr.mxu0 0.0
  %1195 = vmatpush1.msra.mxu0 %v1076
  %1196 = vmatprep.subr.mxu0 0.0
  %1197 = vmatpush1.msra.mxu0 %v1077
  %1198 = vmatprep.subr.mxu0 0.0
  %1199 = vmatpush1.msra.mxu0 %v1078
  %1200 = vmatprep.subr.mxu0 0.0
  %1201 = vmatpush1.msra.mxu0 %v1079
  %1202 = vmatprep.subr.mxu0 0.0
  %1203 = vmatpush1.msra.mxu0 %v1080
  %1204 = vmatprep.subr.mxu0 0.0
  %1205 = vmatpush1.msra.mxu0 %v1081
  %1206 = vmatprep.subr.mxu0 0.0
  %1207 = vmatpush1.msra.mxu0 %v1082
  %1208 = vmatprep.subr.mxu0 0.0
  %1209 = vmatpush1.msra.mxu0 %v1083
  %1210 = vmatprep.subr.mxu0 0.0
  %1211 = vmatpush1.msra.mxu0 %v1084
  %1212 = vmatprep.subr.mxu0 0.0
  %1213 = vmatpush1.msra.mxu0 %v1085
  %1214 = vmatprep.subr.mxu0 0.0
  %1215 = vmatpush1.msra.mxu0 %v1086
  %1216 = vmatprep.subr.mxu0 0.0
  %1217 = vmatpush1.msra.mxu0 %v1087
  %1218 = vmatprep.subr.mxu0 0.0
  %1219 = vmatpush1.msra.mxu0 %v1088
  %1220 = vmatprep.subr.mxu0 0.0
  %1221 = vmatpush1.msra.mxu0 %v1089
  %1222 = vmatprep.subr.mxu0 0.0
  %1223 = vmatpush1.msra.mxu0 %v1090
  %1224 = vmatprep.subr.mxu0 0.0
  %1225 = vmatpush1.msra.mxu0 %v1091
  %1226 = vmatprep.subr.mxu0 0.0
  %1227 = vmatpush1.msra.mxu0 0.0
  %1228 = vmatprep.subr.mxu0 0.0
  %1229 = vmatpush1.msra.mxu0 0.0
  %1230 = vmatprep.subr.mxu0 0.0
  %1231 = vmatpush1.msra.mxu0 0.0
  %1232 = vmatprep.subr.mxu0 0.0
  %1233 = vmatpush1.msra.mxu0 0.0
  %1234 = vmatprep.subr.mxu0 0.0
  %1235 = vmatpush1.msra.mxu0 0.0
  %1236 = vmatprep.subr.mxu0 0.0
  %1237 = vmatpush1.msra.mxu0 0.0
  %1238 = vmatprep.subr.mxu0 0.0
  %1239 = vmatpush1.msra.mxu0 0.0
  %1240 = vmatprep.subr.mxu0 0.0
  %1241 = vmatpush1.msra.mxu0 0.0
  %1242 = vmatprep.subr.mxu0 0.0
  %1243 = vmatpush1.msra.mxu0 0.0
  %1244 = vmatprep.subr.mxu0 0.0
  %1245 = vmatpush1.msra.mxu0 0.0
  %1246 = vmatprep.subr.mxu0 0.0
  %1247 = vmatpush1.msra.mxu0 0.0
  %1248 = vmatprep.subr.mxu0 0.0
  %1249 = vmatpush1.msra.mxu0 0.0
  %1250 = vmatprep.subr.mxu0 0.0
  %1251 = vmatpush1.msra.mxu0 0.0
  %1252 = vmatprep.subr.mxu0 0.0
  %1253 = vmatpush1.msra.mxu0 0.0
  %1254 = vmatprep.subr.mxu0 0.0
  %1255 = vmatpush1.msra.mxu0 0.0
  %1256 = vmatprep.subr.mxu0 0.0
  %1257 = vmatpush1.msra.mxu0 0.0
  %1258 = vmatprep.mubr.f32.mxu0 0.0
  %1259 = vmatmul.mubr.f32.gmra.mrb[0].mxu0 %v1055
  %v1260 = vpop.f32.mrb[0].mxu0
  %v1261 = vadd.f32 0.0, %v1260
  %v1262 = vpop.f32.mrb[0].mxu0
  %1263 = vmatprep.mubr.f32.mxu0 0.0
  %1264 = vmatmul.mubr.f32.gmra.mrb[0].mxu0 %v1056
  %v1265 = vpop.f32.mrb[0].mxu0
  %v1266 = vadd.f32 0.0, %v1265
  %v1267 = vpop.f32.mrb[0].mxu0
  %1268 = vmatprep.mubr.f32.mxu0 0.0
  %1269 = vmatmul.mubr.f32.gmra.mrb[0].mxu0 %v1057
  %v1270 = vpop.f32.mrb[0].mxu0
  %v1271 = vadd.f32 0.0, %v1270
  %v1272 = vpop.f32.mrb[0].mxu0
  %1273 = vmatprep.mubr.f32.mxu0 0.0
  %1274 = vmatmul.mubr.f32.gmra.mrb[0].mxu0 %v1058
  %v1275 = vpop.f32.mrb[0].mxu0
  %v1276 = vadd.f32 0.0, %v1275
  %v1277 = vpop.f32.mrb[0].mxu0
  %1278 = vdwg.mxu0
  %1279 = vmatprep.subr.mxu0 0.0
  %1280 = vmatpush1.msra.mxu0 %v1059
  %1281 = vmatprep.subr.mxu0 0.0
  %1282 = vmatpush1.msra.mxu0 %v1060
  %1283 = vmatprep.subr.mxu0 0.0
  %1284 = vmatpush1.msra.mxu0 %v1061
  %1285 = vmatprep.subr.mxu0 0.0
  %1286 = vmatpush1.msra.mxu0 %v1062
  %1287 = vmatprep.subr.mxu0 0.0
  %1288 = vmatpush1.msra.mxu0 %v1063
  %1289 = vmatprep.subr.mxu0 0.0
  %1290 = vmatpush1.msra.mxu0 %v1064
  %1291 = vmatprep.subr.mxu0 0.0
  %1292 = vmatpush1.msra.mxu0 %v1065
  %1293 = vmatprep.subr.mxu0 0.0
  %1294 = vmatpush1.msra.mxu0 %v1066
  %1295 = vmatprep.subr.mxu0 0.0
  %1296 = vmatpush1.msra.mxu0 %v1067
  %1297 = vmatprep.subr.mxu0 0.0
  %1298 = vmatpush1.msra.mxu0 %v1068
  %1299 = vmatprep.subr.mxu0 0.0
  %1300 = vmatpush1.msra.mxu0 %v1069
  %1301 = vmatprep.subr.mxu0 0.0
  %1302 = vmatpush1.msra.mxu0 %v1070
  %1303 = vmatprep.subr.mxu0 0.0
  %1304 = vmatpush1.msra.mxu0 %v1071
  %1305 = vmatprep.subr.mxu0 0.0
  %1306 = vmatpush1.msra.mxu0 %v1072
  %1307 = vmatprep.subr.mxu0 0.0
  %1308 = vmatpush1.msra.mxu0 %v1073
  %1309 = vmatprep.subr.mxu0 0.0
  %1310 = vmatpush1.msra.mxu0 %v1074
  %1311 = vmatprep.subr.mxu0 0.0
  %1312 = vmatpush1.msra.mxu0 0.0
  %1313 = vmatprep.subr.mxu0 0.0
  %1314 = vmatpush1.msra.mxu0 0.0
  %1315 = vmatprep.subr.mxu0 0.0
  %1316 = vmatpush1.msra.mxu0 0.0
  %1317 = vmatprep.subr.mxu0 0.0
  %1318 = vmatpush1.msra.mxu0 0.0
  %1319 = vmatprep.subr.mxu0 0.0
  %1320 = vmatpush1.msra.mxu0 0.0
  %1321 = vmatprep.subr.mxu0 0.0
  %1322 = vmatpush1.msra.mxu0 0.0
  %1323 = vmatprep.subr.mxu0 0.0
  %1324 = vmatpush1.msra.mxu0 0.0
  %1325 = vmatprep.subr.mxu0 0.0
  %1326 = vmatpush1.msra.mxu0 0.0
  %1327 = vmatprep.subr.mxu0 0.0
  %1328 = vmatpush1.msra.mxu0 0.0
  %1329 = vmatprep.subr.mxu0 0.0
  %1330 = vmatpush1.msra.mxu0 0.0
  %1331 = vmatprep.subr.mxu0 0.0
  %1332 = vmatpush1.msra.mxu0 0.0
  %1333 = vmatprep.subr.mxu0 0.0
  %1334 = vmatpush1.msra.mxu0 0.0
  %1335 = vmatprep.subr.mxu0 0.0
  %1336 = vmatpush1.msra.mxu0 0.0
  %1337 = vmatprep.subr.mxu0 0.0
  %1338 = vmatpush1.msra.mxu0 0.0
  %1339 = vmatprep.subr.mxu0 0.0
  %1340 = vmatpush1.msra.mxu0 0.0
  %1341 = vmatprep.subr.mxu0 0.0
  %1342 = vmatpush1.msra.mxu0 0.0
  %1343 = vmatprep.mubr.f32.mxu0 0.0
  %1344 = vmatmul.mubr.f32.gmra.mrb[0].mxu0 %v1176
  %v1345 = vpop.f32.mrb[0].mxu0
  %v1346 = vadd.f32 %v1261, %v1345
  %v1347 = vpop.f32.mrb[0].mxu0
  %1348 = vmatprep.mubr.f32.mxu0 0.0
  %1349 = vmatmul.mubr.f32.gmra.mrb[0].mxu0 %v1181
  %v1350 = vpop.f32.mrb[0].mxu0
  %v1351 = vadd.f32 %v1266, %v1350
  %v1352 = vpop.f32.mrb[0].mxu0
  %1353 = vmatprep.mubr.f32.mxu0 0.0
  %1354 = vmatmul.mubr.f32.gmra.mrb[0].mxu0 %v1186
  %v1355 = vpop.f32.mrb[0].mxu0
  %v1356 = vadd.f32 %v1271, %v1355
  %v1357 = vpop.f32.mrb[0].mxu0
  %1358 = vmatprep.mubr.f32.mxu0 0.0
  %1359 = vmatmul.mubr.f32.gmra.mrb[0].mxu0 %v1191
  %v1360 = vpop.f32.mrb[0].mxu0
  %v1361 = vadd.f32 %v1276, %v1360
  %v1362 = vpop.f32.mrb[0].mxu0
  %1363 = vdwg.mxu0
  %1364 = vmatprep.subr.mxu0 0.0
  %1365 = vmatpush1.msra.mxu0 %v1055
  %1366 = vmatprep.subr.mxu0 0.0
  %1367 = vmatpush1.msra.mxu0 %v1056
  %1368 = vmatprep.subr.mxu0 0.0
  %1369 = vmatpush1.msra.mxu0 %v1057
  %1370 = vmatprep.subr.mxu0 0.0
  %1371 = vmatpush1.msra.mxu0 %v1058
  %1372 = vmatprep.subr.mxu0 0.0
  %1373 = vmatpush1.msra.mxu0 0.0
  %1374 = vmatprep.subr.mxu0 0.0
  %1375 = vmatpush1.msra.mxu0 0.0
  %1376 = vmatprep.subr.mxu0 0.0
  %1377 = vmatpush1.msra.mxu0 0.0
  %1378 = vmatprep.subr.mxu0 0.0
  %1379 = vmatpush1.msra.mxu0 0.0
  %1380 = vmatprep.subr.mxu0 0.0
  %1381 = vmatpush1.msra.mxu0 0.0
  %1382 = vmatprep.subr.mxu0 0.0
  %1383 = vmatpush1.msra.mxu0 0.0
  %1384 = vmatprep.subr.mxu0 0.0
  %1385 = vmatpush1.msra.mxu0 0.0
  %1386 = vmatprep.subr.mxu0 0.0
  %1387 = vmatpush1.msra.mxu0 0.0
  %1388 = vmatprep.subr.mxu0 0.0
  %1389 = vmatpush1.msra.mxu0 0.0
  %1390 = vmatprep.subr.mxu0 0.0
  %1391 = vmatpush1.msra.mxu0 0.0
  %1392 = vmatprep.subr.mxu0 0.0
  %1393 = vmatpush1.msra.mxu0 0.0
  %1394 = vmatprep.subr.mxu0 0.0
  %1395 = vmatpush1.msra.mxu0 0.0
  %1396 = vmatprep.subr.mxu0 0.0
  %1397 = vmatpush1.msra.mxu0 0.0
  %1398 = vmatprep.subr.mxu0 0.0
  %1399 = vmatpush1.msra.mxu0 0.0
  %1400 = vmatprep.subr.mxu0 0.0
  %1401 = vmatpush1.msra.mxu0 0.0
  %1402 = vmatprep.subr.mxu0 0.0
  %1403 = vmatpush1.msra.mxu0 0.0
  %1404 = vmatprep.subr.mxu0 0.0
  %1405 = vmatpush1.msra.mxu0 0.0
  %1406 = vmatprep.subr.mxu0 0.0
  %1407 = vmatpush1.msra.mxu0 0.0
  %1408 = vmatprep.subr.mxu0 0.0
  %1409 = vmatpush1.msra.mxu0 0.0
  %1410 = vmatprep.subr.mxu0 0.0
  %1411 = vmatpush1.msra.mxu0 0.0
  %1412 = vmatprep.subr.mxu0 0.0
  %1413 = vmatpush1.msra.mxu0 0.0
  %1414 = vmatprep.subr.mxu0 0.0
  %1415 = vmatpush1.msra.mxu0 0.0
  %1416 = vmatprep.subr.mxu0 0.0
  %1417 = vmatpush1.msra.mxu0 0.0
  %1418 = vmatprep.subr.mxu0 0.0
  %1419 = vmatpush1.msra.mxu0 0.0
  %1420 = vmatprep.subr.mxu0 0.0
  %1421 = vmatpush1.msra.mxu0 0.0
  %1422 = vmatprep.subr.mxu0 0.0
  %1423 = vmatpush1.msra.mxu0 0.0
  %1424 = vmatprep.subr.mxu0 0.0
  %1425 = vmatpush1.msra.mxu0 0.0
  %1426 = vmatprep.subr.mxu0 0.0
  %1427 = vmatpush1.msra.mxu0 0.0
  %1428 = vmatprep.mubr.f32.mxu0 0.0
  %1429 = vmatmul.mubr.f32.gmra.mrb[0].mxu0 %v666
  %v1430 = vpop.f32.mrb[0].mxu0
  %v1431 = vadd.f32 0.0, %v1430
  %v1432 = vpop.f32.mrb[0].mxu0
  %1433 = vmatprep.mubr.f32.mxu0 0.0
  %1434 = vmatmul.mubr.f32.gmra.mrb[0].mxu0 %v669
  %v1435 = vpop.f32.mrb[0].mxu0
  %v1436 = vadd.f32 0.0, %v1435
  %v1437 = vpop.f32.mrb[0].mxu0
  %1438 = vmatprep.mubr.f32.mxu0 0.0
  %1439 = vmatmul.mubr.f32.gmra.mrb[0].mxu0 %v672
  %v1440 = vpop.f32.mrb[0].mxu0
  %v1441 = vadd.f32 0.0, %v1440
  %v1442 = vpop.f32.mrb[0].mxu0
  %1443 = vmatprep.mubr.f32.mxu0 0.0
  %1444 = vmatmul.mubr.f32.gmra.mrb[0].mxu0 %v675
  %v1445 = vpop.f32.mrb[0].mxu0
  %v1446 = vadd.f32 0.0, %v1445
  %v1447 = vpop.f32.mrb[0].mxu0
  %1448 = vdwg.mxu0
  %1449 = vmatprep.subr.mxu0 0.0
  %1450 = vmatpush1.msra.mxu0 %v1093
  %1451 = vmatprep.subr.mxu0 0.0
  %1452 = vmatpush1.msra.mxu0 %v1094
  %1453 = vmatprep.subr.mxu0 0.0
  %1454 = vmatpush1.msra.mxu0 %v1095
  %1455 = vmatprep.subr.mxu0 0.0
  %1456 = vmatpush1.msra.mxu0 %v1096
  %1457 = vmatprep.subr.mxu0 0.0
  %1458 = vmatpush1.msra.mxu0 %v1097
  %1459 = vmatprep.subr.mxu0 0.0
  %1460 = vmatpush1.msra.mxu0 %v1098
  %1461 = vmatprep.subr.mxu0 0.0
  %1462 = vmatpush1.msra.mxu0 %v1099
  %1463 = vmatprep.subr.mxu0 0.0
  %1464 = vmatpush1.msra.mxu0 %v1100
  %1465 = vmatprep.subr.mxu0 0.0
  %1466 = vmatpush1.msra.mxu0 %v1101
  %1467 = vmatprep.subr.mxu0 0.0
  %1468 = vmatpush1.msra.mxu0 %v1102
  %1469 = vmatprep.subr.mxu0 0.0
  %1470 = vmatpush1.msra.mxu0 %v1103
  %1471 = vmatprep.subr.mxu0 0.0
  %1472 = vmatpush1.msra.mxu0 %v1104
  %1473 = vmatprep.subr.mxu0 0.0
  %1474 = vmatpush1.msra.mxu0 %v1105
  %1475 = vmatprep.subr.mxu0 0.0
  %1476 = vmatpush1.msra.mxu0 %v1106
  %1477 = vmatprep.subr.mxu0 0.0
  %1478 = vmatpush1.msra.mxu0 %v1107
  %1479 = vmatprep.subr.mxu0 0.0
  %1480 = vmatpush1.msra.mxu0 %v1108
  %1481 = vmatprep.subr.mxu0 0.0
  %1482 = vmatpush1.msra.mxu0 0.0
  %1483 = vmatprep.subr.mxu0 0.0
  %1484 = vmatpush1.msra.mxu0 0.0
  %1485 = vmatprep.subr.mxu0 0.0
  %1486 = vmatpush1.msra.mxu0 0.0
  %1487 = vmatprep.subr.mxu0 0.0
  %1488 = vmatpush1.msra.mxu0 0.0
  %1489 = vmatprep.subr.mxu0 0.0
  %1490 = vmatpush1.msra.mxu0 0.0
  %1491 = vmatprep.subr.mxu0 0.0
  %1492 = vmatpush1.msra.mxu0 0.0
  %1493 = vmatprep.subr.mxu0 0.0
  %1494 = vmatpush1.msra.mxu0 0.0
  %1495 = vmatprep.subr.mxu0 0.0
  %1496 = vmatpush1.msra.mxu0 0.0
  %1497 = vmatprep.subr.mxu0 0.0
  %1498 = vmatpush1.msra.mxu0 0.0
  %1499 = vmatprep.subr.mxu0 0.0
  %1500 = vmatpush1.msra.mxu0 0.0
  %1501 = vmatprep.subr.mxu0 0.0
  %1502 = vmatpush1.msra.mxu0 0.0
  %1503 = vmatprep.subr.mxu0 0.0
  %1504 = vmatpush1.msra.mxu0 0.0
  %1505 = vmatprep.subr.mxu0 0.0
  %1506 = vmatpush1.msra.mxu0 0.0
  %1507 = vmatprep.subr.mxu0 0.0
  %1508 = vmatpush1.msra.mxu0 0.0
  %1509 = vmatprep.subr.mxu0 0.0
  %1510 = vmatpush1.msra.mxu0 0.0
  %1511 = vmatprep.subr.mxu0 0.0
  %1512 = vmatpush1.msra.mxu0 0.0
  %1513 = vmatprep.mubr.f32.mxu0 0.0
  %1514 = vmatmul.mubr.f32.gmra.mrb[0].mxu0 %v1431
  %v1515 = vpop.f32.mrb[0].mxu0
  %v1516 = vadd.f32 0.0, %v1515
  %v1517 = vpop.f32.mrb[0].mxu0
  %1518 = vmatprep.mubr.f32.mxu0 0.0
  %1519 = vmatmul.mubr.f32.gmra.mrb[0].mxu0 %v1436
  %v1520 = vpop.f32.mrb[0].mxu0
  %v1521 = vadd.f32 0.0, %v1520
  %v1522 = vpop.f32.mrb[0].mxu0
  %1523 = vmatprep.mubr.f32.mxu0 0.0
  %1524 = vmatmul.mubr.f32.gmra.mrb[0].mxu0 %v1441
  %v1525 = vpop.f32.mrb[0].mxu0
  %v1526 = vadd.f32 0.0, %v1525
  %v1527 = vpop.f32.mrb[0].mxu0
  %1528 = vmatprep.mubr.f32.mxu0 0.0
  %1529 = vmatmul.mubr.f32.gmra.mrb[0].mxu0 %v1446
  %v1530 = vpop.f32.mrb[0].mxu0
  %v1531 = vadd.f32 0.0, %v1530
  %v1532 = vpop.f32.mrb[0].mxu0
  %1533 = vdwg.mxu0
  %v1534 = vadd.f32 %v1346, %v1516
  %v1535 = vadd.f32 %v1351, %v1521
  %v1536 = vadd.f32 %v1356, %v1526
  %v1537 = vadd.f32 %v1361, %v1531
  %v1538 = vadd.f32 %v1534, %v1535
  %v1539 = vadd.f32 %v1538, %v1536
  %v1540 = vadd.f32 %v1539, %v1537
  %v1541 = vrot.slane %v1540, 4
  %v1542 = vadd.f32 %v1540, %v1541
  %v1543 = vrot.slane %v1542, 2
  %v1544 = vadd.f32 %v1542, %v1543
  %v1545 = vrot.slane %v1544, 1
  %v1546 = vadd.f32 %v1544, %v1545
  %v1547 = vmul.f32 %v1534, %v1534
  %v1548 = vmul.f32 %v1535, %v1535
  %v1549 = vmul.f32 %v1536, %v1536
  %v1550 = vmul.f32 %v1537, %v1537
  %v1551 = vadd.f32 %v1547, %v1548
  %v1552 = vadd.f32 %v1551, %v1549
  %v1553 = vadd.f32 %v1552, %v1550
  %v1554 = vrot.slane %v1553, 4
  %v1555 = vadd.f32 %v1553, %v1554
  %v1556 = vrot.slane %v1555, 2
  %v1557 = vadd.f32 %v1555, %v1556
  %v1558 = vrot.slane %v1557, 1
  %v1559 = vadd.f32 %v1557, %v1558
  %1560 = vmatprep.subr.mxu0 0.0
  %1561 = vmatpush1.msra.mxu0 %v33
  %1562 = vmatprep.subr.mxu0 0.0
  %1563 = vmatpush1.msra.mxu0 %v34
  %1564 = vmatprep.subr.mxu0 0.0
  %1565 = vmatpush1.msra.mxu0 %v35
  %1566 = vmatprep.subr.mxu0 0.0
  %1567 = vmatpush1.msra.mxu0 %v36
  %1568 = vmatprep.subr.mxu0 0.0
  %1569 = vmatpush1.msra.mxu0 %v37
  %1570 = vmatprep.subr.mxu0 0.0
  %1571 = vmatpush1.msra.mxu0 %v38
  %1572 = vmatprep.subr.mxu0 0.0
  %1573 = vmatpush1.msra.mxu0 %v39
  %1574 = vmatprep.subr.mxu0 0.0
  %1575 = vmatpush1.msra.mxu0 %v40
  %1576 = vmatprep.subr.mxu0 0.0
  %1577 = vmatpush1.msra.mxu0 %v41
  %1578 = vmatprep.subr.mxu0 0.0
  %1579 = vmatpush1.msra.mxu0 %v42
  %1580 = vmatprep.subr.mxu0 0.0
  %1581 = vmatpush1.msra.mxu0 %v43
  %1582 = vmatprep.subr.mxu0 0.0
  %1583 = vmatpush1.msra.mxu0 %v44
  %1584 = vmatprep.subr.mxu0 0.0
  %1585 = vmatpush1.msra.mxu0 %v45
  %1586 = vmatprep.subr.mxu0 0.0
  %1587 = vmatpush1.msra.mxu0 %v46
  %1588 = vmatprep.subr.mxu0 0.0
  %1589 = vmatpush1.msra.mxu0 %v47
  %1590 = vmatprep.subr.mxu0 0.0
  %1591 = vmatpush1.msra.mxu0 %v48
  %1592 = vmatprep.subr.mxu0 0.0
  %1593 = vmatpush1.msra.mxu0 0.0
  %1594 = vmatprep.subr.mxu0 0.0
  %1595 = vmatpush1.msra.mxu0 0.0
  %1596 = vmatprep.subr.mxu0 0.0
  %1597 = vmatpush1.msra.mxu0 0.0
  %1598 = vmatprep.subr.mxu0 0.0
  %1599 = vmatpush1.msra.mxu0 0.0
  %1600 = vmatprep.subr.mxu0 0.0
  %1601 = vmatpush1.msra.mxu0 0.0
  %1602 = vmatprep.subr.mxu0 0.0
  %1603 = vmatpush1.msra.mxu0 0.0
  %1604 = vmatprep.subr.mxu0 0.0
  %1605 = vmatpush1.msra.mxu0 0.0
  %1606 = vmatprep.subr.mxu0 0.0
  %1607 = vmatpush1.msra.mxu0 0.0
  %1608 = vmatprep.subr.mxu0 0.0
  %1609 = vmatpush1.msra.mxu0 0.0
  %1610 = vmatprep.subr.mxu0 0.0
  %1611 = vmatpush1.msra.mxu0 0.0
  %1612 = vmatprep.subr.mxu0 0.0
  %1613 = vmatpush1.msra.mxu0 0.0
  %1614 = vmatprep.subr.mxu0 0.0
  %1615 = vmatpush1.msra.mxu0 0.0
  %1616 = vmatprep.subr.mxu0 0.0
  %1617 = vmatpush1.msra.mxu0 0.0
  %1618 = vmatprep.subr.mxu0 0.0
  %1619 = vmatpush1.msra.mxu0 0.0
  %1620 = vmatprep.subr.mxu0 0.0
  %1621 = vmatpush1.msra.mxu0 0.0
  %1622 = vmatprep.subr.mxu0 0.0
  %1623 = vmatpush1.msra.mxu0 0.0
  %1624 = vmatprep.mubr.f32.mxu0 0.0
  %1625 = vmatmul.mubr.f32.gmra.mrb[0].mxu0 %v1546
  %v1626 = vpop.f32.mrb[0].mxu0
  %v1627 = vadd.f32 0.0, %v1626
  %v1628 = vpop.f32.mrb[0].mxu0
  %1629 = vdwg.mxu0
  %1630 = vmatprep.subr.mxu0 0.0
  %1631 = vmatpush1.msra.mxu0 %v33
  %1632 = vmatprep.subr.mxu0 0.0
  %1633 = vmatpush1.msra.mxu0 %v34
  %1634 = vmatprep.subr.mxu0 0.0
  %1635 = vmatpush1.msra.mxu0 %v35
  %1636 = vmatprep.subr.mxu0 0.0
  %1637 = vmatpush1.msra.mxu0 %v36
  %1638 = vmatprep.subr.mxu0 0.0
  %1639 = vmatpush1.msra.mxu0 %v37
  %1640 = vmatprep.subr.mxu0 0.0
  %1641 = vmatpush1.msra.mxu0 %v38
  %1642 = vmatprep.subr.mxu0 0.0
  %1643 = vmatpush1.msra.mxu0 %v39
  %1644 = vmatprep.subr.mxu0 0.0
  %1645 = vmatpush1.msra.mxu0 %v40
  %1646 = vmatprep.subr.mxu0 0.0
  %1647 = vmatpush1.msra.mxu0 %v41
  %1648 = vmatprep.subr.mxu0 0.0
  %1649 = vmatpush1.msra.mxu0 %v42
  %1650 = vmatprep.subr.mxu0 0.0
  %1651 = vmatpush1.msra.mxu0 %v43
  %1652 = vmatprep.subr.mxu0 0.0
  %1653 = vmatpush1.msra.mxu0 %v44
  %1654 = vmatprep.subr.mxu0 0.0
  %1655 = vmatpush1.msra.mxu0 %v45
  %1656 = vmatprep.subr.mxu0 0.0
  %1657 = vmatpush1.msra.mxu0 %v46
  %1658 = vmatprep.subr.mxu0 0.0
  %1659 = vmatpush1.msra.mxu0 %v47
  %1660 = vmatprep.subr.mxu0 0.0
  %1661 = vmatpush1.msra.mxu0 %v48
  %1662 = vmatprep.subr.mxu0 0.0
  %1663 = vmatpush1.msra.mxu0 0.0
  %1664 = vmatprep.subr.mxu0 0.0
  %1665 = vmatpush1.msra.mxu0 0.0
  %1666 = vmatprep.subr.mxu0 0.0
  %1667 = vmatpush1.msra.mxu0 0.0
  %1668 = vmatprep.subr.mxu0 0.0
  %1669 = vmatpush1.msra.mxu0 0.0
  %1670 = vmatprep.subr.mxu0 0.0
  %1671 = vmatpush1.msra.mxu0 0.0
  %1672 = vmatprep.subr.mxu0 0.0
  %1673 = vmatpush1.msra.mxu0 0.0
  %1674 = vmatprep.subr.mxu0 0.0
  %1675 = vmatpush1.msra.mxu0 0.0
  %1676 = vmatprep.subr.mxu0 0.0
  %1677 = vmatpush1.msra.mxu0 0.0
  %1678 = vmatprep.subr.mxu0 0.0
  %1679 = vmatpush1.msra.mxu0 0.0
  %1680 = vmatprep.subr.mxu0 0.0
  %1681 = vmatpush1.msra.mxu0 0.0
  %1682 = vmatprep.subr.mxu0 0.0
  %1683 = vmatpush1.msra.mxu0 0.0
  %1684 = vmatprep.subr.mxu0 0.0
  %1685 = vmatpush1.msra.mxu0 0.0
  %1686 = vmatprep.subr.mxu0 0.0
  %1687 = vmatpush1.msra.mxu0 0.0
  %1688 = vmatprep.subr.mxu0 0.0
  %1689 = vmatpush1.msra.mxu0 0.0
  %1690 = vmatprep.subr.mxu0 0.0
  %1691 = vmatpush1.msra.mxu0 0.0
  %1692 = vmatprep.subr.mxu0 0.0
  %1693 = vmatpush1.msra.mxu0 0.0
  %1694 = vmatprep.mubr.f32.mxu0 0.0
  %1695 = vmatmul.mubr.f32.gmra.mrb[0].mxu0 %v1559
  %v1696 = vpop.f32.mrb[0].mxu0
  %v1697 = vadd.f32 0.0, %v1696
  %v1698 = vpop.f32.mrb[0].mxu0
  %1699 = vdwg.mxu0
  %v1700 = vmul.f32 %v1627, %v1627
  %v1701 = vsub.f32 %v1697, %v1700
  %v1702 = vmax.f32 %v1701, 0.0
  %s1703 = scalar_lea.vmem %s6, 1
  %v1704 = vld [vmem:[%s1703] sm:$0x1]
  %v1705 = vadd.f32 %v1702, 1e-05
  %v1706 = vrsqrt.pop %v1705
  %v1707 = vmul.f32 %v1704, %v1706
  %s1708 = scalar_lea.vmem %s7, 1
  %v1709 = vld [vmem:[%s1708] sm:$0x1]
  %v1710 = vmul.f32 %v1627, %v1707
  %v1711 = vsub.f32 %v1709, %v1710
  %v1713 = vlaneseq
  %v1714 = vshrl.u32 %v1713, 7
  %v1715 = vsub.s32 0, %v1714
  %v1716 = vrot.slane %v1707, %v1715
  %v1718 = vmul.f32 %v1534, %v1716
  %v1719 = vmul.f32 %v1535, %v1716
  %v1720 = vmul.f32 %v1536, %v1716
  %v1721 = vmul.f32 %v1537, %v1716
  %v1723 = vlaneseq
  %v1724 = vshrl.u32 %v1723, 7
  %v1725 = vsub.s32 0, %v1724
  %v1726 = vrot.slane %v1711, %v1725
  %v1728 = vadd.f32 %v1718, %v1726
  %v1729 = vadd.f32 %v1719, %v1726
  %v1730 = vadd.f32 %v1720, %v1726
  %v1731 = vadd.f32 %v1721, %v1726
  %v1732 = vadd.f32 %v1728, %v355
  %v1733 = vadd.f32 %v1729, %v356
  %v1734 = vadd.f32 %v1730, %v357
  %v1735 = vadd.f32 %v1731, %v358
  %v1736 = vmax.f32 %v1732, 0.0
  %v1737 = vmax.f32 %v1733, 0.0
  %v1738 = vmax.f32 %v1734, 0.0
  %v1739 = vmax.f32 %v1735, 0.0
  %s1740 = scalar_lea.vmem %s4, 1152
  %v1741 = vld [vmem:[%s1740] sm:$0xff]
  %v1742 = vld [vmem:[%s1740 + $0x8] sm:$0xff]
  %v1743 = vld [vmem:[%s1740 + $0x10] sm:$0xff]
  %v1744 = vld [vmem:[%s1740 + $0x18] sm:$0xff]
  %v1745 = vld [vmem:[%s1740 + $0x20] sm:$0xff]
  %v1746 = vld [vmem:[%s1740 + $0x28] sm:$0xff]
  %v1747 = vld [vmem:[%s1740 + $0x30] sm:$0xff]
  %v1748 = vld [vmem:[%s1740 + $0x38] sm:$0xff]
  %v1749 = vld [vmem:[%s1740 + $0x40] sm:$0xff]
  %v1750 = vld [vmem:[%s1740 + $0x48] sm:$0xff]
  %v1751 = vld [vmem:[%s1740 + $0x50] sm:$0xff]
  %v1752 = vld [vmem:[%s1740 + $0x58] sm:$0xff]
  %v1753 = vld [vmem:[%s1740 + $0x60] sm:$0xff]
  %v1754 = vld [vmem:[%s1740 + $0x68] sm:$0xff]
  %v1755 = vld [vmem:[%s1740 + $0x70] sm:$0xff]
  %v1756 = vld [vmem:[%s1740 + $0x78] sm:$0xff]
  %1757 = vmatprep.subr.mxu0 0.0
  %1758 = vmatpush1.msra.mxu0 %v1741
  %1759 = vmatprep.subr.mxu0 0.0
  %1760 = vmatpush1.msra.mxu0 %v1742
  %1761 = vmatprep.subr.mxu0 0.0
  %1762 = vmatpush1.msra.mxu0 %v1743
  %1763 = vmatprep.subr.mxu0 0.0
  %1764 = vmatpush1.msra.mxu0 %v1744
  %1765 = vmatprep.subr.mxu0 0.0
  %1766 = vmatpush1.msra.mxu0 %v1745
  %1767 = vmatprep.subr.mxu0 0.0
  %1768 = vmatpush1.msra.mxu0 %v1746
  %1769 = vmatprep.subr.mxu0 0.0
  %1770 = vmatpush1.msra.mxu0 %v1747
  %1771 = vmatprep.subr.mxu0 0.0
  %1772 = vmatpush1.msra.mxu0 %v1748
  %1773 = vmatprep.subr.mxu0 0.0
  %1774 = vmatpush1.msra.mxu0 %v1749
  %1775 = vmatprep.subr.mxu0 0.0
  %1776 = vmatpush1.msra.mxu0 %v1750
  %1777 = vmatprep.subr.mxu0 0.0
  %1778 = vmatpush1.msra.mxu0 %v1751
  %1779 = vmatprep.subr.mxu0 0.0
  %1780 = vmatpush1.msra.mxu0 %v1752
  %1781 = vmatprep.subr.mxu0 0.0
  %1782 = vmatpush1.msra.mxu0 %v1753
  %1783 = vmatprep.subr.mxu0 0.0
  %1784 = vmatpush1.msra.mxu0 %v1754
  %1785 = vmatprep.subr.mxu0 0.0
  %1786 = vmatpush1.msra.mxu0 %v1755
  %1787 = vmatprep.subr.mxu0 0.0
  %1788 = vmatpush1.msra.mxu0 %v1756
  %1789 = vmatprep.subr.mxu0 0.0
  %1790 = vmatpush1.msra.mxu0 0.0
  %1791 = vmatprep.subr.mxu0 0.0
  %1792 = vmatpush1.msra.mxu0 0.0
  %1793 = vmatprep.subr.mxu0 0.0
  %1794 = vmatpush1.msra.mxu0 0.0
  %1795 = vmatprep.subr.mxu0 0.0
  %1796 = vmatpush1.msra.mxu0 0.0
  %1797 = vmatprep.subr.mxu0 0.0
  %1798 = vmatpush1.msra.mxu0 0.0
  %1799 = vmatprep.subr.mxu0 0.0
  %1800 = vmatpush1.msra.mxu0 0.0
  %1801 = vmatprep.subr.mxu0 0.0
  %1802 = vmatpush1.msra.mxu0 0.0
  %1803 = vmatprep.subr.mxu0 0.0
  %1804 = vmatpush1.msra.mxu0 0.0
  %1805 = vmatprep.subr.mxu0 0.0
  %1806 = vmatpush1.msra.mxu0 0.0
  %1807 = vmatprep.subr.mxu0 0.0
  %1808 = vmatpush1.msra.mxu0 0.0
  %1809 = vmatprep.subr.mxu0 0.0
  %1810 = vmatpush1.msra.mxu0 0.0
  %1811 = vmatprep.subr.mxu0 0.0
  %1812 = vmatpush1.msra.mxu0 0.0
  %1813 = vmatprep.subr.mxu0 0.0
  %1814 = vmatpush1.msra.mxu0 0.0
  %1815 = vmatprep.subr.mxu0 0.0
  %1816 = vmatpush1.msra.mxu0 0.0
  %1817 = vmatprep.subr.mxu0 0.0
  %1818 = vmatpush1.msra.mxu0 0.0
  %1819 = vmatprep.subr.mxu0 0.0
  %1820 = vmatpush1.msra.mxu0 0.0
  %1821 = vmatprep.mubr.f32.mxu0 0.0
  %1822 = vmatmul.mubr.f32.gmra.mrb[0].mxu0 %v1736
  %v1823 = vpop.f32.mrb[0].mxu0
  %v1824 = vadd.f32 0.0, %v1823
  %v1825 = vpop.f32.mrb[0].mxu0
  %1826 = vmatprep.mubr.f32.mxu0 0.0
  %1827 = vmatmul.mubr.f32.gmra.mrb[0].mxu0 %v1737
  %v1828 = vpop.f32.mrb[0].mxu0
  %v1829 = vadd.f32 0.0, %v1828
  %v1830 = vpop.f32.mrb[0].mxu0
  %1831 = vmatprep.mubr.f32.mxu0 0.0
  %1832 = vmatmul.mubr.f32.gmra.mrb[0].mxu0 %v1738
  %v1833 = vpop.f32.mrb[0].mxu0
  %v1834 = vadd.f32 0.0, %v1833
  %v1835 = vpop.f32.mrb[0].mxu0
  %1836 = vmatprep.mubr.f32.mxu0 0.0
  %1837 = vmatmul.mubr.f32.gmra.mrb[0].mxu0 %v1739
  %v1838 = vpop.f32.mrb[0].mxu0
  %v1839 = vadd.f32 0.0, %v1838
  %v1840 = vpop.f32.mrb[0].mxu0
  %1841 = vdwg.mxu0
  %v1842 = vadd.f32 %v1824, %v1829
  %v1843 = vadd.f32 %v1842, %v1834
  %v1844 = vadd.f32 %v1843, %v1839
  %v1845 = vrot.slane %v1844, 4
  %v1846 = vadd.f32 %v1844, %v1845
  %v1847 = vrot.slane %v1846, 2
  %v1848 = vadd.f32 %v1846, %v1847
  %v1849 = vrot.slane %v1848, 1
  %v1850 = vadd.f32 %v1848, %v1849
  %v1851 = vmul.f32 %v1824, %v1824
  %v1852 = vmul.f32 %v1829, %v1829
  %v1853 = vmul.f32 %v1834, %v1834
  %v1854 = vmul.f32 %v1839, %v1839
  %v1855 = vadd.f32 %v1851, %v1852
  %v1856 = vadd.f32 %v1855, %v1853
  %v1857 = vadd.f32 %v1856, %v1854
  %v1858 = vrot.slane %v1857, 4
  %v1859 = vadd.f32 %v1857, %v1858
  %v1860 = vrot.slane %v1859, 2
  %v1861 = vadd.f32 %v1859, %v1860
  %v1862 = vrot.slane %v1861, 1
  %v1863 = vadd.f32 %v1861, %v1862
  %1864 = vmatprep.subr.mxu0 0.0
  %1865 = vmatpush1.msra.mxu0 %v33
  %1866 = vmatprep.subr.mxu0 0.0
  %1867 = vmatpush1.msra.mxu0 %v34
  %1868 = vmatprep.subr.mxu0 0.0
  %1869 = vmatpush1.msra.mxu0 %v35
  %1870 = vmatprep.subr.mxu0 0.0
  %1871 = vmatpush1.msra.mxu0 %v36
  %1872 = vmatprep.subr.mxu0 0.0
  %1873 = vmatpush1.msra.mxu0 %v37
  %1874 = vmatprep.subr.mxu0 0.0
  %1875 = vmatpush1.msra.mxu0 %v38
  %1876 = vmatprep.subr.mxu0 0.0
  %1877 = vmatpush1.msra.mxu0 %v39
  %1878 = vmatprep.subr.mxu0 0.0
  %1879 = vmatpush1.msra.mxu0 %v40
  %1880 = vmatprep.subr.mxu0 0.0
  %1881 = vmatpush1.msra.mxu0 %v41
  %1882 = vmatprep.subr.mxu0 0.0
  %1883 = vmatpush1.msra.mxu0 %v42
  %1884 = vmatprep.subr.mxu0 0.0
  %1885 = vmatpush1.msra.mxu0 %v43
  %1886 = vmatprep.subr.mxu0 0.0
  %1887 = vmatpush1.msra.mxu0 %v44
  %1888 = vmatprep.subr.mxu0 0.0
  %1889 = vmatpush1.msra.mxu0 %v45
  %1890 = vmatprep.subr.mxu0 0.0
  %1891 = vmatpush1.msra.mxu0 %v46
  %1892 = vmatprep.subr.mxu0 0.0
  %1893 = vmatpush1.msra.mxu0 %v47
  %1894 = vmatprep.subr.mxu0 0.0
  %1895 = vmatpush1.msra.mxu0 %v48
  %1896 = vmatprep.subr.mxu0 0.0
  %1897 = vmatpush1.msra.mxu0 0.0
  %1898 = vmatprep.subr.mxu0 0.0
  %1899 = vmatpush1.msra.mxu0 0.0
  %1900 = vmatprep.subr.mxu0 0.0
  %1901 = vmatpush1.msra.mxu0 0.0
  %1902 = vmatprep.subr.mxu0 0.0
  %1903 = vmatpush1.msra.mxu0 0.0
  %1904 = vmatprep.subr.mxu0 0.0
  %1905 = vmatpush1.msra.mxu0 0.0
  %1906 = vmatprep.subr.mxu0 0.0
  %1907 = vmatpush1.msra.mxu0 0.0
  %1908 = vmatprep.subr.mxu0 0.0
  %1909 = vmatpush1.msra.mxu0 0.0
  %1910 = vmatprep.subr.mxu0 0.0
  %1911 = vmatpush1.msra.mxu0 0.0
  %1912 = vmatprep.subr.mxu0 0.0
  %1913 = vmatpush1.msra.mxu0 0.0
  %1914 = vmatprep.subr.mxu0 0.0
  %1915 = vmatpush1.msra.mxu0 0.0
  %1916 = vmatprep.subr.mxu0 0.0
  %1917 = vmatpush1.msra.mxu0 0.0
  %1918 = vmatprep.subr.mxu0 0.0
  %1919 = vmatpush1.msra.mxu0 0.0
  %1920 = vmatprep.subr.mxu0 0.0
  %1921 = vmatpush1.msra.mxu0 0.0
  %1922 = vmatprep.subr.mxu0 0.0
  %1923 = vmatpush1.msra.mxu0 0.0
  %1924 = vmatprep.subr.mxu0 0.0
  %1925 = vmatpush1.msra.mxu0 0.0
  %1926 = vmatprep.subr.mxu0 0.0
  %1927 = vmatpush1.msra.mxu0 0.0
  %1928 = vmatprep.mubr.f32.mxu0 0.0
  %1929 = vmatmul.mubr.f32.gmra.mrb[0].mxu0 %v1850
  %v1930 = vpop.f32.mrb[0].mxu0
  %v1931 = vadd.f32 0.0, %v1930
  %v1932 = vpop.f32.mrb[0].mxu0
  %1933 = vdwg.mxu0
  %1934 = vmatprep.subr.mxu0 0.0
  %1935 = vmatpush1.msra.mxu0 %v33
  %1936 = vmatprep.subr.mxu0 0.0
  %1937 = vmatpush1.msra.mxu0 %v34
  %1938 = vmatprep.subr.mxu0 0.0
  %1939 = vmatpush1.msra.mxu0 %v35
  %1940 = vmatprep.subr.mxu0 0.0
  %1941 = vmatpush1.msra.mxu0 %v36
  %1942 = vmatprep.subr.mxu0 0.0
  %1943 = vmatpush1.msra.mxu0 %v37
  %1944 = vmatprep.subr.mxu0 0.0
  %1945 = vmatpush1.msra.mxu0 %v38
  %1946 = vmatprep.subr.mxu0 0.0
  %1947 = vmatpush1.msra.mxu0 %v39
  %1948 = vmatprep.subr.mxu0 0.0
  %1949 = vmatpush1.msra.mxu0 %v40
  %1950 = vmatprep.subr.mxu0 0.0
  %1951 = vmatpush1.msra.mxu0 %v41
  %1952 = vmatprep.subr.mxu0 0.0
  %1953 = vmatpush1.msra.mxu0 %v42
  %1954 = vmatprep.subr.mxu0 0.0
  %1955 = vmatpush1.msra.mxu0 %v43
  %1956 = vmatprep.subr.mxu0 0.0
  %1957 = vmatpush1.msra.mxu0 %v44
  %1958 = vmatprep.subr.mxu0 0.0
  %1959 = vmatpush1.msra.mxu0 %v45
  %1960 = vmatprep.subr.mxu0 0.0
  %1961 = vmatpush1.msra.mxu0 %v46
  %1962 = vmatprep.subr.mxu0 0.0
  %1963 = vmatpush1.msra.mxu0 %v47
  %1964 = vmatprep.subr.mxu0 0.0
  %1965 = vmatpush1.msra.mxu0 %v48
  %1966 = vmatprep.subr.mxu0 0.0
  %1967 = vmatpush1.msra.mxu0 0.0
  %1968 = vmatprep.subr.mxu0 0.0
  %1969 = vmatpush1.msra.mxu0 0.0
  %1970 = vmatprep.subr.mxu0 0.0
  %1971 = vmatpush1.msra.mxu0 0.0
  %1972 = vmatprep.subr.mxu0 0.0
  %1973 = vmatpush1.msra.mxu0 0.0
  %1974 = vmatprep.subr.mxu0 0.0
  %1975 = vmatpush1.msra.mxu0 0.0
  %1976 = vmatprep.subr.mxu0 0.0
  %1977 = vmatpush1.msra.mxu0 0.0
  %1978 = vmatprep.subr.mxu0 0.0
  %1979 = vmatpush1.msra.mxu0 0.0
  %1980 = vmatprep.subr.mxu0 0.0
  %1981 = vmatpush1.msra.mxu0 0.0
  %1982 = vmatprep.subr.mxu0 0.0
  %1983 = vmatpush1.msra.mxu0 0.0
  %1984 = vmatprep.subr.mxu0 0.0
  %1985 = vmatpush1.msra.mxu0 0.0
  %1986 = vmatprep.subr.mxu0 0.0
  %1987 = vmatpush1.msra.mxu0 0.0
  %1988 = vmatprep.subr.mxu0 0.0
  %1989 = vmatpush1.msra.mxu0 0.0
  %1990 = vmatprep.subr.mxu0 0.0
  %1991 = vmatpush1.msra.mxu0 0.0
  %1992 = vmatprep.subr.mxu0 0.0
  %1993 = vmatpush1.msra.mxu0 0.0
  %1994 = vmatprep.subr.mxu0 0.0
  %1995 = vmatpush1.msra.mxu0 0.0
  %1996 = vmatprep.subr.mxu0 0.0
  %1997 = vmatpush1.msra.mxu0 0.0
  %1998 = vmatprep.mubr.f32.mxu0 0.0
  %1999 = vmatmul.mubr.f32.gmra.mrb[0].mxu0 %v1863
  %v2000 = vpop.f32.mrb[0].mxu0
  %v2001 = vadd.f32 0.0, %v2000
  %v2002 = vpop.f32.mrb[0].mxu0
  %2003 = vdwg.mxu0
  %v2004 = vmul.f32 %v1931, %v1931
  %v2005 = vsub.f32 %v2001, %v2004
  %v2006 = vmax.f32 %v2005, 0.0
  %s2007 = scalar_lea.vmem %s6, 5
  %v2008 = vld [vmem:[%s2007] sm:$0x1]
  %v2009 = vadd.f32 %v2006, 1e-05
  %v2010 = vrsqrt.pop %v2009
  %v2011 = vmul.f32 %v2008, %v2010
  %s2012 = scalar_lea.vmem %s7, 5
  %v2013 = vld [vmem:[%s2012] sm:$0x1]
  %v2014 = vmul.f32 %v1931, %v2011
  %v2015 = vsub.f32 %v2013, %v2014
  %v2017 = vlaneseq
  %v2018 = vshrl.u32 %v2017, 7
  %v2019 = vsub.s32 0, %v2018
  %v2020 = vrot.slane %v2011, %v2019
  %v2022 = vmul.f32 %v1824, %v2020
  %v2023 = vmul.f32 %v1829, %v2020
  %v2024 = vmul.f32 %v1834, %v2020
  %v2025 = vmul.f32 %v1839, %v2020
  %v2027 = vlaneseq
  %v2028 = vshrl.u32 %v2027, 7
  %v2029 = vsub.s32 0, %v2028
  %v2030 = vrot.slane %v2015, %v2029
  %v2032 = vadd.f32 %v2022, %v2030
  %v2033 = vadd.f32 %v2023, %v2030
  %v2034 = vadd.f32 %v2024, %v2030
  %v2035 = vadd.f32 %v2025, %v2030
  %s2036 = scalar_lea.vmem %s4, 384
  %v2037 = vld [vmem:[%s2036] sm:$0xff]
  %v2038 = vld [vmem:[%s2036 + $0x8] sm:$0xff]
  %v2039 = vld [vmem:[%s2036 + $0x10] sm:$0xff]
  %v2040 = vld [vmem:[%s2036 + $0x18] sm:$0xff]
  %v2041 = vld [vmem:[%s2036 + $0x20] sm:$0xff]
  %v2042 = vld [vmem:[%s2036 + $0x28] sm:$0xff]
  %v2043 = vld [vmem:[%s2036 + $0x30] sm:$0xff]
  %v2044 = vld [vmem:[%s2036 + $0x38] sm:$0xff]
  %v2045 = vld [vmem:[%s2036 + $0x40] sm:$0xff]
  %v2046 = vld [vmem:[%s2036 + $0x48] sm:$0xff]
  %v2047 = vld [vmem:[%s2036 + $0x50] sm:$0xff]
  %v2048 = vld [vmem:[%s2036 + $0x58] sm:$0xff]
  %v2049 = vld [vmem:[%s2036 + $0x60] sm:$0xff]
  %v2050 = vld [vmem:[%s2036 + $0x68] sm:$0xff]
  %v2051 = vld [vmem:[%s2036 + $0x70] sm:$0xff]
  %v2052 = vld [vmem:[%s2036 + $0x78] sm:$0xff]
  %s2053 = scalar_lea.vmem %s4, 512
  %v2054 = vld [vmem:[%s2053] sm:$0xff]
  %v2055 = vld [vmem:[%s2053 + $0x8] sm:$0xff]
  %v2056 = vld [vmem:[%s2053 + $0x10] sm:$0xff]
  %v2057 = vld [vmem:[%s2053 + $0x18] sm:$0xff]
  %v2058 = vld [vmem:[%s2053 + $0x20] sm:$0xff]
  %v2059 = vld [vmem:[%s2053 + $0x28] sm:$0xff]
  %v2060 = vld [vmem:[%s2053 + $0x30] sm:$0xff]
  %v2061 = vld [vmem:[%s2053 + $0x38] sm:$0xff]
  %v2062 = vld [vmem:[%s2053 + $0x40] sm:$0xff]
  %v2063 = vld [vmem:[%s2053 + $0x48] sm:$0xff]
  %v2064 = vld [vmem:[%s2053 + $0x50] sm:$0xff]
  %v2065 = vld [vmem:[%s2053 + $0x58] sm:$0xff]
  %v2066 = vld [vmem:[%s2053 + $0x60] sm:$0xff]
  %v2067 = vld [vmem:[%s2053 + $0x68] sm:$0xff]
  %v2068 = vld [vmem:[%s2053 + $0x70] sm:$0xff]
  %v2069 = vld [vmem:[%s2053 + $0x78] sm:$0xff]
  %s2070 = scalar_lea.vmem %s4, 640
  %v2071 = vld [vmem:[%s2070] sm:$0xff]
  %v2072 = vld [vmem:[%s2070 + $0x8] sm:$0xff]
  %v2073 = vld [vmem:[%s2070 + $0x10] sm:$0xff]
  %v2074 = vld [vmem:[%s2070 + $0x18] sm:$0xff]
  %v2075 = vld [vmem:[%s2070 + $0x20] sm:$0xff]
  %v2076 = vld [vmem:[%s2070 + $0x28] sm:$0xff]
  %v2077 = vld [vmem:[%s2070 + $0x30] sm:$0xff]
  %v2078 = vld [vmem:[%s2070 + $0x38] sm:$0xff]
  %v2079 = vld [vmem:[%s2070 + $0x40] sm:$0xff]
  %v2080 = vld [vmem:[%s2070 + $0x48] sm:$0xff]
  %v2081 = vld [vmem:[%s2070 + $0x50] sm:$0xff]
  %v2082 = vld [vmem:[%s2070 + $0x58] sm:$0xff]
  %v2083 = vld [vmem:[%s2070 + $0x60] sm:$0xff]
  %v2084 = vld [vmem:[%s2070 + $0x68] sm:$0xff]
  %v2085 = vld [vmem:[%s2070 + $0x70] sm:$0xff]
  %v2086 = vld [vmem:[%s2070 + $0x78] sm:$0xff]
  %2087 = vmatprep.subr.mxu0 0.0
  %2088 = vmatpush1.msra.mxu0 %v1736
  %2089 = vmatprep.subr.mxu0 0.0
  %2090 = vmatpush1.msra.mxu0 %v1737
  %2091 = vmatprep.subr.mxu0 0.0
  %2092 = vmatpush1.msra.mxu0 %v1738
  %2093 = vmatprep.subr.mxu0 0.0
  %2094 = vmatpush1.msra.mxu0 %v1739
  %2095 = vmatprep.subr.mxu0 0.0
  %2096 = vmatpush1.msra.mxu0 0.0
  %2097 = vmatprep.subr.mxu0 0.0
  %2098 = vmatpush1.msra.mxu0 0.0
  %2099 = vmatprep.subr.mxu0 0.0
  %2100 = vmatpush1.msra.mxu0 0.0
  %2101 = vmatprep.subr.mxu0 0.0
  %2102 = vmatpush1.msra.mxu0 0.0
  %2103 = vmatprep.subr.mxu0 0.0
  %2104 = vmatpush1.msra.mxu0 0.0
  %2105 = vmatprep.subr.mxu0 0.0
  %2106 = vmatpush1.msra.mxu0 0.0
  %2107 = vmatprep.subr.mxu0 0.0
  %2108 = vmatpush1.msra.mxu0 0.0
  %2109 = vmatprep.subr.mxu0 0.0
  %2110 = vmatpush1.msra.mxu0 0.0
  %2111 = vmatprep.subr.mxu0 0.0
  %2112 = vmatpush1.msra.mxu0 0.0
  %2113 = vmatprep.subr.mxu0 0.0
  %2114 = vmatpush1.msra.mxu0 0.0
  %2115 = vmatprep.subr.mxu0 0.0
  %2116 = vmatpush1.msra.mxu0 0.0
  %2117 = vmatprep.subr.mxu0 0.0
  %2118 = vmatpush1.msra.mxu0 0.0
  %2119 = vmatprep.subr.mxu0 0.0
  %2120 = vmatpush1.msra.mxu0 0.0
  %2121 = vmatprep.subr.mxu0 0.0
  %2122 = vmatpush1.msra.mxu0 0.0
  %2123 = vmatprep.subr.mxu0 0.0
  %2124 = vmatpush1.msra.mxu0 0.0
  %2125 = vmatprep.subr.mxu0 0.0
  %2126 = vmatpush1.msra.mxu0 0.0
  %2127 = vmatprep.subr.mxu0 0.0
  %2128 = vmatpush1.msra.mxu0 0.0
  %2129 = vmatprep.subr.mxu0 0.0
  %2130 = vmatpush1.msra.mxu0 0.0
  %2131 = vmatprep.subr.mxu0 0.0
  %2132 = vmatpush1.msra.mxu0 0.0
  %2133 = vmatprep.subr.mxu0 0.0
  %2134 = vmatpush1.msra.mxu0 0.0
  %2135 = vmatprep.subr.mxu0 0.0
  %2136 = vmatpush1.msra.mxu0 0.0
  %2137 = vmatprep.subr.mxu0 0.0
  %2138 = vmatpush1.msra.mxu0 0.0
  %2139 = vmatprep.subr.mxu0 0.0
  %2140 = vmatpush1.msra.mxu0 0.0
  %2141 = vmatprep.subr.mxu0 0.0
  %2142 = vmatpush1.msra.mxu0 0.0
  %2143 = vmatprep.subr.mxu0 0.0
  %2144 = vmatpush1.msra.mxu0 0.0
  %2145 = vmatprep.subr.mxu0 0.0
  %2146 = vmatpush1.msra.mxu0 0.0
  %2147 = vmatprep.subr.mxu0 0.0
  %2148 = vmatpush1.msra.mxu0 0.0
  %2149 = vmatprep.subr.mxu0 0.0
  %2150 = vmatpush1.msra.mxu0 0.0
  %2151 = vmatprep.mubr.f32.mxu0 0.0
  %2152 = vmatmul.mubr.f32.gmra.mrb[0].mxu0 %v387
  %v2153 = vpop.f32.mrb[0].mxu0
  %v2154 = vadd.f32 0.0, %v2153
  %v2155 = vpop.f32.mrb[0].mxu0
  %2156 = vmatprep.mubr.f32.mxu0 0.0
  %2157 = vmatmul.mubr.f32.gmra.mrb[0].mxu0 %v390
  %v2158 = vpop.f32.mrb[0].mxu0
  %v2159 = vadd.f32 0.0, %v2158
  %v2160 = vpop.f32.mrb[0].mxu0
  %2161 = vmatprep.mubr.f32.mxu0 0.0
  %2162 = vmatmul.mubr.f32.gmra.mrb[0].mxu0 %v393
  %v2163 = vpop.f32.mrb[0].mxu0
  %v2164 = vadd.f32 0.0, %v2163
  %v2165 = vpop.f32.mrb[0].mxu0
  %2166 = vmatprep.mubr.f32.mxu0 0.0
  %2167 = vmatmul.mubr.f32.gmra.mrb[0].mxu0 %v396
  %v2168 = vpop.f32.mrb[0].mxu0
  %v2169 = vadd.f32 0.0, %v2168
  %v2170 = vpop.f32.mrb[0].mxu0
  %2171 = vdwg.mxu0
  %2172 = vmatprep.subr.mxu0 0.0
  %2173 = vmatpush1.msra.mxu0 %v2054
  %2174 = vmatprep.subr.mxu0 0.0
  %2175 = vmatpush1.msra.mxu0 %v2055
  %2176 = vmatprep.subr.mxu0 0.0
  %2177 = vmatpush1.msra.mxu0 %v2056
  %2178 = vmatprep.subr.mxu0 0.0
  %2179 = vmatpush1.msra.mxu0 %v2057
  %2180 = vmatprep.subr.mxu0 0.0
  %2181 = vmatpush1.msra.mxu0 %v2058
  %2182 = vmatprep.subr.mxu0 0.0
  %2183 = vmatpush1.msra.mxu0 %v2059
  %2184 = vmatprep.subr.mxu0 0.0
  %2185 = vmatpush1.msra.mxu0 %v2060
  %2186 = vmatprep.subr.mxu0 0.0
  %2187 = vmatpush1.msra.mxu0 %v2061
  %2188 = vmatprep.subr.mxu0 0.0
  %2189 = vmatpush1.msra.mxu0 %v2062
  %2190 = vmatprep.subr.mxu0 0.0
  %2191 = vmatpush1.msra.mxu0 %v2063
  %2192 = vmatprep.subr.mxu0 0.0
  %2193 = vmatpush1.msra.mxu0 %v2064
  %2194 = vmatprep.subr.mxu0 0.0
  %2195 = vmatpush1.msra.mxu0 %v2065
  %2196 = vmatprep.subr.mxu0 0.0
  %2197 = vmatpush1.msra.mxu0 %v2066
  %2198 = vmatprep.subr.mxu0 0.0
  %2199 = vmatpush1.msra.mxu0 %v2067
  %2200 = vmatprep.subr.mxu0 0.0
  %2201 = vmatpush1.msra.mxu0 %v2068
  %2202 = vmatprep.subr.mxu0 0.0
  %2203 = vmatpush1.msra.mxu0 %v2069
  %2204 = vmatprep.subr.mxu0 0.0
  %2205 = vmatpush1.msra.mxu0 0.0
  %2206 = vmatprep.subr.mxu0 0.0
  %2207 = vmatpush1.msra.mxu0 0.0
  %2208 = vmatprep.subr.mxu0 0.0
  %2209 = vmatpush1.msra.mxu0 0.0
  %2210 = vmatprep.subr.mxu0 0.0
  %2211 = vmatpush1.msra.mxu0 0.0
  %2212 = vmatprep.subr.mxu0 0.0
  %2213 = vmatpush1.msra.mxu0 0.0
  %2214 = vmatprep.subr.mxu0 0.0
  %2215 = vmatpush1.msra.mxu0 0.0
  %2216 = vmatprep.subr.mxu0 0.0
  %2217 = vmatpush1.msra.mxu0 0.0
  %2218 = vmatprep.subr.mxu0 0.0
  %2219 = vmatpush1.msra.mxu0 0.0
  %2220 = vmatprep.subr.mxu0 0.0
  %2221 = vmatpush1.msra.mxu0 0.0
  %2222 = vmatprep.subr.mxu0 0.0
  %2223 = vmatpush1.msra.mxu0 0.0
  %2224 = vmatprep.subr.mxu0 0.0
  %2225 = vmatpush1.msra.mxu0 0.0
  %2226 = vmatprep.subr.mxu0 0.0
  %2227 = vmatpush1.msra.mxu0 0.0
  %2228 = vmatprep.subr.mxu0 0.0
  %2229 = vmatpush1.msra.mxu0 0.0
  %2230 = vmatprep.subr.mxu0 0.0
  %2231 = vmatpush1.msra.mxu0 0.0
  %2232 = vmatprep.subr.mxu0 0.0
  %2233 = vmatpush1.msra.mxu0 0.0
  %2234 = vmatprep.subr.mxu0 0.0
  %2235 = vmatpush1.msra.mxu0 0.0
  %2236 = vmatprep.mubr.f32.mxu0 0.0
  %2237 = vmatmul.mubr.f32.gmra.mrb[0].mxu0 %v1736
  %v2238 = vpop.f32.mrb[0].mxu0
  %v2239 = vadd.f32 0.0, %v2238
  %v2240 = vpop.f32.mrb[0].mxu0
  %2241 = vmatprep.mubr.f32.mxu0 0.0
  %2242 = vmatmul.mubr.f32.gmra.mrb[0].mxu0 %v1737
  %v2243 = vpop.f32.mrb[0].mxu0
  %v2244 = vadd.f32 0.0, %v2243
  %v2245 = vpop.f32.mrb[0].mxu0
  %2246 = vmatprep.mubr.f32.mxu0 0.0
  %2247 = vmatmul.mubr.f32.gmra.mrb[0].mxu0 %v1738
  %v2248 = vpop.f32.mrb[0].mxu0
  %v2249 = vadd.f32 0.0, %v2248
  %v2250 = vpop.f32.mrb[0].mxu0
  %2251 = vmatprep.mubr.f32.mxu0 0.0
  %2252 = vmatmul.mubr.f32.gmra.mrb[0].mxu0 %v1739
  %v2253 = vpop.f32.mrb[0].mxu0
  %v2254 = vadd.f32 0.0, %v2253
  %v2255 = vpop.f32.mrb[0].mxu0
  %2256 = vdwg.mxu0
  %2257 = vmatprep.subr.mxu0 0.0
  %2258 = vmatpush1.msra.mxu0 %v2037
  %2259 = vmatprep.subr.mxu0 0.0
  %2260 = vmatpush1.msra.mxu0 %v2038
  %2261 = vmatprep.subr.mxu0 0.0
  %2262 = vmatpush1.msra.mxu0 %v2039
  %2263 = vmatprep.subr.mxu0 0.0
  %2264 = vmatpush1.msra.mxu0 %v2040
  %2265 = vmatprep.subr.mxu0 0.0
  %2266 = vmatpush1.msra.mxu0 %v2041
  %2267 = vmatprep.subr.mxu0 0.0
  %2268 = vmatpush1.msra.mxu0 %v2042
  %2269 = vmatprep.subr.mxu0 0.0
  %2270 = vmatpush1.msra.mxu0 %v2043
  %2271 = vmatprep.subr.mxu0 0.0
  %2272 = vmatpush1.msra.mxu0 %v2044
  %2273 = vmatprep.subr.mxu0 0.0
  %2274 = vmatpush1.msra.mxu0 %v2045
  %2275 = vmatprep.subr.mxu0 0.0
  %2276 = vmatpush1.msra.mxu0 %v2046
  %2277 = vmatprep.subr.mxu0 0.0
  %2278 = vmatpush1.msra.mxu0 %v2047
  %2279 = vmatprep.subr.mxu0 0.0
  %2280 = vmatpush1.msra.mxu0 %v2048
  %2281 = vmatprep.subr.mxu0 0.0
  %2282 = vmatpush1.msra.mxu0 %v2049
  %2283 = vmatprep.subr.mxu0 0.0
  %2284 = vmatpush1.msra.mxu0 %v2050
  %2285 = vmatprep.subr.mxu0 0.0
  %2286 = vmatpush1.msra.mxu0 %v2051
  %2287 = vmatprep.subr.mxu0 0.0
  %2288 = vmatpush1.msra.mxu0 %v2052
  %2289 = vmatprep.subr.mxu0 0.0
  %2290 = vmatpush1.msra.mxu0 0.0
  %2291 = vmatprep.subr.mxu0 0.0
  %2292 = vmatpush1.msra.mxu0 0.0
  %2293 = vmatprep.subr.mxu0 0.0
  %2294 = vmatpush1.msra.mxu0 0.0
  %2295 = vmatprep.subr.mxu0 0.0
  %2296 = vmatpush1.msra.mxu0 0.0
  %2297 = vmatprep.subr.mxu0 0.0
  %2298 = vmatpush1.msra.mxu0 0.0
  %2299 = vmatprep.subr.mxu0 0.0
  %2300 = vmatpush1.msra.mxu0 0.0
  %2301 = vmatprep.subr.mxu0 0.0
  %2302 = vmatpush1.msra.mxu0 0.0
  %2303 = vmatprep.subr.mxu0 0.0
  %2304 = vmatpush1.msra.mxu0 0.0
  %2305 = vmatprep.subr.mxu0 0.0
  %2306 = vmatpush1.msra.mxu0 0.0
  %2307 = vmatprep.subr.mxu0 0.0
  %2308 = vmatpush1.msra.mxu0 0.0
  %2309 = vmatprep.subr.mxu0 0.0
  %2310 = vmatpush1.msra.mxu0 0.0
  %2311 = vmatprep.subr.mxu0 0.0
  %2312 = vmatpush1.msra.mxu0 0.0
  %2313 = vmatprep.subr.mxu0 0.0
  %2314 = vmatpush1.msra.mxu0 0.0
  %2315 = vmatprep.subr.mxu0 0.0
  %2316 = vmatpush1.msra.mxu0 0.0
  %2317 = vmatprep.subr.mxu0 0.0
  %2318 = vmatpush1.msra.mxu0 0.0
  %2319 = vmatprep.subr.mxu0 0.0
  %2320 = vmatpush1.msra.mxu0 0.0
  %2321 = vmatprep.mubr.f32.mxu0 0.0
  %2322 = vmatmul.mubr.f32.gmra.mrb[0].mxu0 %v2154
  %v2323 = vpop.f32.mrb[0].mxu0
  %v2324 = vadd.f32 %v2239, %v2323
  %v2325 = vpop.f32.mrb[0].mxu0
  %2326 = vmatprep.mubr.f32.mxu0 0.0
  %2327 = vmatmul.mubr.f32.gmra.mrb[0].mxu0 %v2159
  %v2328 = vpop.f32.mrb[0].mxu0
  %v2329 = vadd.f32 %v2244, %v2328
  %v2330 = vpop.f32.mrb[0].mxu0
  %2331 = vmatprep.mubr.f32.mxu0 0.0
  %2332 = vmatmul.mubr.f32.gmra.mrb[0].mxu0 %v2164
  %v2333 = vpop.f32.mrb[0].mxu0
  %v2334 = vadd.f32 %v2249, %v2333
  %v2335 = vpop.f32.mrb[0].mxu0
  %2336 = vmatprep.mubr.f32.mxu0 0.0
  %2337 = vmatmul.mubr.f32.gmra.mrb[0].mxu0 %v2169
  %v2338 = vpop.f32.mrb[0].mxu0
  %v2339 = vadd.f32 %v2254, %v2338
  %v2340 = vpop.f32.mrb[0].mxu0
  %2341 = vdwg.mxu0
  %2342 = vmatprep.subr.mxu0 0.0
  %2343 = vmatpush1.msra.mxu0 %v1736
  %2344 = vmatprep.subr.mxu0 0.0
  %2345 = vmatpush1.msra.mxu0 %v1737
  %2346 = vmatprep.subr.mxu0 0.0
  %2347 = vmatpush1.msra.mxu0 %v1738
  %2348 = vmatprep.subr.mxu0 0.0
  %2349 = vmatpush1.msra.mxu0 %v1739
  %2350 = vmatprep.subr.mxu0 0.0
  %2351 = vmatpush1.msra.mxu0 0.0
  %2352 = vmatprep.subr.mxu0 0.0
  %2353 = vmatpush1.msra.mxu0 0.0
  %2354 = vmatprep.subr.mxu0 0.0
  %2355 = vmatpush1.msra.mxu0 0.0
  %2356 = vmatprep.subr.mxu0 0.0
  %2357 = vmatpush1.msra.mxu0 0.0
  %2358 = vmatprep.subr.mxu0 0.0
  %2359 = vmatpush1.msra.mxu0 0.0
  %2360 = vmatprep.subr.mxu0 0.0
  %2361 = vmatpush1.msra.mxu0 0.0
  %2362 = vmatprep.subr.mxu0 0.0
  %2363 = vmatpush1.msra.mxu0 0.0
  %2364 = vmatprep.subr.mxu0 0.0
  %2365 = vmatpush1.msra.mxu0 0.0
  %2366 = vmatprep.subr.mxu0 0.0
  %2367 = vmatpush1.msra.mxu0 0.0
  %2368 = vmatprep.subr.mxu0 0.0
  %2369 = vmatpush1.msra.mxu0 0.0
  %2370 = vmatprep.subr.mxu0 0.0
  %2371 = vmatpush1.msra.mxu0 0.0
  %2372 = vmatprep.subr.mxu0 0.0
  %2373 = vmatpush1.msra.mxu0 0.0
  %2374 = vmatprep.subr.mxu0 0.0
  %2375 = vmatpush1.msra.mxu0 0.0
  %2376 = vmatprep.subr.mxu0 0.0
  %2377 = vmatpush1.msra.mxu0 0.0
  %2378 = vmatprep.subr.mxu0 0.0
  %2379 = vmatpush1.msra.mxu0 0.0
  %2380 = vmatprep.subr.mxu0 0.0
  %2381 = vmatpush1.msra.mxu0 0.0
  %2382 = vmatprep.subr.mxu0 0.0
  %2383 = vmatpush1.msra.mxu0 0.0
  %2384 = vmatprep.subr.mxu0 0.0
  %2385 = vmatpush1.msra.mxu0 0.0
  %2386 = vmatprep.subr.mxu0 0.0
  %2387 = vmatpush1.msra.mxu0 0.0
  %2388 = vmatprep.subr.mxu0 0.0
  %2389 = vmatpush1.msra.mxu0 0.0
  %2390 = vmatprep.subr.mxu0 0.0
  %2391 = vmatpush1.msra.mxu0 0.0
  %2392 = vmatprep.subr.mxu0 0.0
  %2393 = vmatpush1.msra.mxu0 0.0
  %2394 = vmatprep.subr.mxu0 0.0
  %2395 = vmatpush1.msra.mxu0 0.0
  %2396 = vmatprep.subr.mxu0 0.0
  %2397 = vmatpush1.msra.mxu0 0.0
  %2398 = vmatprep.subr.mxu0 0.0
  %2399 = vmatpush1.msra.mxu0 0.0
  %2400 = vmatprep.subr.mxu0 0.0
  %2401 = vmatpush1.msra.mxu0 0.0
  %2402 = vmatprep.subr.mxu0 0.0
  %2403 = vmatpush1.msra.mxu0 0.0
  %2404 = vmatprep.subr.mxu0 0.0
  %2405 = vmatpush1.msra.mxu0 0.0
  %2406 = vmatprep.mubr.f32.mxu0 0.0
  %2407 = vmatmul.mubr.f32.gmra.mrb[0].mxu0 %v666
  %v2408 = vpop.f32.mrb[0].mxu0
  %v2409 = vadd.f32 0.0, %v2408
  %v2410 = vpop.f32.mrb[0].mxu0
  %2411 = vmatprep.mubr.f32.mxu0 0.0
  %2412 = vmatmul.mubr.f32.gmra.mrb[0].mxu0 %v669
  %v2413 = vpop.f32.mrb[0].mxu0
  %v2414 = vadd.f32 0.0, %v2413
  %v2415 = vpop.f32.mrb[0].mxu0
  %2416 = vmatprep.mubr.f32.mxu0 0.0
  %2417 = vmatmul.mubr.f32.gmra.mrb[0].mxu0 %v672
  %v2418 = vpop.f32.mrb[0].mxu0
  %v2419 = vadd.f32 0.0, %v2418
  %v2420 = vpop.f32.mrb[0].mxu0
  %2421 = vmatprep.mubr.f32.mxu0 0.0
  %2422 = vmatmul.mubr.f32.gmra.mrb[0].mxu0 %v675
  %v2423 = vpop.f32.mrb[0].mxu0
  %v2424 = vadd.f32 0.0, %v2423
  %v2425 = vpop.f32.mrb[0].mxu0
  %2426 = vdwg.mxu0
  %2427 = vmatprep.subr.mxu0 0.0
  %2428 = vmatpush1.msra.mxu0 %v2071
  %2429 = vmatprep.subr.mxu0 0.0
  %2430 = vmatpush1.msra.mxu0 %v2072
  %2431 = vmatprep.subr.mxu0 0.0
  %2432 = vmatpush1.msra.mxu0 %v2073
  %2433 = vmatprep.subr.mxu0 0.0
  %2434 = vmatpush1.msra.mxu0 %v2074
  %2435 = vmatprep.subr.mxu0 0.0
  %2436 = vmatpush1.msra.mxu0 %v2075
  %2437 = vmatprep.subr.mxu0 0.0
  %2438 = vmatpush1.msra.mxu0 %v2076
  %2439 = vmatprep.subr.mxu0 0.0
  %2440 = vmatpush1.msra.mxu0 %v2077
  %2441 = vmatprep.subr.mxu0 0.0
  %2442 = vmatpush1.msra.mxu0 %v2078
  %2443 = vmatprep.subr.mxu0 0.0
  %2444 = vmatpush1.msra.mxu0 %v2079
  %2445 = vmatprep.subr.mxu0 0.0
  %2446 = vmatpush1.msra.mxu0 %v2080
  %2447 = vmatprep.subr.mxu0 0.0
  %2448 = vmatpush1.msra.mxu0 %v2081
  %2449 = vmatprep.subr.mxu0 0.0
  %2450 = vmatpush1.msra.mxu0 %v2082
  %2451 = vmatprep.subr.mxu0 0.0
  %2452 = vmatpush1.msra.mxu0 %v2083
  %2453 = vmatprep.subr.mxu0 0.0
  %2454 = vmatpush1.msra.mxu0 %v2084
  %2455 = vmatprep.subr.mxu0 0.0
  %2456 = vmatpush1.msra.mxu0 %v2085
  %2457 = vmatprep.subr.mxu0 0.0
  %2458 = vmatpush1.msra.mxu0 %v2086
  %2459 = vmatprep.subr.mxu0 0.0
  %2460 = vmatpush1.msra.mxu0 0.0
  %2461 = vmatprep.subr.mxu0 0.0
  %2462 = vmatpush1.msra.mxu0 0.0
  %2463 = vmatprep.subr.mxu0 0.0
  %2464 = vmatpush1.msra.mxu0 0.0
  %2465 = vmatprep.subr.mxu0 0.0
  %2466 = vmatpush1.msra.mxu0 0.0
  %2467 = vmatprep.subr.mxu0 0.0
  %2468 = vmatpush1.msra.mxu0 0.0
  %2469 = vmatprep.subr.mxu0 0.0
  %2470 = vmatpush1.msra.mxu0 0.0
  %2471 = vmatprep.subr.mxu0 0.0
  %2472 = vmatpush1.msra.mxu0 0.0
  %2473 = vmatprep.subr.mxu0 0.0
  %2474 = vmatpush1.msra.mxu0 0.0
  %2475 = vmatprep.subr.mxu0 0.0
  %2476 = vmatpush1.msra.mxu0 0.0
  %2477 = vmatprep.subr.mxu0 0.0
  %2478 = vmatpush1.msra.mxu0 0.0
  %2479 = vmatprep.subr.mxu0 0.0
  %2480 = vmatpush1.msra.mxu0 0.0
  %2481 = vmatprep.subr.mxu0 0.0
  %2482 = vmatpush1.msra.mxu0 0.0
  %2483 = vmatprep.subr.mxu0 0.0
  %2484 = vmatpush1.msra.mxu0 0.0
  %2485 = vmatprep.subr.mxu0 0.0
  %2486 = vmatpush1.msra.mxu0 0.0
  %2487 = vmatprep.subr.mxu0 0.0
  %2488 = vmatpush1.msra.mxu0 0.0
  %2489 = vmatprep.subr.mxu0 0.0
  %2490 = vmatpush1.msra.mxu0 0.0
  %2491 = vmatprep.mubr.f32.mxu0 0.0
  %2492 = vmatmul.mubr.f32.gmra.mrb[0].mxu0 %v2409
  %v2493 = vpop.f32.mrb[0].mxu0
  %v2494 = vadd.f32 0.0, %v2493
  %v2495 = vpop.f32.mrb[0].mxu0
  %2496 = vmatprep.mubr.f32.mxu0 0.0
  %2497 = vmatmul.mubr.f32.gmra.mrb[0].mxu0 %v2414
  %v2498 = vpop.f32.mrb[0].mxu0
  %v2499 = vadd.f32 0.0, %v2498
  %v2500 = vpop.f32.mrb[0].mxu0
  %2501 = vmatprep.mubr.f32.mxu0 0.0
  %2502 = vmatmul.mubr.f32.gmra.mrb[0].mxu0 %v2419
  %v2503 = vpop.f32.mrb[0].mxu0
  %v2504 = vadd.f32 0.0, %v2503
  %v2505 = vpop.f32.mrb[0].mxu0
  %2506 = vmatprep.mubr.f32.mxu0 0.0
  %2507 = vmatmul.mubr.f32.gmra.mrb[0].mxu0 %v2424
  %v2508 = vpop.f32.mrb[0].mxu0
  %v2509 = vadd.f32 0.0, %v2508
  %v2510 = vpop.f32.mrb[0].mxu0
  %2511 = vdwg.mxu0
  %v2512 = vadd.f32 %v2324, %v2494
  %v2513 = vadd.f32 %v2329, %v2499
  %v2514 = vadd.f32 %v2334, %v2504
  %v2515 = vadd.f32 %v2339, %v2509
  %v2516 = vadd.f32 %v2512, %v2513
  %v2517 = vadd.f32 %v2516, %v2514
  %v2518 = vadd.f32 %v2517, %v2515
  %v2519 = vrot.slane %v2518, 4
  %v2520 = vadd.f32 %v2518, %v2519
  %v2521 = vrot.slane %v2520, 2
  %v2522 = vadd.f32 %v2520, %v2521
  %v2523 = vrot.slane %v2522, 1
  %v2524 = vadd.f32 %v2522, %v2523
  %v2525 = vmul.f32 %v2512, %v2512
  %v2526 = vmul.f32 %v2513, %v2513
  %v2527 = vmul.f32 %v2514, %v2514
  %v2528 = vmul.f32 %v2515, %v2515
  %v2529 = vadd.f32 %v2525, %v2526
  %v2530 = vadd.f32 %v2529, %v2527
  %v2531 = vadd.f32 %v2530, %v2528
  %v2532 = vrot.slane %v2531, 4
  %v2533 = vadd.f32 %v2531, %v2532
  %v2534 = vrot.slane %v2533, 2
  %v2535 = vadd.f32 %v2533, %v2534
  %v2536 = vrot.slane %v2535, 1
  %v2537 = vadd.f32 %v2535, %v2536
  %2538 = vmatprep.subr.mxu0 0.0
  %2539 = vmatpush1.msra.mxu0 %v33
  %2540 = vmatprep.subr.mxu0 0.0
  %2541 = vmatpush1.msra.mxu0 %v34
  %2542 = vmatprep.subr.mxu0 0.0
  %2543 = vmatpush1.msra.mxu0 %v35
  %2544 = vmatprep.subr.mxu0 0.0
  %2545 = vmatpush1.msra.mxu0 %v36
  %2546 = vmatprep.subr.mxu0 0.0
  %2547 = vmatpush1.msra.mxu0 %v37
  %2548 = vmatprep.subr.mxu0 0.0
  %2549 = vmatpush1.msra.mxu0 %v38
  %2550 = vmatprep.subr.mxu0 0.0
  %2551 = vmatpush1.msra.mxu0 %v39
  %2552 = vmatprep.subr.mxu0 0.0
  %2553 = vmatpush1.msra.mxu0 %v40
  %2554 = vmatprep.subr.mxu0 0.0
  %2555 = vmatpush1.msra.mxu0 %v41
  %2556 = vmatprep.subr.mxu0 0.0
  %2557 = vmatpush1.msra.mxu0 %v42
  %2558 = vmatprep.subr.mxu0 0.0
  %2559 = vmatpush1.msra.mxu0 %v43
  %2560 = vmatprep.subr.mxu0 0.0
  %2561 = vmatpush1.msra.mxu0 %v44
  %2562 = vmatprep.subr.mxu0 0.0
  %2563 = vmatpush1.msra.mxu0 %v45
  %2564 = vmatprep.subr.mxu0 0.0
  %2565 = vmatpush1.msra.mxu0 %v46
  %2566 = vmatprep.subr.mxu0 0.0
  %2567 = vmatpush1.msra.mxu0 %v47
  %2568 = vmatprep.subr.mxu0 0.0
  %2569 = vmatpush1.msra.mxu0 %v48
  %2570 = vmatprep.subr.mxu0 0.0
  %2571 = vmatpush1.msra.mxu0 0.0
  %2572 = vmatprep.subr.mxu0 0.0
  %2573 = vmatpush1.msra.mxu0 0.0
  %2574 = vmatprep.subr.mxu0 0.0
  %2575 = vmatpush1.msra.mxu0 0.0
  %2576 = vmatprep.subr.mxu0 0.0
  %2577 = vmatpush1.msra.mxu0 0.0
  %2578 = vmatprep.subr.mxu0 0.0
  %2579 = vmatpush1.msra.mxu0 0.0
  %2580 = vmatprep.subr.mxu0 0.0
  %2581 = vmatpush1.msra.mxu0 0.0
  %2582 = vmatprep.subr.mxu0 0.0
  %2583 = vmatpush1.msra.mxu0 0.0
  %2584 = vmatprep.subr.mxu0 0.0
  %2585 = vmatpush1.msra.mxu0 0.0
  %2586 = vmatprep.subr.mxu0 0.0
  %2587 = vmatpush1.msra.mxu0 0.0
  %2588 = vmatprep.subr.mxu0 0.0
  %2589 = vmatpush1.msra.mxu0 0.0
  %2590 = vmatprep.subr.mxu0 0.0
  %2591 = vmatpush1.msra.mxu0 0.0
  %2592 = vmatprep.subr.mxu0 0.0
  %2593 = vmatpush1.msra.mxu0 0.0
  %2594 = vmatprep.subr.mxu0 0.0
  %2595 = vmatpush1.msra.mxu0 0.0
  %2596 = vmatprep.subr.mxu0 0.0
  %2597 = vmatpush1.msra.mxu0 0.0
  %2598 = vmatprep.subr.mxu0 0.0
  %2599 = vmatpush1.msra.mxu0 0.0
  %2600 = vmatprep.subr.mxu0 0.0
  %2601 = vmatpush1.msra.mxu0 0.0
  %2602 = vmatprep.mubr.f32.mxu0 0.0
  %2603 = vmatmul.mubr.f32.gmra.mrb[0].mxu0 %v2524
  %v2604 = vpop.f32.mrb[0].mxu0
  %v2605 = vadd.f32 0.0, %v2604
  %v2606 = vpop.f32.mrb[0].mxu0
  %2607 = vdwg.mxu0
  %2608 = vmatprep.subr.mxu0 0.0
  %2609 = vmatpush1.msra.mxu0 %v33
  %2610 = vmatprep.subr.mxu0 0.0
  %2611 = vmatpush1.msra.mxu0 %v34
  %2612 = vmatprep.subr.mxu0 0.0
  %2613 = vmatpush1.msra.mxu0 %v35
  %2614 = vmatprep.subr.mxu0 0.0
  %2615 = vmatpush1.msra.mxu0 %v36
  %2616 = vmatprep.subr.mxu0 0.0
  %2617 = vmatpush1.msra.mxu0 %v37
  %2618 = vmatprep.subr.mxu0 0.0
  %2619 = vmatpush1.msra.mxu0 %v38
  %2620 = vmatprep.subr.mxu0 0.0
  %2621 = vmatpush1.msra.mxu0 %v39
  %2622 = vmatprep.subr.mxu0 0.0
  %2623 = vmatpush1.msra.mxu0 %v40
  %2624 = vmatprep.subr.mxu0 0.0
  %2625 = vmatpush1.msra.mxu0 %v41
  %2626 = vmatprep.subr.mxu0 0.0
  %2627 = vmatpush1.msra.mxu0 %v42
  %2628 = vmatprep.subr.mxu0 0.0
  %2629 = vmatpush1.msra.mxu0 %v43
  %2630 = vmatprep.subr.mxu0 0.0
  %2631 = vmatpush1.msra.mxu0 %v44
  %2632 = vmatprep.subr.mxu0 0.0
  %2633 = vmatpush1.msra.mxu0 %v45
  %2634 = vmatprep.subr.mxu0 0.0
  %2635 = vmatpush1.msra.mxu0 %v46
  %2636 = vmatprep.subr.mxu0 0.0
  %2637 = vmatpush1.msra.mxu0 %v47
  %2638 = vmatprep.subr.mxu0 0.0
  %2639 = vmatpush1.msra.mxu0 %v48
  %2640 = vmatprep.subr.mxu0 0.0
  %2641 = vmatpush1.msra.mxu0 0.0
  %2642 = vmatprep.subr.mxu0 0.0
  %2643 = vmatpush1.msra.mxu0 0.0
  %2644 = vmatprep.subr.mxu0 0.0
  %2645 = vmatpush1.msra.mxu0 0.0
  %2646 = vmatprep.subr.mxu0 0.0
  %2647 = vmatpush1.msra.mxu0 0.0
  %2648 = vmatprep.subr.mxu0 0.0
  %2649 = vmatpush1.msra.mxu0 0.0
  %2650 = vmatprep.subr.mxu0 0.0
  %2651 = vmatpush1.msra.mxu0 0.0
  %2652 = vmatprep.subr.mxu0 0.0
  %2653 = vmatpush1.msra.mxu0 0.0
  %2654 = vmatprep.subr.mxu0 0.0
  %2655 = vmatpush1.msra.mxu0 0.0
  %2656 = vmatprep.subr.mxu0 0.0
  %2657 = vmatpush1.msra.mxu0 0.0
  %2658 = vmatprep.subr.mxu0 0.0
  %2659 = vmatpush1.msra.mxu0 0.0
  %2660 = vmatprep.subr.mxu0 0.0
  %2661 = vmatpush1.msra.mxu0 0.0
  %2662 = vmatprep.subr.mxu0 0.0
  %2663 = vmatpush1.msra.mxu0 0.0
  %2664 = vmatprep.subr.mxu0 0.0
  %2665 = vmatpush1.msra.mxu0 0.0
  %2666 = vmatprep.subr.mxu0 0.0
  %2667 = vmatpush1.msra.mxu0 0.0
  %2668 = vmatprep.subr.mxu0 0.0
  %2669 = vmatpush1.msra.mxu0 0.0
  %2670 = vmatprep.subr.mxu0 0.0
  %2671 = vmatpush1.msra.mxu0 0.0
  %2672 = vmatprep.mubr.f32.mxu0 0.0
  %2673 = vmatmul.mubr.f32.gmra.mrb[0].mxu0 %v2537
  %v2674 = vpop.f32.mrb[0].mxu0
  %v2675 = vadd.f32 0.0, %v2674
  %v2676 = vpop.f32.mrb[0].mxu0
  %2677 = vdwg.mxu0
  %v2678 = vmul.f32 %v2605, %v2605
  %v2679 = vsub.f32 %v2675, %v2678
  %v2680 = vmax.f32 %v2679, 0.0
  %s2681 = scalar_lea.vmem %s6, 3
  %v2682 = vld [vmem:[%s2681] sm:$0x1]
  %v2683 = vadd.f32 %v2680, 1e-05
  %v2684 = vrsqrt.pop %v2683
  %v2685 = vmul.f32 %v2682, %v2684
  %s2686 = scalar_lea.vmem %s7, 3
  %v2687 = vld [vmem:[%s2686] sm:$0x1]
  %v2688 = vmul.f32 %v2605, %v2685
  %v2689 = vsub.f32 %v2687, %v2688
  %v2691 = vlaneseq
  %v2692 = vshrl.u32 %v2691, 7
  %v2693 = vsub.s32 0, %v2692
  %v2694 = vrot.slane %v2685, %v2693
  %v2696 = vmul.f32 %v2512, %v2694
  %v2697 = vmul.f32 %v2513, %v2694
  %v2698 = vmul.f32 %v2514, %v2694
  %v2699 = vmul.f32 %v2515, %v2694
  %v2701 = vlaneseq
  %v2702 = vshrl.u32 %v2701, 7
  %v2703 = vsub.s32 0, %v2702
  %v2704 = vrot.slane %v2689, %v2703
  %v2706 = vadd.f32 %v2696, %v2704
  %v2707 = vadd.f32 %v2697, %v2704
  %v2708 = vadd.f32 %v2698, %v2704
  %v2709 = vadd.f32 %v2699, %v2704
  %v2710 = vmax.f32 %v2706, 0.0
  %v2711 = vmax.f32 %v2707, 0.0
  %v2712 = vmax.f32 %v2708, 0.0
  %v2713 = vmax.f32 %v2709, 0.0
  %s2714 = scalar_lea.vmem %s4, 768
  %v2715 = vld [vmem:[%s2714] sm:$0xff]
  %v2716 = vld [vmem:[%s2714 + $0x8] sm:$0xff]
  %v2717 = vld [vmem:[%s2714 + $0x10] sm:$0xff]
  %v2718 = vld [vmem:[%s2714 + $0x18] sm:$0xff]
  %v2719 = vld [vmem:[%s2714 + $0x20] sm:$0xff]
  %v2720 = vld [vmem:[%s2714 + $0x28] sm:$0xff]
  %v2721 = vld [vmem:[%s2714 + $0x30] sm:$0xff]
  %v2722 = vld [vmem:[%s2714 + $0x38] sm:$0xff]
  %v2723 = vld [vmem:[%s2714 + $0x40] sm:$0xff]
  %v2724 = vld [vmem:[%s2714 + $0x48] sm:$0xff]
  %v2725 = vld [vmem:[%s2714 + $0x50] sm:$0xff]
  %v2726 = vld [vmem:[%s2714 + $0x58] sm:$0xff]
  %v2727 = vld [vmem:[%s2714 + $0x60] sm:$0xff]
  %v2728 = vld [vmem:[%s2714 + $0x68] sm:$0xff]
  %v2729 = vld [vmem:[%s2714 + $0x70] sm:$0xff]
  %v2730 = vld [vmem:[%s2714 + $0x78] sm:$0xff]
  %s2731 = scalar_lea.vmem %s4, 896
  %v2732 = vld [vmem:[%s2731] sm:$0xff]
  %v2733 = vld [vmem:[%s2731 + $0x8] sm:$0xff]
  %v2734 = vld [vmem:[%s2731 + $0x10] sm:$0xff]
  %v2735 = vld [vmem:[%s2731 + $0x18] sm:$0xff]
  %v2736 = vld [vmem:[%s2731 + $0x20] sm:$0xff]
  %v2737 = vld [vmem:[%s2731 + $0x28] sm:$0xff]
  %v2738 = vld [vmem:[%s2731 + $0x30] sm:$0xff]
  %v2739 = vld [vmem:[%s2731 + $0x38] sm:$0xff]
  %v2740 = vld [vmem:[%s2731 + $0x40] sm:$0xff]
  %v2741 = vld [vmem:[%s2731 + $0x48] sm:$0xff]
  %v2742 = vld [vmem:[%s2731 + $0x50] sm:$0xff]
  %v2743 = vld [vmem:[%s2731 + $0x58] sm:$0xff]
  %v2744 = vld [vmem:[%s2731 + $0x60] sm:$0xff]
  %v2745 = vld [vmem:[%s2731 + $0x68] sm:$0xff]
  %v2746 = vld [vmem:[%s2731 + $0x70] sm:$0xff]
  %v2747 = vld [vmem:[%s2731 + $0x78] sm:$0xff]
  %s2748 = scalar_lea.vmem %s4, 1024
  %v2749 = vld [vmem:[%s2748] sm:$0xff]
  %v2750 = vld [vmem:[%s2748 + $0x8] sm:$0xff]
  %v2751 = vld [vmem:[%s2748 + $0x10] sm:$0xff]
  %v2752 = vld [vmem:[%s2748 + $0x18] sm:$0xff]
  %v2753 = vld [vmem:[%s2748 + $0x20] sm:$0xff]
  %v2754 = vld [vmem:[%s2748 + $0x28] sm:$0xff]
  %v2755 = vld [vmem:[%s2748 + $0x30] sm:$0xff]
  %v2756 = vld [vmem:[%s2748 + $0x38] sm:$0xff]
  %v2757 = vld [vmem:[%s2748 + $0x40] sm:$0xff]
  %v2758 = vld [vmem:[%s2748 + $0x48] sm:$0xff]
  %v2759 = vld [vmem:[%s2748 + $0x50] sm:$0xff]
  %v2760 = vld [vmem:[%s2748 + $0x58] sm:$0xff]
  %v2761 = vld [vmem:[%s2748 + $0x60] sm:$0xff]
  %v2762 = vld [vmem:[%s2748 + $0x68] sm:$0xff]
  %v2763 = vld [vmem:[%s2748 + $0x70] sm:$0xff]
  %v2764 = vld [vmem:[%s2748 + $0x78] sm:$0xff]
  %2765 = vmatprep.subr.mxu0 0.0
  %2766 = vmatpush1.msra.mxu0 %v2710
  %2767 = vmatprep.subr.mxu0 0.0
  %2768 = vmatpush1.msra.mxu0 %v2711
  %2769 = vmatprep.subr.mxu0 0.0
  %2770 = vmatpush1.msra.mxu0 %v2712
  %2771 = vmatprep.subr.mxu0 0.0
  %2772 = vmatpush1.msra.mxu0 %v2713
  %2773 = vmatprep.subr.mxu0 0.0
  %2774 = vmatpush1.msra.mxu0 0.0
  %2775 = vmatprep.subr.mxu0 0.0
  %2776 = vmatpush1.msra.mxu0 0.0
  %2777 = vmatprep.subr.mxu0 0.0
  %2778 = vmatpush1.msra.mxu0 0.0
  %2779 = vmatprep.subr.mxu0 0.0
  %2780 = vmatpush1.msra.mxu0 0.0
  %2781 = vmatprep.subr.mxu0 0.0
  %2782 = vmatpush1.msra.mxu0 0.0
  %2783 = vmatprep.subr.mxu0 0.0
  %2784 = vmatpush1.msra.mxu0 0.0
  %2785 = vmatprep.subr.mxu0 0.0
  %2786 = vmatpush1.msra.mxu0 0.0
  %2787 = vmatprep.subr.mxu0 0.0
  %2788 = vmatpush1.msra.mxu0 0.0
  %2789 = vmatprep.subr.mxu0 0.0
  %2790 = vmatpush1.msra.mxu0 0.0
  %2791 = vmatprep.subr.mxu0 0.0
  %2792 = vmatpush1.msra.mxu0 0.0
  %2793 = vmatprep.subr.mxu0 0.0
  %2794 = vmatpush1.msra.mxu0 0.0
  %2795 = vmatprep.subr.mxu0 0.0
  %2796 = vmatpush1.msra.mxu0 0.0
  %2797 = vmatprep.subr.mxu0 0.0
  %2798 = vmatpush1.msra.mxu0 0.0
  %2799 = vmatprep.subr.mxu0 0.0
  %2800 = vmatpush1.msra.mxu0 0.0
  %2801 = vmatprep.subr.mxu0 0.0
  %2802 = vmatpush1.msra.mxu0 0.0
  %2803 = vmatprep.subr.mxu0 0.0
  %2804 = vmatpush1.msra.mxu0 0.0
  %2805 = vmatprep.subr.mxu0 0.0
  %2806 = vmatpush1.msra.mxu0 0.0
  %2807 = vmatprep.subr.mxu0 0.0
  %2808 = vmatpush1.msra.mxu0 0.0
  %2809 = vmatprep.subr.mxu0 0.0
  %2810 = vmatpush1.msra.mxu0 0.0
  %2811 = vmatprep.subr.mxu0 0.0
  %2812 = vmatpush1.msra.mxu0 0.0
  %2813 = vmatprep.subr.mxu0 0.0
  %2814 = vmatpush1.msra.mxu0 0.0
  %2815 = vmatprep.subr.mxu0 0.0
  %2816 = vmatpush1.msra.mxu0 0.0
  %2817 = vmatprep.subr.mxu0 0.0
  %2818 = vmatpush1.msra.mxu0 0.0
  %2819 = vmatprep.subr.mxu0 0.0
  %2820 = vmatpush1.msra.mxu0 0.0
  %2821 = vmatprep.subr.mxu0 0.0
  %2822 = vmatpush1.msra.mxu0 0.0
  %2823 = vmatprep.subr.mxu0 0.0
  %2824 = vmatpush1.msra.mxu0 0.0
  %2825 = vmatprep.subr.mxu0 0.0
  %2826 = vmatpush1.msra.mxu0 0.0
  %2827 = vmatprep.subr.mxu0 0.0
  %2828 = vmatpush1.msra.mxu0 0.0
  %2829 = vmatprep.mubr.f32.mxu0 0.0
  %2830 = vmatmul.mubr.f32.gmra.mrb[0].mxu0 %v387
  %v2831 = vpop.f32.mrb[0].mxu0
  %v2832 = vadd.f32 0.0, %v2831
  %v2833 = vpop.f32.mrb[0].mxu0
  %2834 = vmatprep.mubr.f32.mxu0 0.0
  %2835 = vmatmul.mubr.f32.gmra.mrb[0].mxu0 %v390
  %v2836 = vpop.f32.mrb[0].mxu0
  %v2837 = vadd.f32 0.0, %v2836
  %v2838 = vpop.f32.mrb[0].mxu0
  %2839 = vmatprep.mubr.f32.mxu0 0.0
  %2840 = vmatmul.mubr.f32.gmra.mrb[0].mxu0 %v393
  %v2841 = vpop.f32.mrb[0].mxu0
  %v2842 = vadd.f32 0.0, %v2841
  %v2843 = vpop.f32.mrb[0].mxu0
  %2844 = vmatprep.mubr.f32.mxu0 0.0
  %2845 = vmatmul.mubr.f32.gmra.mrb[0].mxu0 %v396
  %v2846 = vpop.f32.mrb[0].mxu0
  %v2847 = vadd.f32 0.0, %v2846
  %v2848 = vpop.f32.mrb[0].mxu0
  %2849 = vdwg.mxu0
  %2850 = vmatprep.subr.mxu0 0.0
  %2851 = vmatpush1.msra.mxu0 %v2732
  %2852 = vmatprep.subr.mxu0 0.0
  %2853 = vmatpush1.msra.mxu0 %v2733
  %2854 = vmatprep.subr.mxu0 0.0
  %2855 = vmatpush1.msra.mxu0 %v2734
  %2856 = vmatprep.subr.mxu0 0.0
  %2857 = vmatpush1.msra.mxu0 %v2735
  %2858 = vmatprep.subr.mxu0 0.0
  %2859 = vmatpush1.msra.mxu0 %v2736
  %2860 = vmatprep.subr.mxu0 0.0
  %2861 = vmatpush1.msra.mxu0 %v2737
  %2862 = vmatprep.subr.mxu0 0.0
  %2863 = vmatpush1.msra.mxu0 %v2738
  %2864 = vmatprep.subr.mxu0 0.0
  %2865 = vmatpush1.msra.mxu0 %v2739
  %2866 = vmatprep.subr.mxu0 0.0
  %2867 = vmatpush1.msra.mxu0 %v2740
  %2868 = vmatprep.subr.mxu0 0.0
  %2869 = vmatpush1.msra.mxu0 %v2741
  %2870 = vmatprep.subr.mxu0 0.0
  %2871 = vmatpush1.msra.mxu0 %v2742
  %2872 = vmatprep.subr.mxu0 0.0
  %2873 = vmatpush1.msra.mxu0 %v2743
  %2874 = vmatprep.subr.mxu0 0.0
  %2875 = vmatpush1.msra.mxu0 %v2744
  %2876 = vmatprep.subr.mxu0 0.0
  %2877 = vmatpush1.msra.mxu0 %v2745
  %2878 = vmatprep.subr.mxu0 0.0
  %2879 = vmatpush1.msra.mxu0 %v2746
  %2880 = vmatprep.subr.mxu0 0.0
  %2881 = vmatpush1.msra.mxu0 %v2747
  %2882 = vmatprep.subr.mxu0 0.0
  %2883 = vmatpush1.msra.mxu0 0.0
  %2884 = vmatprep.subr.mxu0 0.0
  %2885 = vmatpush1.msra.mxu0 0.0
  %2886 = vmatprep.subr.mxu0 0.0
  %2887 = vmatpush1.msra.mxu0 0.0
  %2888 = vmatprep.subr.mxu0 0.0
  %2889 = vmatpush1.msra.mxu0 0.0
  %2890 = vmatprep.subr.mxu0 0.0
  %2891 = vmatpush1.msra.mxu0 0.0
  %2892 = vmatprep.subr.mxu0 0.0
  %2893 = vmatpush1.msra.mxu0 0.0
  %2894 = vmatprep.subr.mxu0 0.0
  %2895 = vmatpush1.msra.mxu0 0.0
  %2896 = vmatprep.subr.mxu0 0.0
  %2897 = vmatpush1.msra.mxu0 0.0
  %2898 = vmatprep.subr.mxu0 0.0
  %2899 = vmatpush1.msra.mxu0 0.0
  %2900 = vmatprep.subr.mxu0 0.0
  %2901 = vmatpush1.msra.mxu0 0.0
  %2902 = vmatprep.subr.mxu0 0.0
  %2903 = vmatpush1.msra.mxu0 0.0
  %2904 = vmatprep.subr.mxu0 0.0
  %2905 = vmatpush1.msra.mxu0 0.0
  %2906 = vmatprep.subr.mxu0 0.0
  %2907 = vmatpush1.msra.mxu0 0.0
  %2908 = vmatprep.subr.mxu0 0.0
  %2909 = vmatpush1.msra.mxu0 0.0
  %2910 = vmatprep.subr.mxu0 0.0
  %2911 = vmatpush1.msra.mxu0 0.0
  %2912 = vmatprep.subr.mxu0 0.0
  %2913 = vmatpush1.msra.mxu0 0.0
  %2914 = vmatprep.mubr.f32.mxu0 0.0
  %2915 = vmatmul.mubr.f32.gmra.mrb[0].mxu0 %v2710
  %v2916 = vpop.f32.mrb[0].mxu0
  %v2917 = vadd.f32 0.0, %v2916
  %v2918 = vpop.f32.mrb[0].mxu0
  %2919 = vmatprep.mubr.f32.mxu0 0.0
  %2920 = vmatmul.mubr.f32.gmra.mrb[0].mxu0 %v2711
  %v2921 = vpop.f32.mrb[0].mxu0
  %v2922 = vadd.f32 0.0, %v2921
  %v2923 = vpop.f32.mrb[0].mxu0
  %2924 = vmatprep.mubr.f32.mxu0 0.0
  %2925 = vmatmul.mubr.f32.gmra.mrb[0].mxu0 %v2712
  %v2926 = vpop.f32.mrb[0].mxu0
  %v2927 = vadd.f32 0.0, %v2926
  %v2928 = vpop.f32.mrb[0].mxu0
  %2929 = vmatprep.mubr.f32.mxu0 0.0
  %2930 = vmatmul.mubr.f32.gmra.mrb[0].mxu0 %v2713
  %v2931 = vpop.f32.mrb[0].mxu0
  %v2932 = vadd.f32 0.0, %v2931
  %v2933 = vpop.f32.mrb[0].mxu0
  %2934 = vdwg.mxu0
  %2935 = vmatprep.subr.mxu0 0.0
  %2936 = vmatpush1.msra.mxu0 %v2715
  %2937 = vmatprep.subr.mxu0 0.0
  %2938 = vmatpush1.msra.mxu0 %v2716
  %2939 = vmatprep.subr.mxu0 0.0
  %2940 = vmatpush1.msra.mxu0 %v2717
  %2941 = vmatprep.subr.mxu0 0.0
  %2942 = vmatpush1.msra.mxu0 %v2718
  %2943 = vmatprep.subr.mxu0 0.0
  %2944 = vmatpush1.msra.mxu0 %v2719
  %2945 = vmatprep.subr.mxu0 0.0
  %2946 = vmatpush1.msra.mxu0 %v2720
  %2947 = vmatprep.subr.mxu0 0.0
  %2948 = vmatpush1.msra.mxu0 %v2721
  %2949 = vmatprep.subr.mxu0 0.0
  %2950 = vmatpush1.msra.mxu0 %v2722
  %2951 = vmatprep.subr.mxu0 0.0
  %2952 = vmatpush1.msra.mxu0 %v2723
  %2953 = vmatprep.subr.mxu0 0.0
  %2954 = vmatpush1.msra.mxu0 %v2724
  %2955 = vmatprep.subr.mxu0 0.0
  %2956 = vmatpush1.msra.mxu0 %v2725
  %2957 = vmatprep.subr.mxu0 0.0
  %2958 = vmatpush1.msra.mxu0 %v2726
  %2959 = vmatprep.subr.mxu0 0.0
  %2960 = vmatpush1.msra.mxu0 %v2727
  %2961 = vmatprep.subr.mxu0 0.0
  %2962 = vmatpush1.msra.mxu0 %v2728
  %2963 = vmatprep.subr.mxu0 0.0
  %2964 = vmatpush1.msra.mxu0 %v2729
  %2965 = vmatprep.subr.mxu0 0.0
  %2966 = vmatpush1.msra.mxu0 %v2730
  %2967 = vmatprep.subr.mxu0 0.0
  %2968 = vmatpush1.msra.mxu0 0.0
  %2969 = vmatprep.subr.mxu0 0.0
  %2970 = vmatpush1.msra.mxu0 0.0
  %2971 = vmatprep.subr.mxu0 0.0
  %2972 = vmatpush1.msra.mxu0 0.0
  %2973 = vmatprep.subr.mxu0 0.0
  %2974 = vmatpush1.msra.mxu0 0.0
  %2975 = vmatprep.subr.mxu0 0.0
  %2976 = vmatpush1.msra.mxu0 0.0
  %2977 = vmatprep.subr.mxu0 0.0
  %2978 = vmatpush1.msra.mxu0 0.0
  %2979 = vmatprep.subr.mxu0 0.0
  %2980 = vmatpush1.msra.mxu0 0.0
  %2981 = vmatprep.subr.mxu0 0.0
  %2982 = vmatpush1.msra.mxu0 0.0
  %2983 = vmatprep.subr.mxu0 0.0
  %2984 = vmatpush1.msra.mxu0 0.0
  %2985 = vmatprep.subr.mxu0 0.0
  %2986 = vmatpush1.msra.mxu0 0.0
  %2987 = vmatprep.subr.mxu0 0.0
  %2988 = vmatpush1.msra.mxu0 0.0
  %2989 = vmatprep.subr.mxu0 0.0
  %2990 = vmatpush1.msra.mxu0 0.0
  %2991 = vmatprep.subr.mxu0 0.0
  %2992 = vmatpush1.msra.mxu0 0.0
  %2993 = vmatprep.subr.mxu0 0.0
  %2994 = vmatpush1.msra.mxu0 0.0
  %2995 = vmatprep.subr.mxu0 0.0
  %2996 = vmatpush1.msra.mxu0 0.0
  %2997 = vmatprep.subr.mxu0 0.0
  %2998 = vmatpush1.msra.mxu0 0.0
  %2999 = vmatprep.mubr.f32.mxu0 0.0
  %3000 = vmatmul.mubr.f32.gmra.mrb[0].mxu0 %v2832
  %v3001 = vpop.f32.mrb[0].mxu0
  %v3002 = vadd.f32 %v2917, %v3001
  %v3003 = vpop.f32.mrb[0].mxu0
  %3004 = vmatprep.mubr.f32.mxu0 0.0
  %3005 = vmatmul.mubr.f32.gmra.mrb[0].mxu0 %v2837
  %v3006 = vpop.f32.mrb[0].mxu0
  %v3007 = vadd.f32 %v2922, %v3006
  %v3008 = vpop.f32.mrb[0].mxu0
  %3009 = vmatprep.mubr.f32.mxu0 0.0
  %3010 = vmatmul.mubr.f32.gmra.mrb[0].mxu0 %v2842
  %v3011 = vpop.f32.mrb[0].mxu0
  %v3012 = vadd.f32 %v2927, %v3011
  %v3013 = vpop.f32.mrb[0].mxu0
  %3014 = vmatprep.mubr.f32.mxu0 0.0
  %3015 = vmatmul.mubr.f32.gmra.mrb[0].mxu0 %v2847
  %v3016 = vpop.f32.mrb[0].mxu0
  %v3017 = vadd.f32 %v2932, %v3016
  %v3018 = vpop.f32.mrb[0].mxu0
  %3019 = vdwg.mxu0
  %3020 = vmatprep.subr.mxu0 0.0
  %3021 = vmatpush1.msra.mxu0 %v2710
  %3022 = vmatprep.subr.mxu0 0.0
  %3023 = vmatpush1.msra.mxu0 %v2711
  %3024 = vmatprep.subr.mxu0 0.0
  %3025 = vmatpush1.msra.mxu0 %v2712
  %3026 = vmatprep.subr.mxu0 0.0
  %3027 = vmatpush1.msra.mxu0 %v2713
  %3028 = vmatprep.subr.mxu0 0.0
  %3029 = vmatpush1.msra.mxu0 0.0
  %3030 = vmatprep.subr.mxu0 0.0
  %3031 = vmatpush1.msra.mxu0 0.0
  %3032 = vmatprep.subr.mxu0 0.0
  %3033 = vmatpush1.msra.mxu0 0.0
  %3034 = vmatprep.subr.mxu0 0.0
  %3035 = vmatpush1.msra.mxu0 0.0
  %3036 = vmatprep.subr.mxu0 0.0
  %3037 = vmatpush1.msra.mxu0 0.0
  %3038 = vmatprep.subr.mxu0 0.0
  %3039 = vmatpush1.msra.mxu0 0.0
  %3040 = vmatprep.subr.mxu0 0.0
  %3041 = vmatpush1.msra.mxu0 0.0
  %3042 = vmatprep.subr.mxu0 0.0
  %3043 = vmatpush1.msra.mxu0 0.0
  %3044 = vmatprep.subr.mxu0 0.0
  %3045 = vmatpush1.msra.mxu0 0.0
  %3046 = vmatprep.subr.mxu0 0.0
  %3047 = vmatpush1.msra.mxu0 0.0
  %3048 = vmatprep.subr.mxu0 0.0
  %3049 = vmatpush1.msra.mxu0 0.0
  %3050 = vmatprep.subr.mxu0 0.0
  %3051 = vmatpush1.msra.mxu0 0.0
  %3052 = vmatprep.subr.mxu0 0.0
  %3053 = vmatpush1.msra.mxu0 0.0
  %3054 = vmatprep.subr.mxu0 0.0
  %3055 = vmatpush1.msra.mxu0 0.0
  %3056 = vmatprep.subr.mxu0 0.0
  %3057 = vmatpush1.msra.mxu0 0.0
  %3058 = vmatprep.subr.mxu0 0.0
  %3059 = vmatpush1.msra.mxu0 0.0
  %3060 = vmatprep.subr.mxu0 0.0
  %3061 = vmatpush1.msra.mxu0 0.0
  %3062 = vmatprep.subr.mxu0 0.0
  %3063 = vmatpush1.msra.mxu0 0.0
  %3064 = vmatprep.subr.mxu0 0.0
  %3065 = vmatpush1.msra.mxu0 0.0
  %3066 = vmatprep.subr.mxu0 0.0
  %3067 = vmatpush1.msra.mxu0 0.0
  %3068 = vmatprep.subr.mxu0 0.0
  %3069 = vmatpush1.msra.mxu0 0.0
  %3070 = vmatprep.subr.mxu0 0.0
  %3071 = vmatpush1.msra.mxu0 0.0
  %3072 = vmatprep.subr.mxu0 0.0
  %3073 = vmatpush1.msra.mxu0 0.0
  %3074 = vmatprep.subr.mxu0 0.0
  %3075 = vmatpush1.msra.mxu0 0.0
  %3076 = vmatprep.subr.mxu0 0.0
  %3077 = vmatpush1.msra.mxu0 0.0
  %3078 = vmatprep.subr.mxu0 0.0
  %3079 = vmatpush1.msra.mxu0 0.0
  %3080 = vmatprep.subr.mxu0 0.0
  %3081 = vmatpush1.msra.mxu0 0.0
  %3082 = vmatprep.subr.mxu0 0.0
  %3083 = vmatpush1.msra.mxu0 0.0
  %3084 = vmatprep.mubr.f32.mxu0 0.0
  %3085 = vmatmul.mubr.f32.gmra.mrb[0].mxu0 %v666
  %v3086 = vpop.f32.mrb[0].mxu0
  %v3087 = vadd.f32 0.0, %v3086
  %v3088 = vpop.f32.mrb[0].mxu0
  %3089 = vmatprep.mubr.f32.mxu0 0.0
  %3090 = vmatmul.mubr.f32.gmra.mrb[0].mxu0 %v669
  %v3091 = vpop.f32.mrb[0].mxu0
  %v3092 = vadd.f32 0.0, %v3091
  %v3093 = vpop.f32.mrb[0].mxu0
  %3094 = vmatprep.mubr.f32.mxu0 0.0
  %3095 = vmatmul.mubr.f32.gmra.mrb[0].mxu0 %v672
  %v3096 = vpop.f32.mrb[0].mxu0
  %v3097 = vadd.f32 0.0, %v3096
  %v3098 = vpop.f32.mrb[0].mxu0
  %3099 = vmatprep.mubr.f32.mxu0 0.0
  %3100 = vmatmul.mubr.f32.gmra.mrb[0].mxu0 %v675
  %v3101 = vpop.f32.mrb[0].mxu0
  %v3102 = vadd.f32 0.0, %v3101
  %v3103 = vpop.f32.mrb[0].mxu0
  %3104 = vdwg.mxu0
  %3105 = vmatprep.subr.mxu0 0.0
  %3106 = vmatpush1.msra.mxu0 %v2749
  %3107 = vmatprep.subr.mxu0 0.0
  %3108 = vmatpush1.msra.mxu0 %v2750
  %3109 = vmatprep.subr.mxu0 0.0
  %3110 = vmatpush1.msra.mxu0 %v2751
  %3111 = vmatprep.subr.mxu0 0.0
  %3112 = vmatpush1.msra.mxu0 %v2752
  %3113 = vmatprep.subr.mxu0 0.0
  %3114 = vmatpush1.msra.mxu0 %v2753
  %3115 = vmatprep.subr.mxu0 0.0
  %3116 = vmatpush1.msra.mxu0 %v2754
  %3117 = vmatprep.subr.mxu0 0.0
  %3118 = vmatpush1.msra.mxu0 %v2755
  %3119 = vmatprep.subr.mxu0 0.0
  %3120 = vmatpush1.msra.mxu0 %v2756
  %3121 = vmatprep.subr.mxu0 0.0
  %3122 = vmatpush1.msra.mxu0 %v2757
  %3123 = vmatprep.subr.mxu0 0.0
  %3124 = vmatpush1.msra.mxu0 %v2758
  %3125 = vmatprep.subr.mxu0 0.0
  %3126 = vmatpush1.msra.mxu0 %v2759
  %3127 = vmatprep.subr.mxu0 0.0
  %3128 = vmatpush1.msra.mxu0 %v2760
  %3129 = vmatprep.subr.mxu0 0.0
  %3130 = vmatpush1.msra.mxu0 %v2761
  %3131 = vmatprep.subr.mxu0 0.0
  %3132 = vmatpush1.msra.mxu0 %v2762
  %3133 = vmatprep.subr.mxu0 0.0
  %3134 = vmatpush1.msra.mxu0 %v2763
  %3135 = vmatprep.subr.mxu0 0.0
  %3136 = vmatpush1.msra.mxu0 %v2764
  %3137 = vmatprep.subr.mxu0 0.0
  %3138 = vmatpush1.msra.mxu0 0.0
  %3139 = vmatprep.subr.mxu0 0.0
  %3140 = vmatpush1.msra.mxu0 0.0
  %3141 = vmatprep.subr.mxu0 0.0
  %3142 = vmatpush1.msra.mxu0 0.0
  %3143 = vmatprep.subr.mxu0 0.0
  %3144 = vmatpush1.msra.mxu0 0.0
  %3145 = vmatprep.subr.mxu0 0.0
  %3146 = vmatpush1.msra.mxu0 0.0
  %3147 = vmatprep.subr.mxu0 0.0
  %3148 = vmatpush1.msra.mxu0 0.0
  %3149 = vmatprep.subr.mxu0 0.0
  %3150 = vmatpush1.msra.mxu0 0.0
  %3151 = vmatprep.subr.mxu0 0.0
  %3152 = vmatpush1.msra.mxu0 0.0
  %3153 = vmatprep.subr.mxu0 0.0
  %3154 = vmatpush1.msra.mxu0 0.0
  %3155 = vmatprep.subr.mxu0 0.0
  %3156 = vmatpush1.msra.mxu0 0.0
  %3157 = vmatprep.subr.mxu0 0.0
  %3158 = vmatpush1.msra.mxu0 0.0
  %3159 = vmatprep.subr.mxu0 0.0
  %3160 = vmatpush1.msra.mxu0 0.0
  %3161 = vmatprep.subr.mxu0 0.0
  %3162 = vmatpush1.msra.mxu0 0.0
  %3163 = vmatprep.subr.mxu0 0.0
  %3164 = vmatpush1.msra.mxu0 0.0
  %3165 = vmatprep.subr.mxu0 0.0
  %3166 = vmatpush1.msra.mxu0 0.0
  %3167 = vmatprep.subr.mxu0 0.0
  %3168 = vmatpush1.msra.mxu0 0.0
  %3169 = vmatprep.mubr.f32.mxu0 0.0
  %3170 = vmatmul.mubr.f32.gmra.mrb[0].mxu0 %v3087
  %v3171 = vpop.f32.mrb[0].mxu0
  %v3172 = vadd.f32 0.0, %v3171
  %v3173 = vpop.f32.mrb[0].mxu0
  %3174 = vmatprep.mubr.f32.mxu0 0.0
  %3175 = vmatmul.mubr.f32.gmra.mrb[0].mxu0 %v3092
  %v3176 = vpop.f32.mrb[0].mxu0
  %v3177 = vadd.f32 0.0, %v3176
  %v3178 = vpop.f32.mrb[0].mxu0
  %3179 = vmatprep.mubr.f32.mxu0 0.0
  %3180 = vmatmul.mubr.f32.gmra.mrb[0].mxu0 %v3097
  %v3181 = vpop.f32.mrb[0].mxu0
  %v3182 = vadd.f32 0.0, %v3181
  %v3183 = vpop.f32.mrb[0].mxu0
  %3184 = vmatprep.mubr.f32.mxu0 0.0
  %3185 = vmatmul.mubr.f32.gmra.mrb[0].mxu0 %v3102
  %v3186 = vpop.f32.mrb[0].mxu0
  %v3187 = vadd.f32 0.0, %v3186
  %v3188 = vpop.f32.mrb[0].mxu0
  %3189 = vdwg.mxu0
  %v3190 = vadd.f32 %v3002, %v3172
  %v3191 = vadd.f32 %v3007, %v3177
  %v3192 = vadd.f32 %v3012, %v3182
  %v3193 = vadd.f32 %v3017, %v3187
  %v3194 = vadd.f32 %v3190, %v3191
  %v3195 = vadd.f32 %v3194, %v3192
  %v3196 = vadd.f32 %v3195, %v3193
  %v3197 = vrot.slane %v3196, 4
  %v3198 = vadd.f32 %v3196, %v3197
  %v3199 = vrot.slane %v3198, 2
  %v3200 = vadd.f32 %v3198, %v3199
  %v3201 = vrot.slane %v3200, 1
  %v3202 = vadd.f32 %v3200, %v3201
  %v3203 = vmul.f32 %v3190, %v3190
  %v3204 = vmul.f32 %v3191, %v3191
  %v3205 = vmul.f32 %v3192, %v3192
  %v3206 = vmul.f32 %v3193, %v3193
  %v3207 = vadd.f32 %v3203, %v3204
  %v3208 = vadd.f32 %v3207, %v3205
  %v3209 = vadd.f32 %v3208, %v3206
  %v3210 = vrot.slane %v3209, 4
  %v3211 = vadd.f32 %v3209, %v3210
  %v3212 = vrot.slane %v3211, 2
  %v3213 = vadd.f32 %v3211, %v3212
  %v3214 = vrot.slane %v3213, 1
  %v3215 = vadd.f32 %v3213, %v3214
  %3216 = vmatprep.subr.mxu0 0.0
  %3217 = vmatpush1.msra.mxu0 %v33
  %3218 = vmatprep.subr.mxu0 0.0
  %3219 = vmatpush1.msra.mxu0 %v34
  %3220 = vmatprep.subr.mxu0 0.0
  %3221 = vmatpush1.msra.mxu0 %v35
  %3222 = vmatprep.subr.mxu0 0.0
  %3223 = vmatpush1.msra.mxu0 %v36
  %3224 = vmatprep.subr.mxu0 0.0
  %3225 = vmatpush1.msra.mxu0 %v37
  %3226 = vmatprep.subr.mxu0 0.0
  %3227 = vmatpush1.msra.mxu0 %v38
  %3228 = vmatprep.subr.mxu0 0.0
  %3229 = vmatpush1.msra.mxu0 %v39
  %3230 = vmatprep.subr.mxu0 0.0
  %3231 = vmatpush1.msra.mxu0 %v40
  %3232 = vmatprep.subr.mxu0 0.0
  %3233 = vmatpush1.msra.mxu0 %v41
  %3234 = vmatprep.subr.mxu0 0.0
  %3235 = vmatpush1.msra.mxu0 %v42
  %3236 = vmatprep.subr.mxu0 0.0
  %3237 = vmatpush1.msra.mxu0 %v43
  %3238 = vmatprep.subr.mxu0 0.0
  %3239 = vmatpush1.msra.mxu0 %v44
  %3240 = vmatprep.subr.mxu0 0.0
  %3241 = vmatpush1.msra.mxu0 %v45
  %3242 = vmatprep.subr.mxu0 0.0
  %3243 = vmatpush1.msra.mxu0 %v46
  %3244 = vmatprep.subr.mxu0 0.0
  %3245 = vmatpush1.msra.mxu0 %v47
  %3246 = vmatprep.subr.mxu0 0.0
  %3247 = vmatpush1.msra.mxu0 %v48
  %3248 = vmatprep.subr.mxu0 0.0
  %3249 = vmatpush1.msra.mxu0 0.0
  %3250 = vmatprep.subr.mxu0 0.0
  %3251 = vmatpush1.msra.mxu0 0.0
  %3252 = vmatprep.subr.mxu0 0.0
  %3253 = vmatpush1.msra.mxu0 0.0
  %3254 = vmatprep.subr.mxu0 0.0
  %3255 = vmatpush1.msra.mxu0 0.0
  %3256 = vmatprep.subr.mxu0 0.0
  %3257 = vmatpush1.msra.mxu0 0.0
  %3258 = vmatprep.subr.mxu0 0.0
  %3259 = vmatpush1.msra.mxu0 0.0
  %3260 = vmatprep.subr.mxu0 0.0
  %3261 = vmatpush1.msra.mxu0 0.0
  %3262 = vmatprep.subr.mxu0 0.0
  %3263 = vmatpush1.msra.mxu0 0.0
  %3264 = vmatprep.subr.mxu0 0.0
  %3265 = vmatpush1.msra.mxu0 0.0
  %3266 = vmatprep.subr.mxu0 0.0
  %3267 = vmatpush1.msra.mxu0 0.0
  %3268 = vmatprep.subr.mxu0 0.0
  %3269 = vmatpush1.msra.mxu0 0.0
  %3270 = vmatprep.subr.mxu0 0.0
  %3271 = vmatpush1.msra.mxu0 0.0
  %3272 = vmatprep.subr.mxu0 0.0
  %3273 = vmatpush1.msra.mxu0 0.0
  %3274 = vmatprep.subr.mxu0 0.0
  %3275 = vmatpush1.msra.mxu0 0.0
  %3276 = vmatprep.subr.mxu0 0.0
  %3277 = vmatpush1.msra.mxu0 0.0
  %3278 = vmatprep.subr.mxu0 0.0
  %3279 = vmatpush1.msra.mxu0 0.0
  %3280 = vmatprep.mubr.f32.mxu0 0.0
  %3281 = vmatmul.mubr.f32.gmra.mrb[0].mxu0 %v3202
  %v3282 = vpop.f32.mrb[0].mxu0
  %v3283 = vadd.f32 0.0, %v3282
  %v3284 = vpop.f32.mrb[0].mxu0
  %3285 = vdwg.mxu0
  %3286 = vmatprep.subr.mxu0 0.0
  %3287 = vmatpush1.msra.mxu0 %v33
  %3288 = vmatprep.subr.mxu0 0.0
  %3289 = vmatpush1.msra.mxu0 %v34
  %3290 = vmatprep.subr.mxu0 0.0
  %3291 = vmatpush1.msra.mxu0 %v35
  %3292 = vmatprep.subr.mxu0 0.0
  %3293 = vmatpush1.msra.mxu0 %v36
  %3294 = vmatprep.subr.mxu0 0.0
  %3295 = vmatpush1.msra.mxu0 %v37
  %3296 = vmatprep.subr.mxu0 0.0
  %3297 = vmatpush1.msra.mxu0 %v38
  %3298 = vmatprep.subr.mxu0 0.0
  %3299 = vmatpush1.msra.mxu0 %v39
  %3300 = vmatprep.subr.mxu0 0.0
  %3301 = vmatpush1.msra.mxu0 %v40
  %3302 = vmatprep.subr.mxu0 0.0
  %3303 = vmatpush1.msra.mxu0 %v41
  %3304 = vmatprep.subr.mxu0 0.0
  %3305 = vmatpush1.msra.mxu0 %v42
  %3306 = vmatprep.subr.mxu0 0.0
  %3307 = vmatpush1.msra.mxu0 %v43
  %3308 = vmatprep.subr.mxu0 0.0
  %3309 = vmatpush1.msra.mxu0 %v44
  %3310 = vmatprep.subr.mxu0 0.0
  %3311 = vmatpush1.msra.mxu0 %v45
  %3312 = vmatprep.subr.mxu0 0.0
  %3313 = vmatpush1.msra.mxu0 %v46
  %3314 = vmatprep.subr.mxu0 0.0
  %3315 = vmatpush1.msra.mxu0 %v47
  %3316 = vmatprep.subr.mxu0 0.0
  %3317 = vmatpush1.msra.mxu0 %v48
  %3318 = vmatprep.subr.mxu0 0.0
  %3319 = vmatpush1.msra.mxu0 0.0
  %3320 = vmatprep.subr.mxu0 0.0
  %3321 = vmatpush1.msra.mxu0 0.0
  %3322 = vmatprep.subr.mxu0 0.0
  %3323 = vmatpush1.msra.mxu0 0.0
  %3324 = vmatprep.subr.mxu0 0.0
  %3325 = vmatpush1.msra.mxu0 0.0
  %3326 = vmatprep.subr.mxu0 0.0
  %3327 = vmatpush1.msra.mxu0 0.0
  %3328 = vmatprep.subr.mxu0 0.0
  %3329 = vmatpush1.msra.mxu0 0.0
  %3330 = vmatprep.subr.mxu0 0.0
  %3331 = vmatpush1.msra.mxu0 0.0
  %3332 = vmatprep.subr.mxu0 0.0
  %3333 = vmatpush1.msra.mxu0 0.0
  %3334 = vmatprep.subr.mxu0 0.0
  %3335 = vmatpush1.msra.mxu0 0.0
  %3336 = vmatprep.subr.mxu0 0.0
  %3337 = vmatpush1.msra.mxu0 0.0
  %3338 = vmatprep.subr.mxu0 0.0
  %3339 = vmatpush1.msra.mxu0 0.0
  %3340 = vmatprep.subr.mxu0 0.0
  %3341 = vmatpush1.msra.mxu0 0.0
  %3342 = vmatprep.subr.mxu0 0.0
  %3343 = vmatpush1.msra.mxu0 0.0
  %3344 = vmatprep.subr.mxu0 0.0
  %3345 = vmatpush1.msra.mxu0 0.0
  %3346 = vmatprep.subr.mxu0 0.0
  %3347 = vmatpush1.msra.mxu0 0.0
  %3348 = vmatprep.subr.mxu0 0.0
  %3349 = vmatpush1.msra.mxu0 0.0
  %3350 = vmatprep.mubr.f32.mxu0 0.0
  %3351 = vmatmul.mubr.f32.gmra.mrb[0].mxu0 %v3215
  %v3352 = vpop.f32.mrb[0].mxu0
  %v3353 = vadd.f32 0.0, %v3352
  %v3354 = vpop.f32.mrb[0].mxu0
  %3355 = vdwg.mxu0
  %v3356 = vmul.f32 %v3283, %v3283
  %v3357 = vsub.f32 %v3353, %v3356
  %v3358 = vmax.f32 %v3357, 0.0
  %s3359 = scalar_lea.vmem %s6, 4
  %v3360 = vld [vmem:[%s3359] sm:$0x1]
  %v3361 = vadd.f32 %v3358, 1e-05
  %v3362 = vrsqrt.pop %v3361
  %v3363 = vmul.f32 %v3360, %v3362
  %s3364 = scalar_lea.vmem %s7, 4
  %v3365 = vld [vmem:[%s3364] sm:$0x1]
  %v3366 = vmul.f32 %v3283, %v3363
  %v3367 = vsub.f32 %v3365, %v3366
  %v3369 = vlaneseq
  %v3370 = vshrl.u32 %v3369, 7
  %v3371 = vsub.s32 0, %v3370
  %v3372 = vrot.slane %v3363, %v3371
  %v3374 = vmul.f32 %v3190, %v3372
  %v3375 = vmul.f32 %v3191, %v3372
  %v3376 = vmul.f32 %v3192, %v3372
  %v3377 = vmul.f32 %v3193, %v3372
  %v3379 = vlaneseq
  %v3380 = vshrl.u32 %v3379, 7
  %v3381 = vsub.s32 0, %v3380
  %v3382 = vrot.slane %v3367, %v3381
  %v3384 = vadd.f32 %v3374, %v3382
  %v3385 = vadd.f32 %v3375, %v3382
  %v3386 = vadd.f32 %v3376, %v3382
  %v3387 = vadd.f32 %v3377, %v3382
  %v3388 = vadd.f32 %v3384, %v2032
  %v3389 = vadd.f32 %v3385, %v2033
  %v3390 = vadd.f32 %v3386, %v2034
  %v3391 = vadd.f32 %v3387, %v2035
  %v3392 = vmax.f32 %v3388, 0.0
  %v3393 = vmax.f32 %v3389, 0.0
  %v3394 = vmax.f32 %v3390, 0.0
  %v3395 = vmax.f32 %v3391, 0.0
  %v3396 = vld [vmem:[%s1] sm:$0xff]
  %v3397 = vld [vmem:[%s1 + $0x8] sm:$0xff]
  %v3398 = vld [vmem:[%s1 + $0x10] sm:$0xff]
  %v3399 = vld [vmem:[%s1 + $0x18] sm:$0xff]
  %v3400 = vadd.f32 %v3392, %v3396
  %v3401 = vadd.f32 %v3393, %v3397
  %v3402 = vadd.f32 %v3394, %v3398
  %v3403 = vadd.f32 %v3395, %v3399
  %3404 = vst [vmem:[%s8] sm:$0xff] %v3400
  %3405 = vst [vmem:[%s8 + $0x8] sm:$0xff] %v3401
  %3406 = vst [vmem:[%s8 + $0x10] sm:$0xff] %v3402
  %3407 = vst [vmem:[%s8 + $0x18] sm:$0xff] %v3403
  // Predicated region
  $region34: #{resnet_with_time_embed.1} parent=0 // pred_check
    _
  $region35: #{resnet_with_time_embed.1} parent=0 // pred_check_branch
    %3409 = sbr.rel (0) target = $region37
  $region36: #{resnet_with_time_embed.1} parent=0 // pred_region
    _
  $region37: #{resnet_with_time_embed.1} parent=0 // pred_fallthru
    _
  // Predicated region
  $region38: #{resnet_with_time_embed.1} parent=0 // pred_check
    _
  $region39: #{resnet_with_time_embed.1} parent=0 // pred_check_branch
    %3411 = sbr.rel (0) target = $region41
  $region40: #{resnet_with_time_embed.1} parent=0 // pred_region
    _
  $region41: #{resnet_with_time_embed.1} parent=0 // pred_fallthru
    _

</llo_original>
